<compile_context>
chip_gen: v7x
topology: tpu7x:2x2x1
jax: 0.10.0
libtpu: 0.0.40
codegen_flags: <defaults>
</compile_context>

<pallas_src>
import jax
import jax.numpy as jnp
import numpy as np
from jax.experimental import pallas as pl
from jax.experimental.pallas import tpu as pltpu

EMBED_DIM = 200


# ----------------------------------------------------------------------------
# Small helpers (padding / tile selection)
# ----------------------------------------------------------------------------
def _round_up(x, m):
    return ((x + m - 1) // m) * m


def _row_tile(m):
    """Largest sublane-aligned tile that divides m (m is a multiple of 8)."""
    for t in (1024, 512, 256, 128, 64, 32, 16, 8):
        if m % t == 0:
            return t
    return m


def _lane_tile(n):
    """Largest lane-aligned tile that divides n (n is a multiple of 128)."""
    for t in (512, 256, 128):
        if n % t == 0:
            return t
    return n


# ----------------------------------------------------------------------------
# Fully-connected (tiled matmul + bias) kernel
# ----------------------------------------------------------------------------
def _matmul_bias_kernel(x_ref, w_ref, b_ref, o_ref):
    o_ref[...] = (jnp.dot(x_ref[...], w_ref[...],
                          preferred_element_type=jnp.float32)
                  + b_ref[...]).astype(o_ref.dtype)


def linear_bias(x, w, b):
    """x: (M, K) bf16, w: (K, N) bf16, b: (1, N) f32 -> (M, N) f32.

    Rows are padded so a large, dense row tile can always be used
    (review: 512/1024 row tiles ~85% of HBM roofline vs ~63% at 256).
    Both grid axes are "parallel" so v7x can use both TensorCores.
    """
    M, K = x.shape
    N = w.shape[1]
    Mp = _round_up(M, 256) if M > 256 else _round_up(M, 8)
    if Mp != M:
        x = jnp.concatenate([x, jnp.zeros((Mp - M, K), x.dtype)], axis=0)
    tm = _row_tile(Mp)
    tn = _lane_tile(N)
    out = pl.pallas_call(
        _matmul_bias_kernel,
        out_shape=jax.ShapeDtypeStruct((Mp, N), jnp.float32),
        grid_spec=pltpu.PrefetchScalarGridSpec(
            num_scalar_prefetch=0,
            grid=(Mp // tm, N // tn),
            in_specs=[pl.BlockSpec((tm, K), lambda i, j: (i, 0)),
                      pl.BlockSpec((K, tn), lambda i, j: (0, j)),
                      pl.BlockSpec((1, tn), lambda i, j: (0, j))],
            out_specs=pl.BlockSpec((tm, tn), lambda i, j: (i, j))),
        compiler_params=pltpu.CompilerParams(
            dimension_semantics=("parallel", "parallel")),
    )(x, w, b)
    return out[:M]


# ----------------------------------------------------------------------------
# Fused LSTM layer kernel: input projection + recurrence in one pallas_call
# ----------------------------------------------------------------------------
def _make_lstm_layer_kernel(T, s_actual, s_padded):
    masked = (s_padded != s_actual)   # only the last time block needs a mask

    def kernel(x_ref, wih_ref, whh_ref, b_ref, h0_ref, c0_ref,
               y_ref, hT_ref, cT_ref, gin_scr, h_scr, c_scr):
        # x_ref   : (T, BPs, D)   bf16 input block (time-major)
        # wih_ref : (D, 4HP)      bf16, VMEM-resident
        # whh_ref : (HP, 4HP)     bf16, VMEM-resident
        # b_ref   : (1, 4HP)      f32  (b_ih + b_hh)
        # h0/c0   : (BPs, HP)     f32 initial state (read at time block 0)
        # y_ref   : (T, BPs, HP)  bf16 per-timestep hidden output
        # hT/cT   : (BPs, HP)     f32 final state (written once at last block)
        # gin_scr : (T*BPs, 4HP)  f32 VMEM scratch for the input projection
        # h_scr   : (BPs, HP)     bf16 recurrent h state
        # c_scr   : (BPs, HP)     f32  recurrent c state
        sblk = pl.program_id(1)
        Tb, BPs, D = x_ref.shape
        HP = whh_ref.shape[0]

        @pl.when(sblk == 0)
        def _():
            h_scr[...] = h0_ref[...].astype(h_scr.dtype)
            c_scr[...] = c0_ref[...]

        # Fused input projection for the whole time block: one MXU matmul,
        # result stays in VMEM (no f32 gin round trip through HBM).
        gin_scr[...] = (jnp.dot(x_ref[...].reshape(Tb * BPs, D), wih_ref[...],
                                preferred_element_type=jnp.float32)
                        + b_ref[...])

        # T is small & static: unroll the timesteps so the scheduler can
        # overlap the tiny h @ W_hh MXU matmul with the VPU/EUP gate math.
        # Gate order matches PyTorch: i, f, g, o.  Gate math stays f32
        # (v5e has no bf16 VPU/EUP path).
        for t in range(Tb):
            gates = gin_scr[pl.ds(t * BPs, BPs), :] + jnp.dot(
                h_scr[...], whh_ref[...], preferred_element_type=jnp.float32)
            i_g = jax.nn.sigmoid(gates[:, 0:HP])
            f_g = jax.nn.sigmoid(gates[:, HP:2 * HP])
            g_g = jnp.tanh(gates[:, 2 * HP:3 * HP])
            o_g = jax.nn.sigmoid(gates[:, 3 * HP:4 * HP])
            c_new = f_g * c_scr[...] + i_g * g_g
            h_new = o_g * jnp.tanh(c_new)
            if masked:  # remainder steps (sequence padding) leave state as-is
                valid = (sblk * Tb + t) < s_actual
                c_new = jnp.where(valid, c_new, c_scr[...])
                h_new = jnp.where(valid, h_new,
                                  h_scr[...].astype(jnp.float32))
            c_scr[...] = c_new
            h_scr[...] = h_new.astype(h_scr.dtype)
            y_ref[t] = h_new.astype(y_ref.dtype)

        @pl.when(sblk == pl.num_programs(1) - 1)
        def _():
            hT_ref[...] = h_scr[...].astype(hT_ref.dtype)
            cT_ref[...] = c_scr[...]

    return kernel


def lstm_layer(x, w_ih, w_hh, b, h0, c0, *, T, s_actual, n_bsplit=1):
    """x: (S_pad, BP, D) bf16; weights bf16; h0/c0: (BP, HP) f32."""
    S_pad, BP, D = x.shape
    HP, G4 = w_hh.shape
    BPs = BP // n_bsplit
    kernel = _make_lstm_layer_kernel(T, s_actual, S_pad)
    return pl.pallas_call(
        kernel,
        out_shape=(jax.ShapeDtypeStruct((S_pad, BP, HP), jnp.bfloat16),
                   jax.ShapeDtypeStruct((BP, HP), jnp.float32),
                   jax.ShapeDtypeStruct((BP, HP), jnp.float32)),
        grid_spec=pltpu.PrefetchScalarGridSpec(
            num_scalar_prefetch=0,
            # Leading axis splits the batch across TensorCores (v7x); the
            # time axis is sequential ("arbitrary") and carries h/c state.
            grid=(n_bsplit, S_pad // T),
            in_specs=[
                pl.BlockSpec((T, BPs, D), lambda p, s: (s, p, 0)),
                pl.BlockSpec((D, G4), lambda p, s: (0, 0)),
                pl.BlockSpec((HP, G4), lambda p, s: (0, 0)),
                pl.BlockSpec((1, G4), lambda p, s: (0, 0)),
                pl.BlockSpec((BPs, HP), lambda p, s: (p, 0)),
                pl.BlockSpec((BPs, HP), lambda p, s: (p, 0)),
            ],
            out_specs=(
                pl.BlockSpec((T, BPs, HP), lambda p, s: (s, p, 0)),
                pl.BlockSpec((BPs, HP), lambda p, s: (p, 0)),
                pl.BlockSpec((BPs, HP), lambda p, s: (p, 0)),
            ),
            scratch_shapes=[
                pltpu.VMEM((T * BPs, G4), jnp.float32),   # gin (input proj)
                pltpu.VMEM((BPs, HP), jnp.bfloat16),      # h state
                pltpu.VMEM((BPs, HP), jnp.float32),       # c state
            ]),
        compiler_params=pltpu.CompilerParams(
            dimension_semantics=("parallel", "arbitrary")),
    )(x, w_ih, w_hh, b, h0, c0)


# ----------------------------------------------------------------------------
# Parameter init (deterministic, mimics PyTorch default init shapes/ranges)
# ----------------------------------------------------------------------------
def init_params(key, vocab_size, embed_dim, hidden, layers):
    ks = jax.random.split(key, 3 + 4 * layers)
    params = {}
    params["embed"] = jax.random.normal(ks[0], (vocab_size, embed_dim),
                                        jnp.float32)  # nn.Embedding ~ N(0,1)
    k = 1.0 / np.sqrt(hidden)
    w_ih, w_hh, b = [], [], []
    for l in range(layers):
        d_in = embed_dim if l == 0 else hidden
        kw = ks[3 + 4 * l: 3 + 4 * (l + 1)]
        # stored pre-transposed: (d_in, 4H) / (H, 4H); gate order i,f,g,o
        w_ih.append(jax.random.uniform(kw[0], (d_in, 4 * hidden),
                                       jnp.float32, -k, k))
        w_hh.append(jax.random.uniform(kw[1], (hidden, 4 * hidden),
                                       jnp.float32, -k, k))
        b_ih = jax.random.uniform(kw[2], (4 * hidden,), jnp.float32, -k, k)
        b_hh = jax.random.uniform(kw[3], (4 * hidden,), jnp.float32, -k, k)
        b.append((b_ih + b_hh).reshape(1, 4 * hidden))
    params["w_ih"], params["w_hh"], params["b"] = w_ih, w_hh, b
    params["fc_w"] = jax.random.uniform(ks[1], (hidden, vocab_size),
                                        jnp.float32, -k, k)
    params["fc_b"] = jax.random.uniform(ks[2], (1, vocab_size),
                                        jnp.float32, -k, k)
    return params


def prepare_params(params, embed_dim, hidden, vocab_size, layers):
    """Pad embed/hidden/vocab to lane multiples (zero pad) and cast matmul
    operands to bf16.  Zero-padded gate columns keep the padded part of the
    state identically zero, so results match the unpadded math.
    NOTE: per-gate padding wastes lanes when hidden << 128 (test shape); at
    the module default hidden=256 it is already exact."""
    HP = _round_up(hidden, 128)
    VP = _round_up(vocab_size, 128)
    EP = _round_up(embed_dim, 128)
    prep = {"H": hidden, "V": vocab_size, "HP": HP, "VP": VP, "EP": EP}
    prep["embed"] = (jnp.zeros((vocab_size, EP), jnp.float32)
                     .at[:, :embed_dim].set(params["embed"]))
    w_ih_p, w_hh_p, b_p = [], [], []
    for l in range(layers):
        d_in = embed_dim if l == 0 else hidden
        d_in_p = EP if l == 0 else HP
        wih = jnp.zeros((d_in_p, 4 * HP), jnp.float32)
        whh = jnp.zeros((HP, 4 * HP), jnp.float32)
        bb = jnp.zeros((1, 4 * HP), jnp.float32)
        for g in range(4):
            wih = wih.at[:d_in, g * HP:g * HP + hidden].set(
                params["w_ih"][l][:, g * hidden:(g + 1) * hidden])
            whh = whh.at[:hidden, g * HP:g * HP + hidden].set(
                params["w_hh"][l][:, g * hidden:(g + 1) * hidden])
            bb = bb.at[:, g * HP:g * HP + hidden].set(
                params["b"][l][:, g * hidden:(g + 1) * hidden])
        w_ih_p.append(wih.astype(jnp.bfloat16))
        w_hh_p.append(whh.astype(jnp.bfloat16))
        b_p.append(bb)
    prep["w_ih"], prep["w_hh"], prep["b"] = w_ih_p, w_hh_p, b_p
    prep["fc_w"] = (jnp.zeros((HP, VP), jnp.float32)
                    .at[:hidden, :vocab_size].set(params["fc_w"])
                    .astype(jnp.bfloat16))
    prep["fc_b"] = (jnp.zeros((1, VP), jnp.float32)
                    .at[:, :vocab_size].set(params["fc_b"]))
    return prep


# ----------------------------------------------------------------------------
# Forward pass (mirrors LSTM.forward, eval mode)
# ----------------------------------------------------------------------------
def forward(prep, x_ids, hidden_state, hidden, layers):
    B, S = x_ids.shape
    H, V = prep["H"], prep["V"]
    HP, VP, EP = prep["HP"], prep["VP"], prep["EP"]
    BP = _round_up(B, 8)
    n_bsplit = 2 if BP % 16 == 0 else 1      # v7x: use both TensorCores
    T = min(S, 32)                           # timesteps per grid step
    S_pad = _round_up(S, T)                  # remainder handled by masking
    h0_all, c0_all = hidden_state            # (L, B, H)

    # Embedding lookup directly in time-major order (transpose the cheap int
    # id matrix instead of a full-activation transpose).
    emb_tm = jnp.take(prep["embed"], jnp.transpose(x_ids), axis=0)  # (S,B,EP)
    x_tm = jnp.zeros((S_pad, BP, EP), jnp.bfloat16)
    x_tm = x_tm.at[:S, :B, :].set(emb_tm.astype(jnp.bfloat16))

    h0p = jnp.zeros((layers, BP, HP), jnp.float32).at[:, :B, :H].set(h0_all)
    c0p = jnp.zeros((layers, BP, HP), jnp.float32).at[:, :B, :H].set(c0_all)

    h_fin, c_fin = [], []
    for l in range(layers):
        y, hT, cT = lstm_layer(x_tm, prep["w_ih"][l], prep["w_hh"][l],
                               prep["b"][l], h0p[l], c0p[l],
                               T=T, s_actual=S, n_bsplit=n_bsplit)
        # TODO(synk): inter-layer / output dropout uses eval-mode semantics
        # (identity); stochastic train-mode dropout is not reproduced.
        x_tm = y                                          # bf16 (S_pad,BP,HP)
        h_fin.append(hT)
        c_fin.append(cT)

    # Batch-major flatten for the FC head (== lstm_output.reshape(-1, hidden)).
    # TODO(synk): this bf16 transpose could be folded into the FC kernel by
    # writing a (BP, S, VP)-shaped output with an in-kernel tile transpose.
    out_bm = jnp.transpose(x_tm, (1, 0, 2)).reshape(BP * S_pad, HP)   # bf16
    logits_full = linear_bias(out_bm, prep["fc_w"], prep["fc_b"])     # f32
    logits = (logits_full.reshape(BP, S_pad, VP)[:B, :S, :V]
              .reshape(B * S, V))

    hN = jnp.stack(h_fin, 0)[:, :B, :H]
    cN = jnp.stack(c_fin, 0)[:, :B, :H]
    return logits, (hN, cN)


# ----------------------------------------------------------------------------
# Pure-JAX reference (same math / same bf16 cast points) for correctness check
# ----------------------------------------------------------------------------
def reference_forward(params, x_ids, hidden_state, hidden, layers):
    bf = jnp.bfloat16
    emb = jnp.take(params["embed"], x_ids, axis=0)
    h0_all, c0_all = hidden_state
    x = jnp.transpose(emb, (1, 0, 2)).astype(jnp.float32)     # (S, B, D)
    S = x.shape[0]
    h_fin, c_fin = [], []
    for l in range(layers):
        w_ih = params["w_ih"][l].astype(bf)
        w_hh = params["w_hh"][l].astype(bf)
        b = params["b"][l]
        h = h0_all[l]
        c = c0_all[l]
        ys = []
        for t in range(S):
            gates = (jnp.dot(x[t].astype(bf), w_ih,
                             preferred_element_type=jnp.float32) + b
                     + jnp.dot(h.astype(bf), w_hh,
                               preferred_element_type=jnp.float32))
            i = jax.nn.sigmoid(gates[:, 0:hidden])
            f = jax.nn.sigmoid(gates[:, hidden:2 * hidden])
            g = jnp.tanh(gates[:, 2 * hidden:3 * hidden])
            o = jax.nn.sigmoid(gates[:, 3 * hidden:4 * hidden])
            c = f * c + i * g
            h = o * jnp.tanh(c)
            ys.append(h)
        x = jnp.stack(ys, 0)
        h_fin.append(h)
        c_fin.append(c)
    out = jnp.transpose(x, (1, 0, 2)).reshape(-1, hidden)
    logits = (jnp.dot(out.astype(bf), params["fc_w"].astype(bf),
                      preferred_element_type=jnp.float32) + params["fc_b"])
    return logits, (jnp.stack(h_fin, 0), jnp.stack(c_fin, 0))


if __name__ == "__main__":
    vocab_size = 50      # len(dict)
    embed_dim = EMBED_DIM  # fixed by module (nn.Embedding(vocab, 200))
    hidden = 32          # small hidden for test (module default 256)
    layers = 2           # small layer count (module default 4)
    B, S = 2, 8

    key = jax.random.PRNGKey(0)
    params = init_params(key, vocab_size, embed_dim, hidden, layers)
    prep = prepare_params(params, embed_dim, hidden, vocab_size, layers)

    x_ids = jax.random.randint(jax.random.fold_in(key, 123), (B, S),
                               0, vocab_size)
    # initialiseTensors(batch_size)
    h0 = jnp.zeros((layers, B, hidden), jnp.float32)
    c0 = jnp.zeros((layers, B, hidden), jnp.float32)

    logits, (hN, cN) = forward(prep, x_ids, (h0, c0), hidden, layers)
    jax.block_until_ready(logits)
    jax.block_until_ready(hN)
    jax.block_until_ready(cN)

    ref_logits, (ref_h, ref_c) = reference_forward(params, x_ids, (h0, c0),
                                                   hidden, layers)
    assert logits.shape == (B * S, vocab_size)
    assert hN.shape == (layers, B, hidden) and cN.shape == (layers, B, hidden)
    np.testing.assert_allclose(np.asarray(logits), np.asarray(ref_logits),
                               rtol=2e-3, atol=2e-3)
    np.testing.assert_allclose(np.asarray(hN), np.asarray(ref_h),
                               rtol=2e-3, atol=2e-3)
    np.testing.assert_allclose(np.asarray(cN), np.asarray(ref_c),
                               rtol=2e-3, atol=2e-3)

    print("KERNEL_OK")
</pallas_src>

<mosaic_0001>
module attributes {stable_mosaic.version = 11 : i64} {
  func.func @kernel(%arg0: i32, %arg1: i32, %arg2: memref<8x8x256xbf16, #tpu.memory_space<vmem>>, %arg3: memref<256x512xbf16, #tpu.memory_space<vmem>>, %arg4: memref<128x512xbf16, #tpu.memory_space<vmem>>, %arg5: memref<1x512xf32, #tpu.memory_space<vmem>>, %arg6: memref<8x128xf32, #tpu.memory_space<vmem>>, %arg7: memref<8x128xf32, #tpu.memory_space<vmem>>, %arg8: memref<8x8x128xbf16, #tpu.memory_space<vmem>>, %arg9: memref<8x128xf32, #tpu.memory_space<vmem>>, %arg10: memref<8x128xf32, #tpu.memory_space<vmem>>, %arg11: memref<64x512xf32, #tpu.memory_space<vmem>>, %arg12: memref<8x128xbf16, #tpu.memory_space<vmem>>, %arg13: memref<8x128xf32, #tpu.memory_space<vmem>>) attributes {dimension_semantics = [#tpu.dimension_semantics<parallel>, #tpu.dimension_semantics<arbitrary>], iteration_bounds = array<i64: 1, 1>, scalar_prefetch = 0 : i64, scratch_operands = 3 : i64, tpu.core_type = #tpu.core_type<tc>, window_params = [{transform_indices = @transform_0, window_bounds = array<i64: 8, 8, 256>}, {pipeline_mode = #tpu.pipeline_mode<synchronous>, transform_indices = @transform_1, window_bounds = array<i64: 256, 512>}, {pipeline_mode = #tpu.pipeline_mode<synchronous>, transform_indices = @transform_2, window_bounds = array<i64: 128, 512>}, {pipeline_mode = #tpu.pipeline_mode<synchronous>, transform_indices = @transform_3, window_bounds = array<i64: 1, 512>}, {transform_indices = @transform_4, window_bounds = array<i64: 8, 128>}, {transform_indices = @transform_5, window_bounds = array<i64: 8, 128>}, {transform_indices = @transform_6, window_bounds = array<i64: 8, 8, 128>}, {transform_indices = @transform_7, window_bounds = array<i64: 8, 128>}, {transform_indices = @transform_8, window_bounds = array<i64: 8, 128>}]} {
    %c0_i32 = arith.constant 0 : i32
    %0 = arith.cmpi eq, %arg1, %c0_i32 : i32
    %1 = arith.extui %0 : i1 to i32
    %c0_i32_0 = arith.constant 0 : i32
    %2 = arith.cmpi ne, %1, %c0_i32_0 : i32
    scf.if %2 {
      %c0_149 = arith.constant 0 : index
      %c0_150 = arith.constant 0 : index
      %318 = vector.load %arg6[%c0_149, %c0_150] : memref<8x128xf32, #tpu.memory_space<vmem>>, vector<8x128xf32>
      %319 = arith.truncf %318 : vector<8x128xf32> to vector<8x128xbf16>
      %c0_151 = arith.constant 0 : index
      %c0_152 = arith.constant 0 : index
      %320 = vector.load %arg12[%c0_151, %c0_152] : memref<8x128xbf16, #tpu.memory_space<vmem>>, vector<8x128xbf16>
      tpu.vector_store %arg12[%c0_151, %c0_152], %319 {strides = array<i32>} : memref<8x128xbf16, #tpu.memory_space<vmem>>, vector<8x128xbf16>,
      %c0_153 = arith.constant 0 : index
      %c0_154 = arith.constant 0 : index
      %321 = vector.load %arg7[%c0_153, %c0_154] : memref<8x128xf32, #tpu.memory_space<vmem>>, vector<8x128xf32>
      %c0_155 = arith.constant 0 : index
      %c0_156 = arith.constant 0 : index
      %322 = vector.load %arg13[%c0_155, %c0_156] : memref<8x128xf32, #tpu.memory_space<vmem>>, vector<8x128xf32>
      tpu.vector_store %arg13[%c0_155, %c0_156], %321 {strides = array<i32>} : memref<8x128xf32, #tpu.memory_space<vmem>>, vector<8x128xf32>,
    } else {
    }
    %c0 = arith.constant 0 : index
    %c0_1 = arith.constant 0 : index
    %c0_2 = arith.constant 0 : index
    %3 = vector.load %arg2[%c0, %c0_1, %c0_2] : memref<8x8x256xbf16, #tpu.memory_space<vmem>>, vector<8x8x256xbf16>
    %4 = vector.shape_cast %3 : vector<8x8x256xbf16> to vector<64x256xbf16>
    %c0_3 = arith.constant 0 : index
    %c0_4 = arith.constant 0 : index
    %5 = vector.load %arg3[%c0_3, %c0_4] : memref<256x512xbf16, #tpu.memory_space<vmem>>, vector<256x512xbf16>
    %cst = arith.constant dense<0.000000e+00> : vector<64x512xf32>
    %6 = tpu.matmul %4, %5, %cst {dimension_numbers = #tpu.dot_dimension_numbers<[1], [0], [0], [1], [0, 0, 1, 1], [], []>} : vector<64x256xbf16>, vector<256x512xbf16>, vector<64x512xf32> -> vector<64x512xf32>
    %c0_5 = arith.constant 0 : index
    %c0_6 = arith.constant 0 : index
    %7 = vector.load %arg5[%c0_5, %c0_6] : memref<1x512xf32, #tpu.memory_space<vmem>>, vector<1x512xf32>
    %8 = vector.broadcast %7 : vector<1x512xf32> to vector<64x512xf32>
    %9 = arith.addf %6, %8 : vector<64x512xf32>
    %c0_7 = arith.constant 0 : index
    %c0_8 = arith.constant 0 : index
    %10 = vector.load %arg11[%c0_7, %c0_8] : memref<64x512xf32, #tpu.memory_space<vmem>>, vector<64x512xf32>
    tpu.vector_store %arg11[%c0_7, %c0_8], %9 {strides = array<i32>} : memref<64x512xf32, #tpu.memory_space<vmem>>, vector<64x512xf32>,
    %c0_9 = arith.constant 0 : index
    %c0_10 = arith.constant 0 : index
    %11 = vector.load %arg11[%c0_9, %c0_10] : memref<64x512xf32, #tpu.memory_space<vmem>>, vector<8x512xf32>
    %c0_11 = arith.constant 0 : index
    %c0_12 = arith.constant 0 : index
    %12 = vector.load %arg12[%c0_11, %c0_12] : memref<8x128xbf16, #tpu.memory_space<vmem>>, vector<8x128xbf16>
    %c0_13 = arith.constant 0 : index
    %c0_14 = arith.constant 0 : index
    %13 = vector.load %arg4[%c0_13, %c0_14] : memref<128x512xbf16, #tpu.memory_space<vmem>>, vector<128x512xbf16>
    %cst_15 = arith.constant dense<0.000000e+00> : vector<8x512xf32>
    %14 = tpu.matmul %12, %13, %cst_15 {dimension_numbers = #tpu.dot_dimension_numbers<[1], [0], [0], [1], [0, 0, 1, 1], [], []>} : vector<8x128xbf16>, vector<128x512xbf16>, vector<8x512xf32> -> vector<8x512xf32>
    %15 = arith.addf %11, %14 : vector<8x512xf32>
    %16 = vector.extract_strided_slice %15 {offsets = [0, 0], sizes = [8, 128], strides = [1, 1]} : vector<8x512xf32> to vector<8x128xf32>
    %17 = arith.negf %16 : vector<8x128xf32>
    %18 = math.exp %17 : vector<8x128xf32>
    %cst_16 = arith.constant 1.000000e+00 : f32
    %19 = vector.broadcast %cst_16 : f32 to vector<8x128xf32>
    %20 = arith.addf %19, %18 : vector<8x128xf32>
    %21 = arith.divf %19, %20 : vector<8x128xf32>
    %22 = vector.extract_strided_slice %15 {offsets = [0, 128], sizes = [8, 128], strides = [1, 1]} : vector<8x512xf32> to vector<8x128xf32>
    %23 = arith.negf %22 : vector<8x128xf32>
    %24 = math.exp %23 : vector<8x128xf32>
    %cst_17 = arith.constant 1.000000e+00 : f32
    %25 = vector.broadcast %cst_17 : f32 to vector<8x128xf32>
    %26 = arith.addf %25, %24 : vector<8x128xf32>
    %27 = arith.divf %25, %26 : vector<8x128xf32>
    %28 = vector.extract_strided_slice %15 {offsets = [0, 256], sizes = [8, 128], strides = [1, 1]} : vector<8x512xf32> to vector<8x128xf32>
    %29 = math.tanh %28 : vector<8x128xf32>
    %30 = vector.extract_strided_slice %15 {offsets = [0, 384], sizes = [8, 128], strides = [1, 1]} : vector<8x512xf32> to vector<8x128xf32>
    %31 = arith.negf %30 : vector<8x128xf32>
    %32 = math.exp %31 : vector<8x128xf32>
    %cst_18 = arith.constant 1.000000e+00 : f32
    %33 = vector.broadcast %cst_18 : f32 to vector<8x128xf32>
    %34 = arith.addf %33, %32 : vector<8x128xf32>
    %35 = arith.divf %33, %34 : vector<8x128xf32>
    %c0_19 = arith.constant 0 : index
    %c0_20 = arith.constant 0 : index
    %36 = vector.load %arg13[%c0_19, %c0_20] : memref<8x128xf32, #tpu.memory_space<vmem>>, vector<8x128xf32>
    %37 = arith.mulf %27, %36 : vector<8x128xf32>
    %38 = arith.mulf %21, %29 : vector<8x128xf32>
    %39 = arith.addf %37, %38 : vector<8x128xf32>
    %40 = math.tanh %39 : vector<8x128xf32>
    %41 = arith.mulf %35, %40 : vector<8x128xf32>
    %c0_21 = arith.constant 0 : index
    %c0_22 = arith.constant 0 : index
    %42 = vector.load %arg13[%c0_21, %c0_22] : memref<8x128xf32, #tpu.memory_space<vmem>>, vector<8x128xf32>
    tpu.vector_store %arg13[%c0_21, %c0_22], %39 {strides = array<i32>} : memref<8x128xf32, #tpu.memory_space<vmem>>, vector<8x128xf32>,
    %43 = arith.truncf %41 : vector<8x128xf32> to vector<8x128xbf16>
    %c0_23 = arith.constant 0 : index
    %c0_24 = arith.constant 0 : index
    %44 = vector.load %arg12[%c0_23, %c0_24] : memref<8x128xbf16, #tpu.memory_space<vmem>>, vector<8x128xbf16>
    tpu.vector_store %arg12[%c0_23, %c0_24], %43 {strides = array<i32>} : memref<8x128xbf16, #tpu.memory_space<vmem>>, vector<8x128xbf16>,
    %45 = arith.truncf %41 : vector<8x128xf32> to vector<8x128xbf16>
    %c0_25 = arith.constant 0 : index
    %c0_26 = arith.constant 0 : index
    %c0_27 = arith.constant 0 : index
    %46 = vector.load %arg8[%c0_25, %c0_26, %c0_27] : memref<8x8x128xbf16, #tpu.memory_space<vmem>>, vector<1x8x128xbf16>
    %47 = vector.shape_cast %46 : vector<1x8x128xbf16> to vector<8x128xbf16>
    %48 = vector.shape_cast %45 : vector<8x128xbf16> to vector<1x8x128xbf16>
    tpu.vector_store %arg8[%c0_25, %c0_26, %c0_27], %48 {strides = array<i32>} : memref<8x8x128xbf16, #tpu.memory_space<vmem>>, vector<1x8x128xbf16>,
    %c8 = arith.constant 8 : index
    %c0_28 = arith.constant 0 : index
    %49 = vector.load %arg11[%c8, %c0_28] : memref<64x512xf32, #tpu.memory_space<vmem>>, vector<8x512xf32>
    %c0_29 = arith.constant 0 : index
    %c0_30 = arith.constant 0 : index
    %50 = vector.load %arg12[%c0_29, %c0_30] : memref<8x128xbf16, #tpu.memory_space<vmem>>, vector<8x128xbf16>
    %c0_31 = arith.constant 0 : index
    %c0_32 = arith.constant 0 : index
    %51 = vector.load %arg4[%c0_31, %c0_32] : memref<128x512xbf16, #tpu.memory_space<vmem>>, vector<128x512xbf16>
    %cst_33 = arith.constant dense<0.000000e+00> : vector<8x512xf32>
    %52 = tpu.matmul %50, %51, %cst_33 {dimension_numbers = #tpu.dot_dimension_numbers<[1], [0], [0], [1], [0, 0, 1, 1], [], []>} : vector<8x128xbf16>, vector<128x512xbf16>, vector<8x512xf32> -> vector<8x512xf32>
    %53 = arith.addf %49, %52 : vector<8x512xf32>
    %54 = vector.extract_strided_slice %53 {offsets = [0, 0], sizes = [8, 128], strides = [1, 1]} : vector<8x512xf32> to vector<8x128xf32>
    %55 = arith.negf %54 : vector<8x128xf32>
    %56 = math.exp %55 : vector<8x128xf32>
    %cst_34 = arith.constant 1.000000e+00 : f32
    %57 = vector.broadcast %cst_34 : f32 to vector<8x128xf32>
    %58 = arith.addf %57, %56 : vector<8x128xf32>
    %59 = arith.divf %57, %58 : vector<8x128xf32>
    %60 = vector.extract_strided_slice %53 {offsets = [0, 128], sizes = [8, 128], strides = [1, 1]} : vector<8x512xf32> to vector<8x128xf32>
    %61 = arith.negf %60 : vector<8x128xf32>
    %62 = math.exp %61 : vector<8x128xf32>
    %cst_35 = arith.constant 1.000000e+00 : f32
    %63 = vector.broadcast %cst_35 : f32 to vector<8x128xf32>
    %64 = arith.addf %63, %62 : vector<8x128xf32>
    %65 = arith.divf %63, %64 : vector<8x128xf32>
    %66 = vector.extract_strided_slice %53 {offsets = [0, 256], sizes = [8, 128], strides = [1, 1]} : vector<8x512xf32> to vector<8x128xf32>
    %67 = math.tanh %66 : vector<8x128xf32>
    %68 = vector.extract_strided_slice %53 {offsets = [0, 384], sizes = [8, 128], strides = [1, 1]} : vector<8x512xf32> to vector<8x128xf32>
    %69 = arith.negf %68 : vector<8x128xf32>
    %70 = math.exp %69 : vector<8x128xf32>
    %cst_36 = arith.constant 1.000000e+00 : f32
    %71 = vector.broadcast %cst_36 : f32 to vector<8x128xf32>
    %72 = arith.addf %71, %70 : vector<8x128xf32>
    %73 = arith.divf %71, %72 : vector<8x128xf32>
    %c0_37 = arith.constant 0 : index
    %c0_38 = arith.constant 0 : index
    %74 = vector.load %arg13[%c0_37, %c0_38] : memref<8x128xf32, #tpu.memory_space<vmem>>, vector<8x128xf32>
    %75 = arith.mulf %65, %74 : vector<8x128xf32>
    %76 = arith.mulf %59, %67 : vector<8x128xf32>
    %77 = arith.addf %75, %76 : vector<8x128xf32>
    %78 = math.tanh %77 : vector<8x128xf32>
    %79 = arith.mulf %73, %78 : vector<8x128xf32>
    %c0_39 = arith.constant 0 : index
    %c0_40 = arith.constant 0 : index
    %80 = vector.load %arg13[%c0_39, %c0_40] : memref<8x128xf32, #tpu.memory_space<vmem>>, vector<8x128xf32>
    tpu.vector_store %arg13[%c0_39, %c0_40], %77 {strides = array<i32>} : memref<8x128xf32, #tpu.memory_space<vmem>>, vector<8x128xf32>,
    %81 = arith.truncf %79 : vector<8x128xf32> to vector<8x128xbf16>
    %c0_41 = arith.constant 0 : index
    %c0_42 = arith.constant 0 : index
    %82 = vector.load %arg12[%c0_41, %c0_42] : memref<8x128xbf16, #tpu.memory_space<vmem>>, vector<8x128xbf16>
    tpu.vector_store %arg12[%c0_41, %c0_42], %81 {strides = array<i32>} : memref<8x128xbf16, #tpu.memory_space<vmem>>, vector<8x128xbf16>,
    %83 = arith.truncf %79 : vector<8x128xf32> to vector<8x128xbf16>
    %c1 = arith.constant 1 : index
    %c0_43 = arith.constant 0 : index
    %c0_44 = arith.constant 0 : index
    %84 = vector.load %arg8[%c1, %c0_43, %c0_44] : memref<8x8x128xbf16, #tpu.memory_space<vmem>>, vector<1x8x128xbf16>
    %85 = vector.shape_cast %84 : vector<1x8x128xbf16> to vector<8x128xbf16>
    %86 = vector.shape_cast %83 : vector<8x128xbf16> to vector<1x8x128xbf16>
    tpu.vector_store %arg8[%c1, %c0_43, %c0_44], %86 {strides = array<i32>} : memref<8x8x128xbf16, #tpu.memory_space<vmem>>, vector<1x8x128xbf16>,
    %c16 = arith.constant 16 : index
    %c0_45 = arith.constant 0 : index
    %87 = vector.load %arg11[%c16, %c0_45] : memref<64x512xf32, #tpu.memory_space<vmem>>, vector<8x512xf32>
    %c0_46 = arith.constant 0 : index
    %c0_47 = arith.constant 0 : index
    %88 = vector.load %arg12[%c0_46, %c0_47] : memref<8x128xbf16, #tpu.memory_space<vmem>>, vector<8x128xbf16>
    %c0_48 = arith.constant 0 : index
    %c0_49 = arith.constant 0 : index
    %89 = vector.load %arg4[%c0_48, %c0_49] : memref<128x512xbf16, #tpu.memory_space<vmem>>, vector<128x512xbf16>
    %cst_50 = arith.constant dense<0.000000e+00> : vector<8x512xf32>
    %90 = tpu.matmul %88, %89, %cst_50 {dimension_numbers = #tpu.dot_dimension_numbers<[1], [0], [0], [1], [0, 0, 1, 1], [], []>} : vector<8x128xbf16>, vector<128x512xbf16>, vector<8x512xf32> -> vector<8x512xf32>
    %91 = arith.addf %87, %90 : vector<8x512xf32>
    %92 = vector.extract_strided_slice %91 {offsets = [0, 0], sizes = [8, 128], strides = [1, 1]} : vector<8x512xf32> to vector<8x128xf32>
    %93 = arith.negf %92 : vector<8x128xf32>
    %94 = math.exp %93 : vector<8x128xf32>
    %cst_51 = arith.constant 1.000000e+00 : f32
    %95 = vector.broadcast %cst_51 : f32 to vector<8x128xf32>
    %96 = arith.addf %95, %94 : vector<8x128xf32>
    %97 = arith.divf %95, %96 : vector<8x128xf32>
    %98 = vector.extract_strided_slice %91 {offsets = [0, 128], sizes = [8, 128], strides = [1, 1]} : vector<8x512xf32> to vector<8x128xf32>
    %99 = arith.negf %98 : vector<8x128xf32>
    %100 = math.exp %99 : vector<8x128xf32>
    %cst_52 = arith.constant 1.000000e+00 : f32
    %101 = vector.broadcast %cst_52 : f32 to vector<8x128xf32>
    %102 = arith.addf %101, %100 : vector<8x128xf32>
    %103 = arith.divf %101, %102 : vector<8x128xf32>
    %104 = vector.extract_strided_slice %91 {offsets = [0, 256], sizes = [8, 128], strides = [1, 1]} : vector<8x512xf32> to vector<8x128xf32>
    %105 = math.tanh %104 : vector<8x128xf32>
    %106 = vector.extract_strided_slice %91 {offsets = [0, 384], sizes = [8, 128], strides = [1, 1]} : vector<8x512xf32> to vector<8x128xf32>
    %107 = arith.negf %106 : vector<8x128xf32>
    %108 = math.exp %107 : vector<8x128xf32>
    %cst_53 = arith.constant 1.000000e+00 : f32
    %109 = vector.broadcast %cst_53 : f32 to vector<8x128xf32>
    %110 = arith.addf %109, %108 : vector<8x128xf32>
    %111 = arith.divf %109, %110 : vector<8x128xf32>
    %c0_54 = arith.constant 0 : index
    %c0_55 = arith.constant 0 : index
    %112 = vector.load %arg13[%c0_54, %c0_55] : memref<8x128xf32, #tpu.memory_space<vmem>>, vector<8x128xf32>
    %113 = arith.mulf %103, %112 : vector<8x128xf32>
    %114 = arith.mulf %97, %105 : vector<8x128xf32>
    %115 = arith.addf %113, %114 : vector<8x128xf32>
    %116 = math.tanh %115 : vector<8x128xf32>
    %117 = arith.mulf %111, %116 : vector<8x128xf32>
    %c0_56 = arith.constant 0 : index
    %c0_57 = arith.constant 0 : index
    %118 = vector.load %arg13[%c0_56, %c0_57] : memref<8x128xf32, #tpu.memory_space<vmem>>, vector<8x128xf32>
    tpu.vector_store %arg13[%c0_56, %c0_57], %115 {strides = array<i32>} : memref<8x128xf32, #tpu.memory_space<vmem>>, vector<8x128xf32>,
    %119 = arith.truncf %117 : vector<8x128xf32> to vector<8x128xbf16>
    %c0_58 = arith.constant 0 : index
    %c0_59 = arith.constant 0 : index
    %120 = vector.load %arg12[%c0_58, %c0_59] : memref<8x128xbf16, #tpu.memory_space<vmem>>, vector<8x128xbf16>
    tpu.vector_store %arg12[%c0_58, %c0_59], %119 {strides = array<i32>} : memref<8x128xbf16, #tpu.memory_space<vmem>>, vector<8x128xbf16>,
    %121 = arith.truncf %117 : vector<8x128xf32> to vector<8x128xbf16>
    %c2 = arith.constant 2 : index
    %c0_60 = arith.constant 0 : index
    %c0_61 = arith.constant 0 : index
    %122 = vector.load %arg8[%c2, %c0_60, %c0_61] : memref<8x8x128xbf16, #tpu.memory_space<vmem>>, vector<1x8x128xbf16>
    %123 = vector.shape_cast %122 : vector<1x8x128xbf16> to vector<8x128xbf16>
    %124 = vector.shape_cast %121 : vector<8x128xbf16> to vector<1x8x128xbf16>
    tpu.vector_store %arg8[%c2, %c0_60, %c0_61], %124 {strides = array<i32>} : memref<8x8x128xbf16, #tpu.memory_space<vmem>>, vector<1x8x128xbf16>,
    %c24 = arith.constant 24 : index
    %c0_62 = arith.constant 0 : index
    %125 = vector.load %arg11[%c24, %c0_62] : memref<64x512xf32, #tpu.memory_space<vmem>>, vector<8x512xf32>
    %c0_63 = arith.constant 0 : index
    %c0_64 = arith.constant 0 : index
    %126 = vector.load %arg12[%c0_63, %c0_64] : memref<8x128xbf16, #tpu.memory_space<vmem>>, vector<8x128xbf16>
    %c0_65 = arith.constant 0 : index
    %c0_66 = arith.constant 0 : index
    %127 = vector.load %arg4[%c0_65, %c0_66] : memref<128x512xbf16, #tpu.memory_space<vmem>>, vector<128x512xbf16>
    %cst_67 = arith.constant dense<0.000000e+00> : vector<8x512xf32>
    %128 = tpu.matmul %126, %127, %cst_67 {dimension_numbers = #tpu.dot_dimension_numbers<[1], [0], [0], [1], [0, 0, 1, 1], [], []>} : vector<8x128xbf16>, vector<128x512xbf16>, vector<8x512xf32> -> vector<8x512xf32>
    %129 = arith.addf %125, %128 : vector<8x512xf32>
    %130 = vector.extract_strided_slice %129 {offsets = [0, 0], sizes = [8, 128], strides = [1, 1]} : vector<8x512xf32> to vector<8x128xf32>
    %131 = arith.negf %130 : vector<8x128xf32>
    %132 = math.exp %131 : vector<8x128xf32>
    %cst_68 = arith.constant 1.000000e+00 : f32
    %133 = vector.broadcast %cst_68 : f32 to vector<8x128xf32>
    %134 = arith.addf %133, %132 : vector<8x128xf32>
    %135 = arith.divf %133, %134 : vector<8x128xf32>
    %136 = vector.extract_strided_slice %129 {offsets = [0, 128], sizes = [8, 128], strides = [1, 1]} : vector<8x512xf32> to vector<8x128xf32>
    %137 = arith.negf %136 : vector<8x128xf32>
    %138 = math.exp %137 : vector<8x128xf32>
    %cst_69 = arith.constant 1.000000e+00 : f32
    %139 = vector.broadcast %cst_69 : f32 to vector<8x128xf32>
    %140 = arith.addf %139, %138 : vector<8x128xf32>
    %141 = arith.divf %139, %140 : vector<8x128xf32>
    %142 = vector.extract_strided_slice %129 {offsets = [0, 256], sizes = [8, 128], strides = [1, 1]} : vector<8x512xf32> to vector<8x128xf32>
    %143 = math.tanh %142 : vector<8x128xf32>
    %144 = vector.extract_strided_slice %129 {offsets = [0, 384], sizes = [8, 128], strides = [1, 1]} : vector<8x512xf32> to vector<8x128xf32>
    %145 = arith.negf %144 : vector<8x128xf32>
    %146 = math.exp %145 : vector<8x128xf32>
    %cst_70 = arith.constant 1.000000e+00 : f32
    %147 = vector.broadcast %cst_70 : f32 to vector<8x128xf32>
    %148 = arith.addf %147, %146 : vector<8x128xf32>
    %149 = arith.divf %147, %148 : vector<8x128xf32>
    %c0_71 = arith.constant 0 : index
    %c0_72 = arith.constant 0 : index
    %150 = vector.load %arg13[%c0_71, %c0_72] : memref<8x128xf32, #tpu.memory_space<vmem>>, vector<8x128xf32>
    %151 = arith.mulf %141, %150 : vector<8x128xf32>
    %152 = arith.mulf %135, %143 : vector<8x128xf32>
    %153 = arith.addf %151, %152 : vector<8x128xf32>
    %154 = math.tanh %153 : vector<8x128xf32>
    %155 = arith.mulf %149, %154 : vector<8x128xf32>
    %c0_73 = arith.constant 0 : index
    %c0_74 = arith.constant 0 : index
    %156 = vector.load %arg13[%c0_73, %c0_74] : memref<8x128xf32, #tpu.memory_space<vmem>>, vector<8x128xf32>
    tpu.vector_store %arg13[%c0_73, %c0_74], %153 {strides = array<i32>} : memref<8x128xf32, #tpu.memory_space<vmem>>, vector<8x128xf32>,
    %157 = arith.truncf %155 : vector<8x128xf32> to vector<8x128xbf16>
    %c0_75 = arith.constant 0 : index
    %c0_76 = arith.constant 0 : index
    %158 = vector.load %arg12[%c0_75, %c0_76] : memref<8x128xbf16, #tpu.memory_space<vmem>>, vector<8x128xbf16>
    tpu.vector_store %arg12[%c0_75, %c0_76], %157 {strides = array<i32>} : memref<8x128xbf16, #tpu.memory_space<vmem>>, vector<8x128xbf16>,
    %159 = arith.truncf %155 : vector<8x128xf32> to vector<8x128xbf16>
    %c3 = arith.constant 3 : index
    %c0_77 = arith.constant 0 : index
    %c0_78 = arith.constant 0 : index
    %160 = vector.load %arg8[%c3, %c0_77, %c0_78] : memref<8x8x128xbf16, #tpu.memory_space<vmem>>, vector<1x8x128xbf16>
    %161 = vector.shape_cast %160 : vector<1x8x128xbf16> to vector<8x128xbf16>
    %162 = vector.shape_cast %159 : vector<8x128xbf16> to vector<1x8x128xbf16>
    tpu.vector_store %arg8[%c3, %c0_77, %c0_78], %162 {strides = array<i32>} : memref<8x8x128xbf16, #tpu.memory_space<vmem>>, vector<1x8x128xbf16>,
    %c32 = arith.constant 32 : index
    %c0_79 = arith.constant 0 : index
    %163 = vector.load %arg11[%c32, %c0_79] : memref<64x512xf32, #tpu.memory_space<vmem>>, vector<8x512xf32>
    %c0_80 = arith.constant 0 : index
    %c0_81 = arith.constant 0 : index
    %164 = vector.load %arg12[%c0_80, %c0_81] : memref<8x128xbf16, #tpu.memory_space<vmem>>, vector<8x128xbf16>
    %c0_82 = arith.constant 0 : index
    %c0_83 = arith.constant 0 : index
    %165 = vector.load %arg4[%c0_82, %c0_83] : memref<128x512xbf16, #tpu.memory_space<vmem>>, vector<128x512xbf16>
    %cst_84 = arith.constant dense<0.000000e+00> : vector<8x512xf32>
    %166 = tpu.matmul %164, %165, %cst_84 {dimension_numbers = #tpu.dot_dimension_numbers<[1], [0], [0], [1], [0, 0, 1, 1], [], []>} : vector<8x128xbf16>, vector<128x512xbf16>, vector<8x512xf32> -> vector<8x512xf32>
    %167 = arith.addf %163, %166 : vector<8x512xf32>
    %168 = vector.extract_strided_slice %167 {offsets = [0, 0], sizes = [8, 128], strides = [1, 1]} : vector<8x512xf32> to vector<8x128xf32>
    %169 = arith.negf %168 : vector<8x128xf32>
    %170 = math.exp %169 : vector<8x128xf32>
    %cst_85 = arith.constant 1.000000e+00 : f32
    %171 = vector.broadcast %cst_85 : f32 to vector<8x128xf32>
    %172 = arith.addf %171, %170 : vector<8x128xf32>
    %173 = arith.divf %171, %172 : vector<8x128xf32>
    %174 = vector.extract_strided_slice %167 {offsets = [0, 128], sizes = [8, 128], strides = [1, 1]} : vector<8x512xf32> to vector<8x128xf32>
    %175 = arith.negf %174 : vector<8x128xf32>
    %176 = math.exp %175 : vector<8x128xf32>
    %cst_86 = arith.constant 1.000000e+00 : f32
    %177 = vector.broadcast %cst_86 : f32 to vector<8x128xf32>
    %178 = arith.addf %177, %176 : vector<8x128xf32>
    %179 = arith.divf %177, %178 : vector<8x128xf32>
    %180 = vector.extract_strided_slice %167 {offsets = [0, 256], sizes = [8, 128], strides = [1, 1]} : vector<8x512xf32> to vector<8x128xf32>
    %181 = math.tanh %180 : vector<8x128xf32>
    %182 = vector.extract_strided_slice %167 {offsets = [0, 384], sizes = [8, 128], strides = [1, 1]} : vector<8x512xf32> to vector<8x128xf32>
    %183 = arith.negf %182 : vector<8x128xf32>
    %184 = math.exp %183 : vector<8x128xf32>
    %cst_87 = arith.constant 1.000000e+00 : f32
    %185 = vector.broadcast %cst_87 : f32 to vector<8x128xf32>
    %186 = arith.addf %185, %184 : vector<8x128xf32>
    %187 = arith.divf %185, %186 : vector<8x128xf32>
    %c0_88 = arith.constant 0 : index
    %c0_89 = arith.constant 0 : index
    %188 = vector.load %arg13[%c0_88, %c0_89] : memref<8x128xf32, #tpu.memory_space<vmem>>, vector<8x128xf32>
    %189 = arith.mulf %179, %188 : vector<8x128xf32>
    %190 = arith.mulf %173, %181 : vector<8x128xf32>
    %191 = arith.addf %189, %190 : vector<8x128xf32>
    %192 = math.tanh %191 : vector<8x128xf32>
    %193 = arith.mulf %187, %192 : vector<8x128xf32>
    %c0_90 = arith.constant 0 : index
    %c0_91 = arith.constant 0 : index
    %194 = vector.load %arg13[%c0_90, %c0_91] : memref<8x128xf32, #tpu.memory_space<vmem>>, vector<8x128xf32>
    tpu.vector_store %arg13[%c0_90, %c0_91], %191 {strides = array<i32>} : memref<8x128xf32, #tpu.memory_space<vmem>>, vector<8x128xf32>,
    %195 = arith.truncf %193 : vector<8x128xf32> to vector<8x128xbf16>
    %c0_92 = arith.constant 0 : index
    %c0_93 = arith.constant 0 : index
    %196 = vector.load %arg12[%c0_92, %c0_93] : memref<8x128xbf16, #tpu.memory_space<vmem>>, vector<8x128xbf16>
    tpu.vector_store %arg12[%c0_92, %c0_93], %195 {strides = array<i32>} : memref<8x128xbf16, #tpu.memory_space<vmem>>, vector<8x128xbf16>,
    %197 = arith.truncf %193 : vector<8x128xf32> to vector<8x128xbf16>
    %c4 = arith.constant 4 : index
    %c0_94 = arith.constant 0 : index
    %c0_95 = arith.constant 0 : index
    %198 = vector.load %arg8[%c4, %c0_94, %c0_95] : memref<8x8x128xbf16, #tpu.memory_space<vmem>>, vector<1x8x128xbf16>
    %199 = vector.shape_cast %198 : vector<1x8x128xbf16> to vector<8x128xbf16>
    %200 = vector.shape_cast %197 : vector<8x128xbf16> to vector<1x8x128xbf16>
    tpu.vector_store %arg8[%c4, %c0_94, %c0_95], %200 {strides = array<i32>} : memref<8x8x128xbf16, #tpu.memory_space<vmem>>, vector<1x8x128xbf16>,
    %c40 = arith.constant 40 : index
    %c0_96 = arith.constant 0 : index
    %201 = vector.load %arg11[%c40, %c0_96] : memref<64x512xf32, #tpu.memory_space<vmem>>, vector<8x512xf32>
    %c0_97 = arith.constant 0 : index
    %c0_98 = arith.constant 0 : index
    %202 = vector.load %arg12[%c0_97, %c0_98] : memref<8x128xbf16, #tpu.memory_space<vmem>>, vector<8x128xbf16>
    %c0_99 = arith.constant 0 : index
    %c0_100 = arith.constant 0 : index
    %203 = vector.load %arg4[%c0_99, %c0_100] : memref<128x512xbf16, #tpu.memory_space<vmem>>, vector<128x512xbf16>
    %cst_101 = arith.constant dense<0.000000e+00> : vector<8x512xf32>
    %204 = tpu.matmul %202, %203, %cst_101 {dimension_numbers = #tpu.dot_dimension_numbers<[1], [0], [0], [1], [0, 0, 1, 1], [], []>} : vector<8x128xbf16>, vector<128x512xbf16>, vector<8x512xf32> -> vector<8x512xf32>
    %205 = arith.addf %201, %204 : vector<8x512xf32>
    %206 = vector.extract_strided_slice %205 {offsets = [0, 0], sizes = [8, 128], strides = [1, 1]} : vector<8x512xf32> to vector<8x128xf32>
    %207 = arith.negf %206 : vector<8x128xf32>
    %208 = math.exp %207 : vector<8x128xf32>
    %cst_102 = arith.constant 1.000000e+00 : f32
    %209 = vector.broadcast %cst_102 : f32 to vector<8x128xf32>
    %210 = arith.addf %209, %208 : vector<8x128xf32>
    %211 = arith.divf %209, %210 : vector<8x128xf32>
    %212 = vector.extract_strided_slice %205 {offsets = [0, 128], sizes = [8, 128], strides = [1, 1]} : vector<8x512xf32> to vector<8x128xf32>
    %213 = arith.negf %212 : vector<8x128xf32>
    %214 = math.exp %213 : vector<8x128xf32>
    %cst_103 = arith.constant 1.000000e+00 : f32
    %215 = vector.broadcast %cst_103 : f32 to vector<8x128xf32>
    %216 = arith.addf %215, %214 : vector<8x128xf32>
    %217 = arith.divf %215, %216 : vector<8x128xf32>
    %218 = vector.extract_strided_slice %205 {offsets = [0, 256], sizes = [8, 128], strides = [1, 1]} : vector<8x512xf32> to vector<8x128xf32>
    %219 = math.tanh %218 : vector<8x128xf32>
    %220 = vector.extract_strided_slice %205 {offsets = [0, 384], sizes = [8, 128], strides = [1, 1]} : vector<8x512xf32> to vector<8x128xf32>
    %221 = arith.negf %220 : vector<8x128xf32>
    %222 = math.exp %221 : vector<8x128xf32>
    %cst_104 = arith.constant 1.000000e+00 : f32
    %223 = vector.broadcast %cst_104 : f32 to vector<8x128xf32>
    %224 = arith.addf %223, %222 : vector<8x128xf32>
    %225 = arith.divf %223, %224 : vector<8x128xf32>
    %c0_105 = arith.constant 0 : index
    %c0_106 = arith.constant 0 : index
    %226 = vector.load %arg13[%c0_105, %c0_106] : memref<8x128xf32, #tpu.memory_space<vmem>>, vector<8x128xf32>
    %227 = arith.mulf %217, %226 : vector<8x128xf32>
    %228 = arith.mulf %211, %219 : vector<8x128xf32>
    %229 = arith.addf %227, %228 : vector<8x128xf32>
    %230 = math.tanh %229 : vector<8x128xf32>
    %231 = arith.mulf %225, %230 : vector<8x128xf32>
    %c0_107 = arith.constant 0 : index
    %c0_108 = arith.constant 0 : index
    %232 = vector.load %arg13[%c0_107, %c0_108] : memref<8x128xf32, #tpu.memory_space<vmem>>, vector<8x128xf32>
    tpu.vector_store %arg13[%c0_107, %c0_108], %229 {strides = array<i32>} : memref<8x128xf32, #tpu.memory_space<vmem>>, vector<8x128xf32>,
    %233 = arith.truncf %231 : vector<8x128xf32> to vector<8x128xbf16>
    %c0_109 = arith.constant 0 : index
    %c0_110 = arith.constant 0 : index
    %234 = vector.load %arg12[%c0_109, %c0_110] : memref<8x128xbf16, #tpu.memory_space<vmem>>, vector<8x128xbf16>
    tpu.vector_store %arg12[%c0_109, %c0_110], %233 {strides = array<i32>} : memref<8x128xbf16, #tpu.memory_space<vmem>>, vector<8x128xbf16>,
    %235 = arith.truncf %231 : vector<8x128xf32> to vector<8x128xbf16>
    %c5 = arith.constant 5 : index
    %c0_111 = arith.constant 0 : index
    %c0_112 = arith.constant 0 : index
    %236 = vector.load %arg8[%c5, %c0_111, %c0_112] : memref<8x8x128xbf16, #tpu.memory_space<vmem>>, vector<1x8x128xbf16>
    %237 = vector.shape_cast %236 : vector<1x8x128xbf16> to vector<8x128xbf16>
    %238 = vector.shape_cast %235 : vector<8x128xbf16> to vector<1x8x128xbf16>
    tpu.vector_store %arg8[%c5, %c0_111, %c0_112], %238 {strides = array<i32>} : memref<8x8x128xbf16, #tpu.memory_space<vmem>>, vector<1x8x128xbf16>,
    %c48 = arith.constant 48 : index
    %c0_113 = arith.constant 0 : index
    %239 = vector.load %arg11[%c48, %c0_113] : memref<64x512xf32, #tpu.memory_space<vmem>>, vector<8x512xf32>
    %c0_114 = arith.constant 0 : index
    %c0_115 = arith.constant 0 : index
    %240 = vector.load %arg12[%c0_114, %c0_115] : memref<8x128xbf16, #tpu.memory_space<vmem>>, vector<8x128xbf16>
    %c0_116 = arith.constant 0 : index
    %c0_117 = arith.constant 0 : index
    %241 = vector.load %arg4[%c0_116, %c0_117] : memref<128x512xbf16, #tpu.memory_space<vmem>>, vector<128x512xbf16>
    %cst_118 = arith.constant dense<0.000000e+00> : vector<8x512xf32>
    %242 = tpu.matmul %240, %241, %cst_118 {dimension_numbers = #tpu.dot_dimension_numbers<[1], [0], [0], [1], [0, 0, 1, 1], [], []>} : vector<8x128xbf16>, vector<128x512xbf16>, vector<8x512xf32> -> vector<8x512xf32>
    %243 = arith.addf %239, %242 : vector<8x512xf32>
    %244 = vector.extract_strided_slice %243 {offsets = [0, 0], sizes = [8, 128], strides = [1, 1]} : vector<8x512xf32> to vector<8x128xf32>
    %245 = arith.negf %244 : vector<8x128xf32>
    %246 = math.exp %245 : vector<8x128xf32>
    %cst_119 = arith.constant 1.000000e+00 : f32
    %247 = vector.broadcast %cst_119 : f32 to vector<8x128xf32>
    %248 = arith.addf %247, %246 : vector<8x128xf32>
    %249 = arith.divf %247, %248 : vector<8x128xf32>
    %250 = vector.extract_strided_slice %243 {offsets = [0, 128], sizes = [8, 128], strides = [1, 1]} : vector<8x512xf32> to vector<8x128xf32>
    %251 = arith.negf %250 : vector<8x128xf32>
    %252 = math.exp %251 : vector<8x128xf32>
    %cst_120 = arith.constant 1.000000e+00 : f32
    %253 = vector.broadcast %cst_120 : f32 to vector<8x128xf32>
    %254 = arith.addf %253, %252 : vector<8x128xf32>
    %255 = arith.divf %253, %254 : vector<8x128xf32>
    %256 = vector.extract_strided_slice %243 {offsets = [0, 256], sizes = [8, 128], strides = [1, 1]} : vector<8x512xf32> to vector<8x128xf32>
    %257 = math.tanh %256 : vector<8x128xf32>
    %258 = vector.extract_strided_slice %243 {offsets = [0, 384], sizes = [8, 128], strides = [1, 1]} : vector<8x512xf32> to vector<8x128xf32>
    %259 = arith.negf %258 : vector<8x128xf32>
    %260 = math.exp %259 : vector<8x128xf32>
    %cst_121 = arith.constant 1.000000e+00 : f32
    %261 = vector.broadcast %cst_121 : f32 to vector<8x128xf32>
    %262 = arith.addf %261, %260 : vector<8x128xf32>
    %263 = arith.divf %261, %262 : vector<8x128xf32>
    %c0_122 = arith.constant 0 : index
    %c0_123 = arith.constant 0 : index
    %264 = vector.load %arg13[%c0_122, %c0_123] : memref<8x128xf32, #tpu.memory_space<vmem>>, vector<8x128xf32>
    %265 = arith.mulf %255, %264 : vector<8x128xf32>
    %266 = arith.mulf %249, %257 : vector<8x128xf32>
    %267 = arith.addf %265, %266 : vector<8x128xf32>
    %268 = math.tanh %267 : vector<8x128xf32>
    %269 = arith.mulf %263, %268 : vector<8x128xf32>
    %c0_124 = arith.constant 0 : index
    %c0_125 = arith.constant 0 : index
    %270 = vector.load %arg13[%c0_124, %c0_125] : memref<8x128xf32, #tpu.memory_space<vmem>>, vector<8x128xf32>
    tpu.vector_store %arg13[%c0_124, %c0_125], %267 {strides = array<i32>} : memref<8x128xf32, #tpu.memory_space<vmem>>, vector<8x128xf32>,
    %271 = arith.truncf %269 : vector<8x128xf32> to vector<8x128xbf16>
    %c0_126 = arith.constant 0 : index
    %c0_127 = arith.constant 0 : index
    %272 = vector.load %arg12[%c0_126, %c0_127] : memref<8x128xbf16, #tpu.memory_space<vmem>>, vector<8x128xbf16>
    tpu.vector_store %arg12[%c0_126, %c0_127], %271 {strides = array<i32>} : memref<8x128xbf16, #tpu.memory_space<vmem>>, vector<8x128xbf16>,
    %273 = arith.truncf %269 : vector<8x128xf32> to vector<8x128xbf16>
    %c6 = arith.constant 6 : index
    %c0_128 = arith.constant 0 : index
    %c0_129 = arith.constant 0 : index
    %274 = vector.load %arg8[%c6, %c0_128, %c0_129] : memref<8x8x128xbf16, #tpu.memory_space<vmem>>, vector<1x8x128xbf16>
    %275 = vector.shape_cast %274 : vector<1x8x128xbf16> to vector<8x128xbf16>
    %276 = vector.shape_cast %273 : vector<8x128xbf16> to vector<1x8x128xbf16>
    tpu.vector_store %arg8[%c6, %c0_128, %c0_129], %276 {strides = array<i32>} : memref<8x8x128xbf16, #tpu.memory_space<vmem>>, vector<1x8x128xbf16>,
    %c56 = arith.constant 56 : index
    %c0_130 = arith.constant 0 : index
    %277 = vector.load %arg11[%c56, %c0_130] : memref<64x512xf32, #tpu.memory_space<vmem>>, vector<8x512xf32>
    %c0_131 = arith.constant 0 : index
    %c0_132 = arith.constant 0 : index
    %278 = vector.load %arg12[%c0_131, %c0_132] : memref<8x128xbf16, #tpu.memory_space<vmem>>, vector<8x128xbf16>
    %c0_133 = arith.constant 0 : index
    %c0_134 = arith.constant 0 : index
    %279 = vector.load %arg4[%c0_133, %c0_134] : memref<128x512xbf16, #tpu.memory_space<vmem>>, vector<128x512xbf16>
    %cst_135 = arith.constant dense<0.000000e+00> : vector<8x512xf32>
    %280 = tpu.matmul %278, %279, %cst_135 {dimension_numbers = #tpu.dot_dimension_numbers<[1], [0], [0], [1], [0, 0, 1, 1], [], []>} : vector<8x128xbf16>, vector<128x512xbf16>, vector<8x512xf32> -> vector<8x512xf32>
    %281 = arith.addf %277, %280 : vector<8x512xf32>
    %282 = vector.extract_strided_slice %281 {offsets = [0, 0], sizes = [8, 128], strides = [1, 1]} : vector<8x512xf32> to vector<8x128xf32>
    %283 = arith.negf %282 : vector<8x128xf32>
    %284 = math.exp %283 : vector<8x128xf32>
    %cst_136 = arith.constant 1.000000e+00 : f32
    %285 = vector.broadcast %cst_136 : f32 to vector<8x128xf32>
    %286 = arith.addf %285, %284 : vector<8x128xf32>
    %287 = arith.divf %285, %286 : vector<8x128xf32>
    %288 = vector.extract_strided_slice %281 {offsets = [0, 128], sizes = [8, 128], strides = [1, 1]} : vector<8x512xf32> to vector<8x128xf32>
    %289 = arith.negf %288 : vector<8x128xf32>
    %290 = math.exp %289 : vector<8x128xf32>
    %cst_137 = arith.constant 1.000000e+00 : f32
    %291 = vector.broadcast %cst_137 : f32 to vector<8x128xf32>
    %292 = arith.addf %291, %290 : vector<8x128xf32>
    %293 = arith.divf %291, %292 : vector<8x128xf32>
    %294 = vector.extract_strided_slice %281 {offsets = [0, 256], sizes = [8, 128], strides = [1, 1]} : vector<8x512xf32> to vector<8x128xf32>
    %295 = math.tanh %294 : vector<8x128xf32>
    %296 = vector.extract_strided_slice %281 {offsets = [0, 384], sizes = [8, 128], strides = [1, 1]} : vector<8x512xf32> to vector<8x128xf32>
    %297 = arith.negf %296 : vector<8x128xf32>
    %298 = math.exp %297 : vector<8x128xf32>
    %cst_138 = arith.constant 1.000000e+00 : f32
    %299 = vector.broadcast %cst_138 : f32 to vector<8x128xf32>
    %300 = arith.addf %299, %298 : vector<8x128xf32>
    %301 = arith.divf %299, %300 : vector<8x128xf32>
    %c0_139 = arith.constant 0 : index
    %c0_140 = arith.constant 0 : index
    %302 = vector.load %arg13[%c0_139, %c0_140] : memref<8x128xf32, #tpu.memory_space<vmem>>, vector<8x128xf32>
    %303 = arith.mulf %293, %302 : vector<8x128xf32>
    %304 = arith.mulf %287, %295 : vector<8x128xf32>
    %305 = arith.addf %303, %304 : vector<8x128xf32>
    %306 = math.tanh %305 : vector<8x128xf32>
    %307 = arith.mulf %301, %306 : vector<8x128xf32>
    %c0_141 = arith.constant 0 : index
    %c0_142 = arith.constant 0 : index
    %308 = vector.load %arg13[%c0_141, %c0_142] : memref<8x128xf32, #tpu.memory_space<vmem>>, vector<8x128xf32>
    tpu.vector_store %arg13[%c0_141, %c0_142], %305 {strides = array<i32>} : memref<8x128xf32, #tpu.memory_space<vmem>>, vector<8x128xf32>,
    %309 = arith.truncf %307 : vector<8x128xf32> to vector<8x128xbf16>
    %c0_143 = arith.constant 0 : index
    %c0_144 = arith.constant 0 : index
    %310 = vector.load %arg12[%c0_143, %c0_144] : memref<8x128xbf16, #tpu.memory_space<vmem>>, vector<8x128xbf16>
    tpu.vector_store %arg12[%c0_143, %c0_144], %309 {strides = array<i32>} : memref<8x128xbf16, #tpu.memory_space<vmem>>, vector<8x128xbf16>,
    %311 = arith.truncf %307 : vector<8x128xf32> to vector<8x128xbf16>
    %c7 = arith.constant 7 : index
    %c0_145 = arith.constant 0 : index
    %c0_146 = arith.constant 0 : index
    %312 = vector.load %arg8[%c7, %c0_145, %c0_146] : memref<8x8x128xbf16, #tpu.memory_space<vmem>>, vector<1x8x128xbf16>
    %313 = vector.shape_cast %312 : vector<1x8x128xbf16> to vector<8x128xbf16>
    %314 = vector.shape_cast %311 : vector<8x128xbf16> to vector<1x8x128xbf16>
    tpu.vector_store %arg8[%c7, %c0_145, %c0_146], %314 {strides = array<i32>} : memref<8x8x128xbf16, #tpu.memory_space<vmem>>, vector<1x8x128xbf16>,
    %c0_i32_147 = arith.constant 0 : i32
    %315 = arith.cmpi eq, %arg1, %c0_i32_147 : i32
    %316 = arith.extui %315 : i1 to i32
    %c0_i32_148 = arith.constant 0 : i32
    %317 = arith.cmpi ne, %316, %c0_i32_148 : i32
    scf.if %317 {
      %c0_149 = arith.constant 0 : index
      %c0_150 = arith.constant 0 : index
      %318 = vector.load %arg12[%c0_149, %c0_150] : memref<8x128xbf16, #tpu.memory_space<vmem>>, vector<8x128xbf16>
      %319 = arith.extf %318 : vector<8x128xbf16> to vector<8x128xf32>
      %c0_151 = arith.constant 0 : index
      %c0_152 = arith.constant 0 : index
      %320 = vector.load %arg9[%c0_151, %c0_152] : memref<8x128xf32, #tpu.memory_space<vmem>>, vector<8x128xf32>
      tpu.vector_store %arg9[%c0_151, %c0_152], %319 {strides = array<i32>} : memref<8x128xf32, #tpu.memory_space<vmem>>, vector<8x128xf32>,
      %c0_153 = arith.constant 0 : index
      %c0_154 = arith.constant 0 : index
      %321 = vector.load %arg13[%c0_153, %c0_154] : memref<8x128xf32, #tpu.memory_space<vmem>>, vector<8x128xf32>
      %c0_155 = arith.constant 0 : index
      %c0_156 = arith.constant 0 : index
      %322 = vector.load %arg10[%c0_155, %c0_156] : memref<8x128xf32, #tpu.memory_space<vmem>>, vector<8x128xf32>
      tpu.vector_store %arg10[%c0_155, %c0_156], %321 {strides = array<i32>} : memref<8x128xf32, #tpu.memory_space<vmem>>, vector<8x128xf32>,
    } else {
    }
    return
  }
  func.func @transform_0(%arg0: i32, %arg1: i32) -> (i32, i32, i32) {
    %c0_i32 = arith.constant 0 : i32
    %c0_i32_0 = arith.constant 0 : i32
    return %arg1, %arg0, %c0_i32 : i32, i32, i32
  }
  func.func @transform_1(%arg0: i32, %arg1: i32) -> (i32, i32) {
    %c0_i32 = arith.constant 0 : i32
    %c0_i32_0 = arith.constant 0 : i32
    %c0_i32_1 = arith.constant 0 : i32
    return %c0_i32, %c0_i32_0 : i32, i32
  }
  func.func @transform_2(%arg0: i32, %arg1: i32) -> (i32, i32) {
    %c0_i32 = arith.constant 0 : i32
    %c0_i32_0 = arith.constant 0 : i32
    %c0_i32_1 = arith.constant 0 : i32
    return %c0_i32, %c0_i32_0 : i32, i32
  }
  func.func @transform_3(%arg0: i32, %arg1: i32) -> (i32, i32) {
    %c0_i32 = arith.constant 0 : i32
    %c0_i32_0 = arith.constant 0 : i32
    %c0_i32_1 = arith.constant 0 : i32
    return %c0_i32, %c0_i32_0 : i32, i32
  }
  func.func @transform_4(%arg0: i32, %arg1: i32) -> (i32, i32) {
    %c0_i32 = arith.constant 0 : i32
    %c0_i32_0 = arith.constant 0 : i32
    return %arg0, %c0_i32 : i32, i32
  }
  func.func @transform_5(%arg0: i32, %arg1: i32) -> (i32, i32) {
    %c0_i32 = arith.constant 0 : i32
    %c0_i32_0 = arith.constant 0 : i32
    return %arg0, %c0_i32 : i32, i32
  }
  func.func @transform_6(%arg0: i32, %arg1: i32) -> (i32, i32, i32) {
    %c0_i32 = arith.constant 0 : i32
    %c0_i32_0 = arith.constant 0 : i32
    return %arg1, %arg0, %c0_i32 : i32, i32, i32
  }
  func.func @transform_7(%arg0: i32, %arg1: i32) -> (i32, i32) {
    %c0_i32 = arith.constant 0 : i32
    %c0_i32_0 = arith.constant 0 : i32
    return %arg0, %c0_i32 : i32, i32
  }
  func.func @transform_8(%arg0: i32, %arg1: i32) -> (i32, i32) {
    %c0_i32 = arith.constant 0 : i32
    %c0_i32_0 = arith.constant 0 : i32
    return %arg0, %c0_i32 : i32, i32
  }
}

</mosaic_0001>

<llo_original>
// kernel: tpu_custom_call.1
$region0: #{tpu_custom_call.1}
  #allocation0 [shape = 'u32[]', space=smem, size = 0x4, offset = 0x4, fixed_abs, tag = 'smem constant byte address 0x4 - core index']
  #allocation1 [shape = 'u32[144,128]{1,0:T(1,128)}', space=vmem, size = 0x12000, scoped, tag = 'internal scratch']
  #allocation2 [shape = 'f32[64,512]{1,0:T(8,128)}', space=vmem, size = 0x20000, scoped, tag = 'scratch operand']
  #allocation3 [shape = 'bf16[8,128]{1,0:T(8,128)(2,1)}', space=vmem, size = 0x800, scoped, tag = 'scratch operand']
  #allocation4 [shape = 'f32[8,128]{1,0:T(8,128)}', space=vmem, size = 0x1000, scoped, tag = 'scratch operand']
  %s0 = inlined_call_operand.hbm [shape: bf16[8,8,256], index: 0, kind: input, shape index: {}]
  %s1 = inlined_call_operand.hbm [shape: bf16[256,512], index: 1, kind: input, shape index: {}]
  %s2 = inlined_call_operand.hbm [shape: bf16[128,512], index: 2, kind: input, shape index: {}]
  %s3 = inlined_call_operand.hbm [shape: f32[1,512], index: 3, kind: input, shape index: {}]
  %s4 = inlined_call_operand.vmem [shape: f32[8,128], index: 4, kind: input, shape index: {}]
  %s5 = inlined_call_operand.vmem [shape: f32[8,128], index: 5, kind: input, shape index: {}]
  %s6 = inlined_call_operand.hbm [shape: bf16[8,8,128], index: 6, kind: output, shape index: {0}]
  %s7 = inlined_call_operand.hbm [shape: f32[8,128], index: 7, kind: output, shape index: {1}]
  %s8 = inlined_call_operand.hbm [shape: f32[8,128], index: 8, kind: output, shape index: {2}]
  %9 = xla_tuple %s6, %s7, %s8
  %s10 = sld [smem:[#allocation0]]
  $region74: #{tpu_custom_call.1} parent=0
    _
  %s12 = ssub.s32 1, %s10
  %s13 = scalar_select 0, %s12, %s10
  $region1: #{tpu_custom_call.1} parent=0
    #allocation5 [shape = 'u8[32768]{0}', space=vmem, size = 0x8000, scoped, tag = 'input window, operand 0, single buffered']
    #allocation6 [shape = 's32[1]{0}', space=sflag, size = 0x4, scoped, tag = 'scoped memory for tpu_custom_call.1']
    #allocation7 [shape = 's32[1]{0}', space=sflag, size = 0x4, scoped, tag = 'scoped memory for tpu_custom_call.1']
    #allocation8 [shape = 'u8[262144]{0}', space=vmem, size = 0x40000, scoped, tag = 'input window, operand 1, single buffered']
    #allocation9 [shape = 's32[1]{0}', space=sflag, size = 0x4, scoped, tag = 'scoped memory for tpu_custom_call.1']
    #allocation10 [shape = 'u8[131072]{0}', space=vmem, size = 0x20000, scoped, tag = 'input window, operand 2, single buffered']
    #allocation11 [shape = 'u8[2048]{0}', space=vmem, size = 0x800, scoped, tag = 'input window, operand 3, single buffered']
    #allocation12 [shape = 's32[1]{0}', space=sflag, size = 0x4, scoped, tag = 'scoped memory for tpu_custom_call.1']
    #allocation13 [shape = 'u8[16384]{0}', space=vmem, size = 0x4000, scoped, tag = 'output window, operand 0, single buffered']
    #allocation14 [shape = 'u8[4096]{0}', space=vmem, size = 0x1000, scoped, tag = 'output window, operand 1, single buffered']
    #allocation15 [shape = 's32[1]{0}', space=sflag, size = 0x4, scoped, tag = 'scoped memory for tpu_custom_call.1']
    #allocation16 [shape = 'u8[4096]{0}', space=vmem, size = 0x1000, scoped, tag = 'output window, operand 2, single buffered']
    %14 = vsyncpa [#allocation6], 0
    %15 = vsyncpa [#allocation9], 0
    %16 = vsyncpa [#allocation12], 0
    %17 = vsyncpa [#allocation7], 0
    %18 = vsyncpa [#allocation15], 0
    // Predicated region
    $region2: #{tpu_custom_call.1} parent=1 // pred_check
      _
    $region3: #{tpu_custom_call.1} parent=1 // pred_check_branch
      %20 = sbr.rel (0) target = $region5
    $region4: #{tpu_custom_call.1} parent=1 // pred_region
      %s22 = ssub.s32 1024, 1024
      %23 = vsyncadd [#allocation6], %s22
      %s24 = sshll.u32 [#allocation5], 4
      %s25 = int_to_ptr.vmem [resolvable:$true] %s24
      %30 = dma.hbm_to_vmem [thread:$0]  %s0, 1024, %s25, [#allocation6], 128, 128, 8
    $region5: #{tpu_custom_call.1} parent=1 // pred_fallthru
      _
    // Predicated region
    $region6: #{tpu_custom_call.1} parent=1 // pred_check
      _
    $region7: #{tpu_custom_call.1} parent=1 // pred_check_branch
      %32 = sbr.rel (0) target = $region9
    $region8: #{tpu_custom_call.1} parent=1 // pred_region
      %s34 = ssub.s32 8192, 8192
      %35 = vsyncadd [#allocation9], %s34
      %s36 = sshll.u32 [#allocation8], 4
      %s37 = int_to_ptr.vmem [resolvable:$true] %s36
      %42 = dma.hbm_to_vmem [thread:$0]  %s1, 8192, %s37, [#allocation9], 256, 256, 16
    $region9: #{tpu_custom_call.1} parent=1 // pred_fallthru
      _
    // Predicated region
    $region10: #{tpu_custom_call.1} parent=1 // pred_check
      _
    $region11: #{tpu_custom_call.1} parent=1 // pred_check_branch
      %44 = sbr.rel (0) target = $region13
    $region12: #{tpu_custom_call.1} parent=1 // pred_region
      %s46 = ssub.s32 4096, 4096
      %47 = vsyncadd [#allocation9], %s46
      %s48 = sshll.u32 [#allocation10], 4
      %s49 = int_to_ptr.vmem [resolvable:$true] %s48
      %54 = dma.hbm_to_vmem [thread:$0]  %s2, 4096, %s49, [#allocation9], 256, 256, 16
    $region13: #{tpu_custom_call.1} parent=1 // pred_fallthru
      _
    // Predicated region
    $region14: #{tpu_custom_call.1} parent=1 // pred_check
      _
    $region15: #{tpu_custom_call.1} parent=1 // pred_check_branch
      %56 = sbr.rel (0) target = $region17
    $region16: #{tpu_custom_call.1} parent=1 // pred_region
      %s58 = ssub.s32 64, 64
      %59 = vsyncadd [#allocation12], %s58
      %s61 = sshll.u32 [#allocation11], 4
      %s62 = int_to_ptr.vmem [resolvable:$true] %s61
      %64 = dma.hbm_to_vmem [thread:$0]  %s3, 64, %s62, [#allocation12]
    $region17: #{tpu_custom_call.1} parent=1 // pred_fallthru
      _
    // Predicated region
    $region18: #{tpu_custom_call.1} parent=1 // pred_check
      _
    $region19: #{tpu_custom_call.1} parent=1 // pred_check_branch
      %66 = sbr.rel (0) target = $region21
    $region20: #{tpu_custom_call.1} parent=1 // pred_region
      _
    $region21: #{tpu_custom_call.1} parent=1 // pred_fallthru
      _
    // Predicated region
    $region22: #{tpu_custom_call.1} parent=1 // pred_check
      _
    $region23: #{tpu_custom_call.1} parent=1 // pred_check_branch
      %68 = sbr.rel (0) target = $region25
    $region24: #{tpu_custom_call.1} parent=1 // pred_region
      _
    $region25: #{tpu_custom_call.1} parent=1 // pred_fallthru
      _
    // Predicated region
    $region26: #{tpu_custom_call.1} parent=1 // pred_check
      _
    $region27: #{tpu_custom_call.1} parent=1 // pred_check_branch
      %70 = sbr.rel (0) target = $region29
    $region28: #{tpu_custom_call.1} parent=1 // pred_region
      %71 = dma.done [#allocation6], 1024
    $region29: #{tpu_custom_call.1} parent=1 // pred_fallthru
      _
    // Predicated region
    $region30: #{tpu_custom_call.1} parent=1 // pred_check
      _
    $region31: #{tpu_custom_call.1} parent=1 // pred_check_branch
      %73 = sbr.rel (0) target = $region33
    $region32: #{tpu_custom_call.1} parent=1 // pred_region
      %74 = dma.done [#allocation9], 8192
    $region33: #{tpu_custom_call.1} parent=1 // pred_fallthru
      _
    // Predicated region
    $region34: #{tpu_custom_call.1} parent=1 // pred_check
      _
    $region35: #{tpu_custom_call.1} parent=1 // pred_check_branch
      %76 = sbr.rel (0) target = $region37
    $region36: #{tpu_custom_call.1} parent=1 // pred_region
      %77 = dma.done [#allocation9], 4096
    $region37: #{tpu_custom_call.1} parent=1 // pred_fallthru
      _
    // Predicated region
    $region38: #{tpu_custom_call.1} parent=1 // pred_check
      _
    $region39: #{tpu_custom_call.1} parent=1 // pred_check_branch
      %79 = sbr.rel (0) target = $region41
    $region40: #{tpu_custom_call.1} parent=1 // pred_region
      %80 = dma.done [#allocation12], 64
    $region41: #{tpu_custom_call.1} parent=1 // pred_fallthru
      _
    %p82 = scmp.eq.s32.totalorder 0, 0
    // Predicated region
    $region42: #{tpu_custom_call.1} parent=1 // pred_check
      %p83 = pneg %p82
    $region43: #{tpu_custom_call.1} parent=1 // pred_check_branch
      %85 = sbr.rel (%p83) target = $region45
    $region44: #{tpu_custom_call.1} parent=1 // pred_region
      %v86 = vld [vmem:[%s4] sm:$0xff]
      %v87 = vpack.c.bf16 %v86, %v86
      %88 = vst [vmem:[#allocation3] sm:$0xf] %v87
      %v89 = vld [vmem:[%s5] sm:$0xff]
      %90 = vst [vmem:[#allocation4] sm:$0xff] %v89
    $region45: #{tpu_custom_call.1} parent=1 // pred_fallthru
      _
    %v91 = vld [vmem:[#allocation5] sm:$0xff]
    %v92 = vld [vmem:[#allocation5 + $0x8] sm:$0xff]
    %v93 = vld [vmem:[#allocation5 + $0x10] sm:$0xff]
    %v94 = vld [vmem:[#allocation5 + $0x18] sm:$0xff]
    %v95 = vld [vmem:[#allocation5 + $0x20] sm:$0xff]
    %v96 = vld [vmem:[#allocation5 + $0x28] sm:$0xff]
    %v97 = vld [vmem:[#allocation5 + $0x30] sm:$0xff]
    %v98 = vld [vmem:[#allocation5 + $0x38] sm:$0xff]
    %v99 = vld [vmem:[#allocation8] sm:$0xff]
    %v100 = vld [vmem:[#allocation8 + $0x8] sm:$0xff]
    %v101 = vld [vmem:[#allocation8 + $0x10] sm:$0xff]
    %v102 = vld [vmem:[#allocation8 + $0x18] sm:$0xff]
    %v103 = vld [vmem:[#allocation8 + $0x20] sm:$0xff]
    %v104 = vld [vmem:[#allocation8 + $0x28] sm:$0xff]
    %v105 = vld [vmem:[#allocation8 + $0x30] sm:$0xff]
    %v106 = vld [vmem:[#allocation8 + $0x38] sm:$0xff]
    %v107 = vld [vmem:[#allocation8 + $0x40] sm:$0xff]
    %v108 = vld [vmem:[#allocation8 + $0x48] sm:$0xff]
    %v109 = vld [vmem:[#allocation8 + $0x50] sm:$0xff]
    %v110 = vld [vmem:[#allocation8 + $0x58] sm:$0xff]
    %v111 = vld [vmem:[#allocation8 + $0x60] sm:$0xff]
    %v112 = vld [vmem:[#allocation8 + $0x68] sm:$0xff]
    %v113 = vld [vmem:[#allocation8 + $0x70] sm:$0xff]
    %v114 = vld [vmem:[#allocation8 + $0x78] sm:$0xff]
    %v115 = vld [vmem:[#allocation8 + $0x80] sm:$0xff]
    %v116 = vld [vmem:[#allocation8 + $0x88] sm:$0xff]
    %v117 = vld [vmem:[#allocation8 + $0x90] sm:$0xff]
    %v118 = vld [vmem:[#allocation8 + $0x98] sm:$0xff]
    %v119 = vld [vmem:[#allocation8 + $0xa0] sm:$0xff]
    %v120 = vld [vmem:[#allocation8 + $0xa8] sm:$0xff]
    %v121 = vld [vmem:[#allocation8 + $0xb0] sm:$0xff]
    %v122 = vld [vmem:[#allocation8 + $0xb8] sm:$0xff]
    %v123 = vld [vmem:[#allocation8 + $0xc0] sm:$0xff]
    %v124 = vld [vmem:[#allocation8 + $0xc8] sm:$0xff]
    %v125 = vld [vmem:[#allocation8 + $0xd0] sm:$0xff]
    %v126 = vld [vmem:[#allocation8 + $0xd8] sm:$0xff]
    %v127 = vld [vmem:[#allocation8 + $0xe0] sm:$0xff]
    %v128 = vld [vmem:[#allocation8 + $0xe8] sm:$0xff]
    %v129 = vld [vmem:[#allocation8 + $0xf0] sm:$0xff]
    %v130 = vld [vmem:[#allocation8 + $0xf8] sm:$0xff]
    %v131 = vld [vmem:[#allocation8 + $0x100] sm:$0xff]
    %v132 = vld [vmem:[#allocation8 + $0x108] sm:$0xff]
    %v133 = vld [vmem:[#allocation8 + $0x110] sm:$0xff]
    %v134 = vld [vmem:[#allocation8 + $0x118] sm:$0xff]
    %v135 = vld [vmem:[#allocation8 + $0x120] sm:$0xff]
    %v136 = vld [vmem:[#allocation8 + $0x128] sm:$0xff]
    %v137 = vld [vmem:[#allocation8 + $0x130] sm:$0xff]
    %v138 = vld [vmem:[#allocation8 + $0x138] sm:$0xff]
    %v139 = vld [vmem:[#allocation8 + $0x140] sm:$0xff]
    %v140 = vld [vmem:[#allocation8 + $0x148] sm:$0xff]
    %v141 = vld [vmem:[#allocation8 + $0x150] sm:$0xff]
    %v142 = vld [vmem:[#allocation8 + $0x158] sm:$0xff]
    %v143 = vld [vmem:[#allocation8 + $0x160] sm:$0xff]
    %v144 = vld [vmem:[#allocation8 + $0x168] sm:$0xff]
    %v145 = vld [vmem:[#allocation8 + $0x170] sm:$0xff]
    %v146 = vld [vmem:[#allocation8 + $0x178] sm:$0xff]
    %v147 = vld [vmem:[#allocation8 + $0x180] sm:$0xff]
    %v148 = vld [vmem:[#allocation8 + $0x188] sm:$0xff]
    %v149 = vld [vmem:[#allocation8 + $0x190] sm:$0xff]
    %v150 = vld [vmem:[#allocation8 + $0x198] sm:$0xff]
    %v151 = vld [vmem:[#allocation8 + $0x1a0] sm:$0xff]
    %v152 = vld [vmem:[#allocation8 + $0x1a8] sm:$0xff]
    %v153 = vld [vmem:[#allocation8 + $0x1b0] sm:$0xff]
    %v154 = vld [vmem:[#allocation8 + $0x1b8] sm:$0xff]
    %v155 = vld [vmem:[#allocation8 + $0x1c0] sm:$0xff]
    %v156 = vld [vmem:[#allocation8 + $0x1c8] sm:$0xff]
    %v157 = vld [vmem:[#allocation8 + $0x1d0] sm:$0xff]
    %v158 = vld [vmem:[#allocation8 + $0x1d8] sm:$0xff]
    %v159 = vld [vmem:[#allocation8 + $0x1e0] sm:$0xff]
    %v160 = vld [vmem:[#allocation8 + $0x1e8] sm:$0xff]
    %v161 = vld [vmem:[#allocation8 + $0x1f0] sm:$0xff]
    %v162 = vld [vmem:[#allocation8 + $0x1f8] sm:$0xff]
    %v163 = vld [vmem:[#allocation11] sm:$0xf]
    %v165 = vlaneseq
    %v166 = vshrl.u32 %v165, 7
    %v167 = vsub.s32 0, %v166
    %v168 = vrot.slane %v163, %v167
    %v169 = vlaneseq
    %v170 = vshrl.u32 %v169, 7
    %v171 = vsub.s32 1, %v170
    %v172 = vrot.slane %v163, %v171
    %v173 = vlaneseq
    %v174 = vshrl.u32 %v173, 7
    %v175 = vsub.s32 2, %v174
    %v176 = vrot.slane %v163, %v175
    %v177 = vlaneseq
    %v178 = vshrl.u32 %v177, 7
    %v179 = vsub.s32 3, %v178
    %v180 = vrot.slane %v163, %v179
    %v193 = vunpack.c.l.b16 %v91
    %v194 = vunpack.c.h.b16 %v91
    %v195 = vunpack.c.l.b16 %v92
    %v196 = vunpack.c.h.b16 %v92
    %v197 = vunpack.c.l.b16 %v93
    %v198 = vunpack.c.h.b16 %v93
    %v199 = vunpack.c.l.b16 %v94
    %v200 = vunpack.c.h.b16 %v94
    %v201 = vunpack.c.l.b16 %v95
    %v202 = vunpack.c.h.b16 %v95
    %v203 = vunpack.c.l.b16 %v96
    %v204 = vunpack.c.h.b16 %v96
    %v205 = vunpack.c.l.b16 %v97
    %v206 = vunpack.c.h.b16 %v97
    %v207 = vunpack.c.l.b16 %v98
    %v208 = vunpack.c.h.b16 %v98
    %v209 = vpack.c.b16 %v195, %v193
    %v210 = vpack.c.b16 %v196, %v194
    %v211 = vpack.c.b16 %v199, %v197
    %v212 = vpack.c.b16 %v200, %v198
    %v213 = vpack.c.b16 %v203, %v201
    %v214 = vpack.c.b16 %v204, %v202
    %v215 = vpack.c.b16 %v207, %v205
    %v216 = vpack.c.b16 %v208, %v206
    %v289 = vunpack.c.l.b16 %v99
    %v290 = vunpack.c.h.b16 %v99
    %v291 = vunpack.c.l.b16 %v100
    %v292 = vunpack.c.h.b16 %v100
    %v293 = vunpack.c.l.b16 %v101
    %v294 = vunpack.c.h.b16 %v101
    %v295 = vunpack.c.l.b16 %v102
    %v296 = vunpack.c.h.b16 %v102
    %v297 = vunpack.c.l.b16 %v103
    %v298 = vunpack.c.h.b16 %v103
    %v299 = vunpack.c.l.b16 %v104
    %v300 = vunpack.c.h.b16 %v104
    %v301 = vunpack.c.l.b16 %v105
    %v302 = vunpack.c.h.b16 %v105
    %v303 = vunpack.c.l.b16 %v106
    %v304 = vunpack.c.h.b16 %v106
    %v305 = vunpack.c.l.b16 %v107
    %v306 = vunpack.c.h.b16 %v107
    %v307 = vunpack.c.l.b16 %v108
    %v308 = vunpack.c.h.b16 %v108
    %v309 = vunpack.c.l.b16 %v109
    %v310 = vunpack.c.h.b16 %v109
    %v311 = vunpack.c.l.b16 %v110
    %v312 = vunpack.c.h.b16 %v110
    %v313 = vunpack.c.l.b16 %v111
    %v314 = vunpack.c.h.b16 %v111
    %v315 = vunpack.c.l.b16 %v112
    %v316 = vunpack.c.h.b16 %v112
    %v317 = vunpack.c.l.b16 %v113
    %v318 = vunpack.c.h.b16 %v113
    %v319 = vunpack.c.l.b16 %v114
    %v320 = vunpack.c.h.b16 %v114
    %v321 = vunpack.c.l.b16 %v115
    %v322 = vunpack.c.h.b16 %v115
    %v323 = vunpack.c.l.b16 %v116
    %v324 = vunpack.c.h.b16 %v116
    %v325 = vunpack.c.l.b16 %v117
    %v326 = vunpack.c.h.b16 %v117
    %v327 = vunpack.c.l.b16 %v118
    %v328 = vunpack.c.h.b16 %v118
    %v329 = vunpack.c.l.b16 %v119
    %v330 = vunpack.c.h.b16 %v119
    %v331 = vunpack.c.l.b16 %v120
    %v332 = vunpack.c.h.b16 %v120
    %v333 = vunpack.c.l.b16 %v121
    %v334 = vunpack.c.h.b16 %v121
    %v335 = vunpack.c.l.b16 %v122
    %v336 = vunpack.c.h.b16 %v122
    %v337 = vunpack.c.l.b16 %v123
    %v338 = vunpack.c.h.b16 %v123
    %v339 = vunpack.c.l.b16 %v124
    %v340 = vunpack.c.h.b16 %v124
    %v341 = vunpack.c.l.b16 %v125
    %v342 = vunpack.c.h.b16 %v125
    %v343 = vunpack.c.l.b16 %v126
    %v344 = vunpack.c.h.b16 %v126
    %v345 = vunpack.c.l.b16 %v127
    %v346 = vunpack.c.h.b16 %v127
    %v347 = vunpack.c.l.b16 %v128
    %v348 = vunpack.c.h.b16 %v128
    %v349 = vunpack.c.l.b16 %v129
    %v350 = vunpack.c.h.b16 %v129
    %v351 = vunpack.c.l.b16 %v130
    %v352 = vunpack.c.h.b16 %v130
    %v353 = vunpack.c.l.b16 %v131
    %v354 = vunpack.c.h.b16 %v131
    %v355 = vunpack.c.l.b16 %v132
    %v356 = vunpack.c.h.b16 %v132
    %v357 = vunpack.c.l.b16 %v133
    %v358 = vunpack.c.h.b16 %v133
    %v359 = vunpack.c.l.b16 %v134
    %v360 = vunpack.c.h.b16 %v134
    %v361 = vunpack.c.l.b16 %v135
    %v362 = vunpack.c.h.b16 %v135
    %v363 = vunpack.c.l.b16 %v136
    %v364 = vunpack.c.h.b16 %v136
    %v365 = vunpack.c.l.b16 %v137
    %v366 = vunpack.c.h.b16 %v137
    %v367 = vunpack.c.l.b16 %v138
    %v368 = vunpack.c.h.b16 %v138
    %v369 = vunpack.c.l.b16 %v139
    %v370 = vunpack.c.h.b16 %v139
    %v371 = vunpack.c.l.b16 %v140
    %v372 = vunpack.c.h.b16 %v140
    %v373 = vunpack.c.l.b16 %v141
    %v374 = vunpack.c.h.b16 %v141
    %v375 = vunpack.c.l.b16 %v142
    %v376 = vunpack.c.h.b16 %v142
    %v377 = vunpack.c.l.b16 %v143
    %v378 = vunpack.c.h.b16 %v143
    %v379 = vunpack.c.l.b16 %v144
    %v380 = vunpack.c.h.b16 %v144
    %v381 = vunpack.c.l.b16 %v145
    %v382 = vunpack.c.h.b16 %v145
    %v383 = vunpack.c.l.b16 %v146
    %v384 = vunpack.c.h.b16 %v146
    %v385 = vunpack.c.l.b16 %v147
    %v386 = vunpack.c.h.b16 %v147
    %v387 = vunpack.c.l.b16 %v148
    %v388 = vunpack.c.h.b16 %v148
    %v389 = vunpack.c.l.b16 %v149
    %v390 = vunpack.c.h.b16 %v149
    %v391 = vunpack.c.l.b16 %v150
    %v392 = vunpack.c.h.b16 %v150
    %v393 = vunpack.c.l.b16 %v151
    %v394 = vunpack.c.h.b16 %v151
    %v395 = vunpack.c.l.b16 %v152
    %v396 = vunpack.c.h.b16 %v152
    %v397 = vunpack.c.l.b16 %v153
    %v398 = vunpack.c.h.b16 %v153
    %v399 = vunpack.c.l.b16 %v154
    %v400 = vunpack.c.h.b16 %v154
    %v401 = vunpack.c.l.b16 %v155
    %v402 = vunpack.c.h.b16 %v155
    %v403 = vunpack.c.l.b16 %v156
    %v404 = vunpack.c.h.b16 %v156
    %v405 = vunpack.c.l.b16 %v157
    %v406 = vunpack.c.h.b16 %v157
    %v407 = vunpack.c.l.b16 %v158
    %v408 = vunpack.c.h.b16 %v158
    %v409 = vunpack.c.l.b16 %v159
    %v410 = vunpack.c.h.b16 %v159
    %v411 = vunpack.c.l.b16 %v160
    %v412 = vunpack.c.h.b16 %v160
    %v413 = vunpack.c.l.b16 %v161
    %v414 = vunpack.c.h.b16 %v161
    %v415 = vunpack.c.l.b16 %v162
    %v416 = vunpack.c.h.b16 %v162
    %v417 = vpack.c.b16 %v293, %v289
    %v418 = vpack.c.b16 %v294, %v290
    %v419 = vpack.c.b16 %v295, %v291
    %v420 = vpack.c.b16 %v296, %v292
    %v421 = vpack.c.b16 %v301, %v297
    %v422 = vpack.c.b16 %v302, %v298
    %v423 = vpack.c.b16 %v303, %v299
    %v424 = vpack.c.b16 %v304, %v300
    %v425 = vpack.c.b16 %v309, %v305
    %v426 = vpack.c.b16 %v310, %v306
    %v427 = vpack.c.b16 %v311, %v307
    %v428 = vpack.c.b16 %v312, %v308
    %v429 = vpack.c.b16 %v317, %v313
    %v430 = vpack.c.b16 %v318, %v314
    %v431 = vpack.c.b16 %v319, %v315
    %v432 = vpack.c.b16 %v320, %v316
    %v433 = vpack.c.b16 %v325, %v321
    %v434 = vpack.c.b16 %v326, %v322
    %v435 = vpack.c.b16 %v327, %v323
    %v436 = vpack.c.b16 %v328, %v324
    %v437 = vpack.c.b16 %v333, %v329
    %v438 = vpack.c.b16 %v334, %v330
    %v439 = vpack.c.b16 %v335, %v331
    %v440 = vpack.c.b16 %v336, %v332
    %v441 = vpack.c.b16 %v341, %v337
    %v442 = vpack.c.b16 %v342, %v338
    %v443 = vpack.c.b16 %v343, %v339
    %v444 = vpack.c.b16 %v344, %v340
    %v445 = vpack.c.b16 %v349, %v345
    %v446 = vpack.c.b16 %v350, %v346
    %v447 = vpack.c.b16 %v351, %v347
    %v448 = vpack.c.b16 %v352, %v348
    %v449 = vpack.c.b16 %v357, %v353
    %v450 = vpack.c.b16 %v358, %v354
    %v451 = vpack.c.b16 %v359, %v355
    %v452 = vpack.c.b16 %v360, %v356
    %v453 = vpack.c.b16 %v365, %v361
    %v454 = vpack.c.b16 %v366, %v362
    %v455 = vpack.c.b16 %v367, %v363
    %v456 = vpack.c.b16 %v368, %v364
    %v457 = vpack.c.b16 %v373, %v369
    %v458 = vpack.c.b16 %v374, %v370
    %v459 = vpack.c.b16 %v375, %v371
    %v460 = vpack.c.b16 %v376, %v372
    %v461 = vpack.c.b16 %v381, %v377
    %v462 = vpack.c.b16 %v382, %v378
    %v463 = vpack.c.b16 %v383, %v379
    %v464 = vpack.c.b16 %v384, %v380
    %v465 = vpack.c.b16 %v389, %v385
    %v466 = vpack.c.b16 %v390, %v386
    %v467 = vpack.c.b16 %v391, %v387
    %v468 = vpack.c.b16 %v392, %v388
    %v469 = vpack.c.b16 %v397, %v393
    %v470 = vpack.c.b16 %v398, %v394
    %v471 = vpack.c.b16 %v399, %v395
    %v472 = vpack.c.b16 %v400, %v396
    %v473 = vpack.c.b16 %v405, %v401
    %v474 = vpack.c.b16 %v406, %v402
    %v475 = vpack.c.b16 %v407, %v403
    %v476 = vpack.c.b16 %v408, %v404
    %v477 = vpack.c.b16 %v413, %v409
    %v478 = vpack.c.b16 %v414, %v410
    %v479 = vpack.c.b16 %v415, %v411
    %v480 = vpack.c.b16 %v416, %v412
    %545 = vmatprep.subr.bf16.mxu0 %v418
    %546 = vmatpush1.bf16.msra.mxu0 %v417
    %547 = vmatprep.subr.bf16.mxu0 %v422
    %548 = vmatpush1.bf16.msra.mxu0 %v421
    %549 = vmatprep.subr.bf16.mxu0 %v426
    %550 = vmatpush1.bf16.msra.mxu0 %v425
    %551 = vmatprep.subr.bf16.mxu0 %v430
    %552 = vmatpush1.bf16.msra.mxu0 %v429
    %553 = vmatprep.subr.bf16.mxu0 %v434
    %554 = vmatpush1.bf16.msra.mxu0 %v433
    %555 = vmatprep.subr.bf16.mxu0 %v438
    %556 = vmatpush1.bf16.msra.mxu0 %v437
    %557 = vmatprep.subr.bf16.mxu0 %v442
    %558 = vmatpush1.bf16.msra.mxu0 %v441
    %559 = vmatprep.subr.bf16.mxu0 %v446
    %560 = vmatpush1.bf16.msra.mxu0 %v445
    %561 = vmatprep.subr.bf16.mxu0 %v450
    %562 = vmatpush1.bf16.msra.mxu0 %v449
    %563 = vmatprep.subr.bf16.mxu0 %v454
    %564 = vmatpush1.bf16.msra.mxu0 %v453
    %565 = vmatprep.subr.bf16.mxu0 %v458
    %566 = vmatpush1.bf16.msra.mxu0 %v457
    %567 = vmatprep.subr.bf16.mxu0 %v462
    %568 = vmatpush1.bf16.msra.mxu0 %v461
    %569 = vmatprep.subr.bf16.mxu0 %v466
    %570 = vmatpush1.bf16.msra.mxu0 %v465
    %571 = vmatprep.subr.bf16.mxu0 %v470
    %572 = vmatpush1.bf16.msra.mxu0 %v469
    %573 = vmatprep.subr.bf16.mxu0 %v474
    %574 = vmatpush1.bf16.msra.mxu0 %v473
    %575 = vmatprep.subr.bf16.mxu0 %v478
    %576 = vmatpush1.bf16.msra.mxu0 %v477
    %577 = vmatprep.mubr.bf16.mxu0 %v210
    %578 = vmatmul.mubr.bf16.gmra.mrb[0].mxu0 %v209
    %v579 = vpop.f32.mrb[0].mxu0
    %v580 = vadd.f32 %v168, %v579
    %v581 = vpop.f32.mrb[0].mxu0
    %v582 = vadd.f32 %v172, %v581
    %v583 = vpop.f32.mrb[0].mxu0
    %v584 = vadd.f32 %v168, %v583
    %v585 = vpop.f32.mrb[0].mxu0
    %v586 = vadd.f32 %v172, %v585
    %587 = vmatprep.mubr.bf16.mxu0 %v212
    %588 = vmatmul.mubr.bf16.gmra.mrb[0].mxu0 %v211
    %v589 = vpop.f32.mrb[0].mxu0
    %v590 = vadd.f32 %v168, %v589
    %v591 = vpop.f32.mrb[0].mxu0
    %v592 = vadd.f32 %v172, %v591
    %v593 = vpop.f32.mrb[0].mxu0
    %v594 = vadd.f32 %v168, %v593
    %v595 = vpop.f32.mrb[0].mxu0
    %v596 = vadd.f32 %v172, %v595
    %597 = vmatprep.mubr.bf16.mxu0 %v214
    %598 = vmatmul.mubr.bf16.gmra.mrb[0].mxu0 %v213
    %v599 = vpop.f32.mrb[0].mxu0
    %v600 = vadd.f32 %v168, %v599
    %v601 = vpop.f32.mrb[0].mxu0
    %v602 = vadd.f32 %v172, %v601
    %v603 = vpop.f32.mrb[0].mxu0
    %v604 = vadd.f32 %v168, %v603
    %v605 = vpop.f32.mrb[0].mxu0
    %v606 = vadd.f32 %v172, %v605
    %607 = vmatprep.mubr.bf16.mxu0 %v216
    %608 = vmatmul.mubr.bf16.gmra.mrb[0].mxu0 %v215
    %v609 = vpop.f32.mrb[0].mxu0
    %v610 = vadd.f32 %v168, %v609
    %v611 = vpop.f32.mrb[0].mxu0
    %v612 = vadd.f32 %v172, %v611
    %v613 = vpop.f32.mrb[0].mxu0
    %v614 = vadd.f32 %v168, %v613
    %v615 = vpop.f32.mrb[0].mxu0
    %v616 = vadd.f32 %v172, %v615
    %617 = vdwg.mxu0
    %618 = vmatprep.subr.bf16.mxu0 %v420
    %619 = vmatpush1.bf16.msra.mxu0 %v419
    %620 = vmatprep.subr.bf16.mxu0 %v424
    %621 = vmatpush1.bf16.msra.mxu0 %v423
    %622 = vmatprep.subr.bf16.mxu0 %v428
    %623 = vmatpush1.bf16.msra.mxu0 %v427
    %624 = vmatprep.subr.bf16.mxu0 %v432
    %625 = vmatpush1.bf16.msra.mxu0 %v431
    %626 = vmatprep.subr.bf16.mxu0 %v436
    %627 = vmatpush1.bf16.msra.mxu0 %v435
    %628 = vmatprep.subr.bf16.mxu0 %v440
    %629 = vmatpush1.bf16.msra.mxu0 %v439
    %630 = vmatprep.subr.bf16.mxu0 %v444
    %631 = vmatpush1.bf16.msra.mxu0 %v443
    %632 = vmatprep.subr.bf16.mxu0 %v448
    %633 = vmatpush1.bf16.msra.mxu0 %v447
    %634 = vmatprep.subr.bf16.mxu0 %v452
    %635 = vmatpush1.bf16.msra.mxu0 %v451
    %636 = vmatprep.subr.bf16.mxu0 %v456
    %637 = vmatpush1.bf16.msra.mxu0 %v455
    %638 = vmatprep.subr.bf16.mxu0 %v460
    %639 = vmatpush1.bf16.msra.mxu0 %v459
    %640 = vmatprep.subr.bf16.mxu0 %v464
    %641 = vmatpush1.bf16.msra.mxu0 %v463
    %642 = vmatprep.subr.bf16.mxu0 %v468
    %643 = vmatpush1.bf16.msra.mxu0 %v467
    %644 = vmatprep.subr.bf16.mxu0 %v472
    %645 = vmatpush1.bf16.msra.mxu0 %v471
    %646 = vmatprep.subr.bf16.mxu0 %v476
    %647 = vmatpush1.bf16.msra.mxu0 %v475
    %648 = vmatprep.subr.bf16.mxu0 %v480
    %649 = vmatpush1.bf16.msra.mxu0 %v479
    %650 = vmatprep.mubr.bf16.mxu0 %v210
    %651 = vmatmul.mubr.bf16.gmra.mrb[0].mxu0 %v209
    %v652 = vpop.f32.mrb[0].mxu0
    %v653 = vadd.f32 %v176, %v652
    %v654 = vpop.f32.mrb[0].mxu0
    %v655 = vadd.f32 %v180, %v654
    %v656 = vpop.f32.mrb[0].mxu0
    %v657 = vadd.f32 %v176, %v656
    %v658 = vpop.f32.mrb[0].mxu0
    %v659 = vadd.f32 %v180, %v658
    %660 = vmatprep.mubr.bf16.mxu0 %v212
    %661 = vmatmul.mubr.bf16.gmra.mrb[0].mxu0 %v211
    %v662 = vpop.f32.mrb[0].mxu0
    %v663 = vadd.f32 %v176, %v662
    %v664 = vpop.f32.mrb[0].mxu0
    %v665 = vadd.f32 %v180, %v664
    %v666 = vpop.f32.mrb[0].mxu0
    %v667 = vadd.f32 %v176, %v666
    %v668 = vpop.f32.mrb[0].mxu0
    %v669 = vadd.f32 %v180, %v668
    %670 = vmatprep.mubr.bf16.mxu0 %v214
    %671 = vmatmul.mubr.bf16.gmra.mrb[0].mxu0 %v213
    %v672 = vpop.f32.mrb[0].mxu0
    %v673 = vadd.f32 %v176, %v672
    %v674 = vpop.f32.mrb[0].mxu0
    %v675 = vadd.f32 %v180, %v674
    %v676 = vpop.f32.mrb[0].mxu0
    %v677 = vadd.f32 %v176, %v676
    %v678 = vpop.f32.mrb[0].mxu0
    %v679 = vadd.f32 %v180, %v678
    %680 = vmatprep.mubr.bf16.mxu0 %v216
    %681 = vmatmul.mubr.bf16.gmra.mrb[0].mxu0 %v215
    %v682 = vpop.f32.mrb[0].mxu0
    %v683 = vadd.f32 %v176, %v682
    %v684 = vpop.f32.mrb[0].mxu0
    %v685 = vadd.f32 %v180, %v684
    %v686 = vpop.f32.mrb[0].mxu0
    %v687 = vadd.f32 %v176, %v686
    %v688 = vpop.f32.mrb[0].mxu0
    %v689 = vadd.f32 %v180, %v688
    %690 = vdwg.mxu0
    %691 = vst [vmem:[#allocation2] sm:$0xff] %v580
    %692 = vst [vmem:[#allocation2 + $0x8] sm:$0xff] %v582
    %693 = vst [vmem:[#allocation2 + $0x10] sm:$0xff] %v653
    %694 = vst [vmem:[#allocation2 + $0x18] sm:$0xff] %v655
    %695 = vst [vmem:[#allocation2 + $0x20] sm:$0xff] %v584
    %696 = vst [vmem:[#allocation2 + $0x28] sm:$0xff] %v586
    %697 = vst [vmem:[#allocation2 + $0x30] sm:$0xff] %v657
    %698 = vst [vmem:[#allocation2 + $0x38] sm:$0xff] %v659
    %699 = vst [vmem:[#allocation2 + $0x40] sm:$0xff] %v590
    %700 = vst [vmem:[#allocation2 + $0x48] sm:$0xff] %v592
    %701 = vst [vmem:[#allocation2 + $0x50] sm:$0xff] %v663
    %702 = vst [vmem:[#allocation2 + $0x58] sm:$0xff] %v665
    %703 = vst [vmem:[#allocation2 + $0x60] sm:$0xff] %v594
    %704 = vst [vmem:[#allocation2 + $0x68] sm:$0xff] %v596
    %705 = vst [vmem:[#allocation2 + $0x70] sm:$0xff] %v667
    %706 = vst [vmem:[#allocation2 + $0x78] sm:$0xff] %v669
    %707 = vst [vmem:[#allocation2 + $0x80] sm:$0xff] %v600
    %708 = vst [vmem:[#allocation2 + $0x88] sm:$0xff] %v602
    %709 = vst [vmem:[#allocation2 + $0x90] sm:$0xff] %v673
    %710 = vst [vmem:[#allocation2 + $0x98] sm:$0xff] %v675
    %711 = vst [vmem:[#allocation2 + $0xa0] sm:$0xff] %v604
    %712 = vst [vmem:[#allocation2 + $0xa8] sm:$0xff] %v606
    %713 = vst [vmem:[#allocation2 + $0xb0] sm:$0xff] %v677
    %714 = vst [vmem:[#allocation2 + $0xb8] sm:$0xff] %v679
    %715 = vst [vmem:[#allocation2 + $0xc0] sm:$0xff] %v610
    %716 = vst [vmem:[#allocation2 + $0xc8] sm:$0xff] %v612
    %717 = vst [vmem:[#allocation2 + $0xd0] sm:$0xff] %v683
    %718 = vst [vmem:[#allocation2 + $0xd8] sm:$0xff] %v685
    %719 = vst [vmem:[#allocation2 + $0xe0] sm:$0xff] %v614
    %720 = vst [vmem:[#allocation2 + $0xe8] sm:$0xff] %v616
    %721 = vst [vmem:[#allocation2 + $0xf0] sm:$0xff] %v687
    %722 = vst [vmem:[#allocation2 + $0xf8] sm:$0xff] %v689
    %v723 = vld [vmem:[#allocation2] sm:$0xff]
    %v724 = vld [vmem:[#allocation2 + $0x8] sm:$0xff]
    %v725 = vld [vmem:[#allocation2 + $0x10] sm:$0xff]
    %v726 = vld [vmem:[#allocation2 + $0x18] sm:$0xff]
    %v727 = vld [vmem:[#allocation3] sm:$0xf]
    %v728 = vld [vmem:[#allocation10] sm:$0xff]
    %v729 = vld [vmem:[#allocation10 + $0x8] sm:$0xff]
    %v730 = vld [vmem:[#allocation10 + $0x10] sm:$0xff]
    %v731 = vld [vmem:[#allocation10 + $0x18] sm:$0xff]
    %v732 = vld [vmem:[#allocation10 + $0x20] sm:$0xff]
    %v733 = vld [vmem:[#allocation10 + $0x28] sm:$0xff]
    %v734 = vld [vmem:[#allocation10 + $0x30] sm:$0xff]
    %v735 = vld [vmem:[#allocation10 + $0x38] sm:$0xff]
    %v736 = vld [vmem:[#allocation10 + $0x40] sm:$0xff]
    %v737 = vld [vmem:[#allocation10 + $0x48] sm:$0xff]
    %v738 = vld [vmem:[#allocation10 + $0x50] sm:$0xff]
    %v739 = vld [vmem:[#allocation10 + $0x58] sm:$0xff]
    %v740 = vld [vmem:[#allocation10 + $0x60] sm:$0xff]
    %v741 = vld [vmem:[#allocation10 + $0x68] sm:$0xff]
    %v742 = vld [vmem:[#allocation10 + $0x70] sm:$0xff]
    %v743 = vld [vmem:[#allocation10 + $0x78] sm:$0xff]
    %v744 = vld [vmem:[#allocation10 + $0x80] sm:$0xff]
    %v745 = vld [vmem:[#allocation10 + $0x88] sm:$0xff]
    %v746 = vld [vmem:[#allocation10 + $0x90] sm:$0xff]
    %v747 = vld [vmem:[#allocation10 + $0x98] sm:$0xff]
    %v748 = vld [vmem:[#allocation10 + $0xa0] sm:$0xff]
    %v749 = vld [vmem:[#allocation10 + $0xa8] sm:$0xff]
    %v750 = vld [vmem:[#allocation10 + $0xb0] sm:$0xff]
    %v751 = vld [vmem:[#allocation10 + $0xb8] sm:$0xff]
    %v752 = vld [vmem:[#allocation10 + $0xc0] sm:$0xff]
    %v753 = vld [vmem:[#allocation10 + $0xc8] sm:$0xff]
    %v754 = vld [vmem:[#allocation10 + $0xd0] sm:$0xff]
    %v755 = vld [vmem:[#allocation10 + $0xd8] sm:$0xff]
    %v756 = vld [vmem:[#allocation10 + $0xe0] sm:$0xff]
    %v757 = vld [vmem:[#allocation10 + $0xe8] sm:$0xff]
    %v758 = vld [vmem:[#allocation10 + $0xf0] sm:$0xff]
    %v759 = vld [vmem:[#allocation10 + $0xf8] sm:$0xff]
    %v792 = vunpack.c.l.b16 %v728
    %v793 = vunpack.c.h.b16 %v728
    %v794 = vunpack.c.l.b16 %v729
    %v795 = vunpack.c.h.b16 %v729
    %v796 = vunpack.c.l.b16 %v730
    %v797 = vunpack.c.h.b16 %v730
    %v798 = vunpack.c.l.b16 %v731
    %v799 = vunpack.c.h.b16 %v731
    %v800 = vunpack.c.l.b16 %v732
    %v801 = vunpack.c.h.b16 %v732
    %v802 = vunpack.c.l.b16 %v733
    %v803 = vunpack.c.h.b16 %v733
    %v804 = vunpack.c.l.b16 %v734
    %v805 = vunpack.c.h.b16 %v734
    %v806 = vunpack.c.l.b16 %v735
    %v807 = vunpack.c.h.b16 %v735
    %v808 = vunpack.c.l.b16 %v736
    %v809 = vunpack.c.h.b16 %v736
    %v810 = vunpack.c.l.b16 %v737
    %v811 = vunpack.c.h.b16 %v737
    %v812 = vunpack.c.l.b16 %v738
    %v813 = vunpack.c.h.b16 %v738
    %v814 = vunpack.c.l.b16 %v739
    %v815 = vunpack.c.h.b16 %v739
    %v816 = vunpack.c.l.b16 %v740
    %v817 = vunpack.c.h.b16 %v740
    %v818 = vunpack.c.l.b16 %v741
    %v819 = vunpack.c.h.b16 %v741
    %v820 = vunpack.c.l.b16 %v742
    %v821 = vunpack.c.h.b16 %v742
    %v822 = vunpack.c.l.b16 %v743
    %v823 = vunpack.c.h.b16 %v743
    %v824 = vunpack.c.l.b16 %v744
    %v825 = vunpack.c.h.b16 %v744
    %v826 = vunpack.c.l.b16 %v745
    %v827 = vunpack.c.h.b16 %v745
    %v828 = vunpack.c.l.b16 %v746
    %v829 = vunpack.c.h.b16 %v746
    %v830 = vunpack.c.l.b16 %v747
    %v831 = vunpack.c.h.b16 %v747
    %v832 = vunpack.c.l.b16 %v748
    %v833 = vunpack.c.h.b16 %v748
    %v834 = vunpack.c.l.b16 %v749
    %v835 = vunpack.c.h.b16 %v749
    %v836 = vunpack.c.l.b16 %v750
    %v837 = vunpack.c.h.b16 %v750
    %v838 = vunpack.c.l.b16 %v751
    %v839 = vunpack.c.h.b16 %v751
    %v840 = vunpack.c.l.b16 %v752
    %v841 = vunpack.c.h.b16 %v752
    %v842 = vunpack.c.l.b16 %v753
    %v843 = vunpack.c.h.b16 %v753
    %v844 = vunpack.c.l.b16 %v754
    %v845 = vunpack.c.h.b16 %v754
    %v846 = vunpack.c.l.b16 %v755
    %v847 = vunpack.c.h.b16 %v755
    %v848 = vunpack.c.l.b16 %v756
    %v849 = vunpack.c.h.b16 %v756
    %v850 = vunpack.c.l.b16 %v757
    %v851 = vunpack.c.h.b16 %v757
    %v852 = vunpack.c.l.b16 %v758
    %v853 = vunpack.c.h.b16 %v758
    %v854 = vunpack.c.l.b16 %v759
    %v855 = vunpack.c.h.b16 %v759
    %v856 = vpack.c.b16 %v796, %v792
    %v857 = vpack.c.b16 %v797, %v793
    %v858 = vpack.c.b16 %v798, %v794
    %v859 = vpack.c.b16 %v799, %v795
    %v860 = vpack.c.b16 %v804, %v800
    %v861 = vpack.c.b16 %v805, %v801
    %v862 = vpack.c.b16 %v806, %v802
    %v863 = vpack.c.b16 %v807, %v803
    %v864 = vpack.c.b16 %v812, %v808
    %v865 = vpack.c.b16 %v813, %v809
    %v866 = vpack.c.b16 %v814, %v810
    %v867 = vpack.c.b16 %v815, %v811
    %v868 = vpack.c.b16 %v820, %v816
    %v869 = vpack.c.b16 %v821, %v817
    %v870 = vpack.c.b16 %v822, %v818
    %v871 = vpack.c.b16 %v823, %v819
    %v872 = vpack.c.b16 %v828, %v824
    %v873 = vpack.c.b16 %v829, %v825
    %v874 = vpack.c.b16 %v830, %v826
    %v875 = vpack.c.b16 %v831, %v827
    %v876 = vpack.c.b16 %v836, %v832
    %v877 = vpack.c.b16 %v837, %v833
    %v878 = vpack.c.b16 %v838, %v834
    %v879 = vpack.c.b16 %v839, %v835
    %v880 = vpack.c.b16 %v844, %v840
    %v881 = vpack.c.b16 %v845, %v841
    %v882 = vpack.c.b16 %v846, %v842
    %v883 = vpack.c.b16 %v847, %v843
    %v884 = vpack.c.b16 %v852, %v848
    %v885 = vpack.c.b16 %v853, %v849
    %v886 = vpack.c.b16 %v854, %v850
    %v887 = vpack.c.b16 %v855, %v851
    %920 = vmatprep.subr.bf16.mxu0 %v857
    %921 = vmatpush1.bf16.msra.mxu0 %v856
    %922 = vmatprep.subr.bf16.mxu0 %v861
    %923 = vmatpush1.bf16.msra.mxu0 %v860
    %924 = vmatprep.subr.bf16.mxu0 %v865
    %925 = vmatpush1.bf16.msra.mxu0 %v864
    %926 = vmatprep.subr.bf16.mxu0 %v869
    %927 = vmatpush1.bf16.msra.mxu0 %v868
    %928 = vmatprep.subr.bf16.mxu0 %v873
    %929 = vmatpush1.bf16.msra.mxu0 %v872
    %930 = vmatprep.subr.bf16.mxu0 %v877
    %931 = vmatpush1.bf16.msra.mxu0 %v876
    %932 = vmatprep.subr.bf16.mxu0 %v881
    %933 = vmatpush1.bf16.msra.mxu0 %v880
    %934 = vmatprep.subr.bf16.mxu0 %v885
    %935 = vmatpush1.bf16.msra.mxu0 %v884
    %936 = vmatprep.subr.bf16.mxu0 0
    %937 = vmatpush1.bf16.msra.mxu0 0
    %938 = vmatprep.subr.bf16.mxu0 0
    %939 = vmatpush1.bf16.msra.mxu0 0
    %940 = vmatprep.subr.bf16.mxu0 0
    %941 = vmatpush1.bf16.msra.mxu0 0
    %942 = vmatprep.subr.bf16.mxu0 0
    %943 = vmatpush1.bf16.msra.mxu0 0
    %944 = vmatprep.subr.bf16.mxu0 0
    %945 = vmatpush1.bf16.msra.mxu0 0
    %946 = vmatprep.subr.bf16.mxu0 0
    %947 = vmatpush1.bf16.msra.mxu0 0
    %948 = vmatprep.subr.bf16.mxu0 0
    %949 = vmatpush1.bf16.msra.mxu0 0
    %950 = vmatprep.subr.bf16.mxu0 0
    %951 = vmatpush1.bf16.msra.mxu0 0
    %952 = vmatprep.mubr.bf16.mxu0 0
    %953 = vmatmul.mubr.bf16.gmra.mrb[0].mxu0 %v727
    %v954 = vpop.f32.mrb[0].mxu0
    %v955 = vadd.f32 0.0, %v954
    %v956 = vpop.f32.mrb[0].mxu0
    %v957 = vadd.f32 0.0, %v956
    %v958 = vpop.f32.mrb[0].mxu0
    %v959 = vpop.f32.mrb[0].mxu0
    %960 = vdwg.mxu0
    %961 = vmatprep.subr.bf16.mxu0 %v859
    %962 = vmatpush1.bf16.msra.mxu0 %v858
    %963 = vmatprep.subr.bf16.mxu0 %v863
    %964 = vmatpush1.bf16.msra.mxu0 %v862
    %965 = vmatprep.subr.bf16.mxu0 %v867
    %966 = vmatpush1.bf16.msra.mxu0 %v866
    %967 = vmatprep.subr.bf16.mxu0 %v871
    %968 = vmatpush1.bf16.msra.mxu0 %v870
    %969 = vmatprep.subr.bf16.mxu0 %v875
    %970 = vmatpush1.bf16.msra.mxu0 %v874
    %971 = vmatprep.subr.bf16.mxu0 %v879
    %972 = vmatpush1.bf16.msra.mxu0 %v878
    %973 = vmatprep.subr.bf16.mxu0 %v883
    %974 = vmatpush1.bf16.msra.mxu0 %v882
    %975 = vmatprep.subr.bf16.mxu0 %v887
    %976 = vmatpush1.bf16.msra.mxu0 %v886
    %977 = vmatprep.subr.bf16.mxu0 0
    %978 = vmatpush1.bf16.msra.mxu0 0
    %979 = vmatprep.subr.bf16.mxu0 0
    %980 = vmatpush1.bf16.msra.mxu0 0
    %981 = vmatprep.subr.bf16.mxu0 0
    %982 = vmatpush1.bf16.msra.mxu0 0
    %983 = vmatprep.subr.bf16.mxu0 0
    %984 = vmatpush1.bf16.msra.mxu0 0
    %985 = vmatprep.subr.bf16.mxu0 0
    %986 = vmatpush1.bf16.msra.mxu0 0
    %987 = vmatprep.subr.bf16.mxu0 0
    %988 = vmatpush1.bf16.msra.mxu0 0
    %989 = vmatprep.subr.bf16.mxu0 0
    %990 = vmatpush1.bf16.msra.mxu0 0
    %991 = vmatprep.subr.bf16.mxu0 0
    %992 = vmatpush1.bf16.msra.mxu0 0
    %993 = vmatprep.mubr.bf16.mxu0 0
    %994 = vmatmul.mubr.bf16.gmra.mrb[0].mxu0 %v727
    %v995 = vpop.f32.mrb[0].mxu0
    %v996 = vadd.f32 0.0, %v995
    %v997 = vpop.f32.mrb[0].mxu0
    %v998 = vadd.f32 0.0, %v997
    %v999 = vpop.f32.mrb[0].mxu0
    %v1000 = vpop.f32.mrb[0].mxu0
    %1001 = vdwg.mxu0
    %v1002 = vadd.f32 %v723, %v955
    %v1003 = vadd.f32 %v724, %v957
    %v1004 = vadd.f32 %v725, %v996
    %v1005 = vadd.f32 %v726, %v998
    %v1006 = vxor.u32 %v1002, 2147483648
    %v1007 = vmul.f32 %v1006, 1.442695
    %v1008 = vpow.pop %v1007
    %v1009 = vadd.f32 %v1008, 1.0
    %v1010 = vrcp.pop %v1009
    %v1011 = vmul.f32 1.0, %v1010
    %v1012 = vxor.u32 %v1003, 2147483648
    %v1013 = vmul.f32 %v1012, 1.442695
    %v1014 = vpow.pop %v1013
    %v1015 = vadd.f32 %v1014, 1.0
    %v1016 = vrcp.pop %v1015
    %v1017 = vmul.f32 1.0, %v1016
    %v1018 = vtanh.pop %v1004
    %v1019 = vxor.u32 %v1005, 2147483648
    %v1020 = vmul.f32 %v1019, 1.442695
    %v1021 = vpow.pop %v1020
    %v1022 = vadd.f32 %v1021, 1.0
    %v1023 = vrcp.pop %v1022
    %v1024 = vmul.f32 1.0, %v1023
    %v1025 = vld [vmem:[#allocation4] sm:$0xff]
    %v1026 = vmul.f32 %v1017, %v1025
    %v1027 = vmul.f32 %v1011, %v1018
    %v1028 = vadd.f32 %v1026, %v1027
    %v1029 = vtanh.pop %v1028
    %v1030 = vmul.f32 %v1024, %v1029
    %1031 = vst [vmem:[#allocation4] sm:$0xff] %v1028
    %v1032 = vpack.c.bf16 %v1030, %v1030
    %1033 = vst [vmem:[#allocation3] sm:$0xf] %v1032
    %1034 = vst [vmem:[#allocation13] sm:$0xf] %v1032
    %v1035 = vld [vmem:[#allocation2 + $0x20] sm:$0xff]
    %v1036 = vld [vmem:[#allocation2 + $0x28] sm:$0xff]
    %v1037 = vld [vmem:[#allocation2 + $0x30] sm:$0xff]
    %v1038 = vld [vmem:[#allocation2 + $0x38] sm:$0xff]
    %v1039 = vld [vmem:[#allocation3] sm:$0xf]
    %v1040 = vld [vmem:[#allocation10] sm:$0xff]
    %v1041 = vld [vmem:[#allocation10 + $0x8] sm:$0xff]
    %v1042 = vld [vmem:[#allocation10 + $0x10] sm:$0xff]
    %v1043 = vld [vmem:[#allocation10 + $0x18] sm:$0xff]
    %v1044 = vld [vmem:[#allocation10 + $0x20] sm:$0xff]
    %v1045 = vld [vmem:[#allocation10 + $0x28] sm:$0xff]
    %v1046 = vld [vmem:[#allocation10 + $0x30] sm:$0xff]
    %v1047 = vld [vmem:[#allocation10 + $0x38] sm:$0xff]
    %v1048 = vld [vmem:[#allocation10 + $0x40] sm:$0xff]
    %v1049 = vld [vmem:[#allocation10 + $0x48] sm:$0xff]
    %v1050 = vld [vmem:[#allocation10 + $0x50] sm:$0xff]
    %v1051 = vld [vmem:[#allocation10 + $0x58] sm:$0xff]
    %v1052 = vld [vmem:[#allocation10 + $0x60] sm:$0xff]
    %v1053 = vld [vmem:[#allocation10 + $0x68] sm:$0xff]
    %v1054 = vld [vmem:[#allocation10 + $0x70] sm:$0xff]
    %v1055 = vld [vmem:[#allocation10 + $0x78] sm:$0xff]
    %v1056 = vld [vmem:[#allocation10 + $0x80] sm:$0xff]
    %v1057 = vld [vmem:[#allocation10 + $0x88] sm:$0xff]
    %v1058 = vld [vmem:[#allocation10 + $0x90] sm:$0xff]
    %v1059 = vld [vmem:[#allocation10 + $0x98] sm:$0xff]
    %v1060 = vld [vmem:[#allocation10 + $0xa0] sm:$0xff]
    %v1061 = vld [vmem:[#allocation10 + $0xa8] sm:$0xff]
    %v1062 = vld [vmem:[#allocation10 + $0xb0] sm:$0xff]
    %v1063 = vld [vmem:[#allocation10 + $0xb8] sm:$0xff]
    %v1064 = vld [vmem:[#allocation10 + $0xc0] sm:$0xff]
    %v1065 = vld [vmem:[#allocation10 + $0xc8] sm:$0xff]
    %v1066 = vld [vmem:[#allocation10 + $0xd0] sm:$0xff]
    %v1067 = vld [vmem:[#allocation10 + $0xd8] sm:$0xff]
    %v1068 = vld [vmem:[#allocation10 + $0xe0] sm:$0xff]
    %v1069 = vld [vmem:[#allocation10 + $0xe8] sm:$0xff]
    %v1070 = vld [vmem:[#allocation10 + $0xf0] sm:$0xff]
    %v1071 = vld [vmem:[#allocation10 + $0xf8] sm:$0xff]
    %v1104 = vunpack.c.l.b16 %v1040
    %v1105 = vunpack.c.h.b16 %v1040
    %v1106 = vunpack.c.l.b16 %v1041
    %v1107 = vunpack.c.h.b16 %v1041
    %v1108 = vunpack.c.l.b16 %v1042
    %v1109 = vunpack.c.h.b16 %v1042
    %v1110 = vunpack.c.l.b16 %v1043
    %v1111 = vunpack.c.h.b16 %v1043
    %v1112 = vunpack.c.l.b16 %v1044
    %v1113 = vunpack.c.h.b16 %v1044
    %v1114 = vunpack.c.l.b16 %v1045
    %v1115 = vunpack.c.h.b16 %v1045
    %v1116 = vunpack.c.l.b16 %v1046
    %v1117 = vunpack.c.h.b16 %v1046
    %v1118 = vunpack.c.l.b16 %v1047
    %v1119 = vunpack.c.h.b16 %v1047
    %v1120 = vunpack.c.l.b16 %v1048
    %v1121 = vunpack.c.h.b16 %v1048
    %v1122 = vunpack.c.l.b16 %v1049
    %v1123 = vunpack.c.h.b16 %v1049
    %v1124 = vunpack.c.l.b16 %v1050
    %v1125 = vunpack.c.h.b16 %v1050
    %v1126 = vunpack.c.l.b16 %v1051
    %v1127 = vunpack.c.h.b16 %v1051
    %v1128 = vunpack.c.l.b16 %v1052
    %v1129 = vunpack.c.h.b16 %v1052
    %v1130 = vunpack.c.l.b16 %v1053
    %v1131 = vunpack.c.h.b16 %v1053
    %v1132 = vunpack.c.l.b16 %v1054
    %v1133 = vunpack.c.h.b16 %v1054
    %v1134 = vunpack.c.l.b16 %v1055
    %v1135 = vunpack.c.h.b16 %v1055
    %v1136 = vunpack.c.l.b16 %v1056
    %v1137 = vunpack.c.h.b16 %v1056
    %v1138 = vunpack.c.l.b16 %v1057
    %v1139 = vunpack.c.h.b16 %v1057
    %v1140 = vunpack.c.l.b16 %v1058
    %v1141 = vunpack.c.h.b16 %v1058
    %v1142 = vunpack.c.l.b16 %v1059
    %v1143 = vunpack.c.h.b16 %v1059
    %v1144 = vunpack.c.l.b16 %v1060
    %v1145 = vunpack.c.h.b16 %v1060
    %v1146 = vunpack.c.l.b16 %v1061
    %v1147 = vunpack.c.h.b16 %v1061
    %v1148 = vunpack.c.l.b16 %v1062
    %v1149 = vunpack.c.h.b16 %v1062
    %v1150 = vunpack.c.l.b16 %v1063
    %v1151 = vunpack.c.h.b16 %v1063
    %v1152 = vunpack.c.l.b16 %v1064
    %v1153 = vunpack.c.h.b16 %v1064
    %v1154 = vunpack.c.l.b16 %v1065
    %v1155 = vunpack.c.h.b16 %v1065
    %v1156 = vunpack.c.l.b16 %v1066
    %v1157 = vunpack.c.h.b16 %v1066
    %v1158 = vunpack.c.l.b16 %v1067
    %v1159 = vunpack.c.h.b16 %v1067
    %v1160 = vunpack.c.l.b16 %v1068
    %v1161 = vunpack.c.h.b16 %v1068
    %v1162 = vunpack.c.l.b16 %v1069
    %v1163 = vunpack.c.h.b16 %v1069
    %v1164 = vunpack.c.l.b16 %v1070
    %v1165 = vunpack.c.h.b16 %v1070
    %v1166 = vunpack.c.l.b16 %v1071
    %v1167 = vunpack.c.h.b16 %v1071
    %v1168 = vpack.c.b16 %v1108, %v1104
    %v1169 = vpack.c.b16 %v1109, %v1105
    %v1170 = vpack.c.b16 %v1110, %v1106
    %v1171 = vpack.c.b16 %v1111, %v1107
    %v1172 = vpack.c.b16 %v1116, %v1112
    %v1173 = vpack.c.b16 %v1117, %v1113
    %v1174 = vpack.c.b16 %v1118, %v1114
    %v1175 = vpack.c.b16 %v1119, %v1115
    %v1176 = vpack.c.b16 %v1124, %v1120
    %v1177 = vpack.c.b16 %v1125, %v1121
    %v1178 = vpack.c.b16 %v1126, %v1122
    %v1179 = vpack.c.b16 %v1127, %v1123
    %v1180 = vpack.c.b16 %v1132, %v1128
    %v1181 = vpack.c.b16 %v1133, %v1129
    %v1182 = vpack.c.b16 %v1134, %v1130
    %v1183 = vpack.c.b16 %v1135, %v1131
    %v1184 = vpack.c.b16 %v1140, %v1136
    %v1185 = vpack.c.b16 %v1141, %v1137
    %v1186 = vpack.c.b16 %v1142, %v1138
    %v1187 = vpack.c.b16 %v1143, %v1139
    %v1188 = vpack.c.b16 %v1148, %v1144
    %v1189 = vpack.c.b16 %v1149, %v1145
    %v1190 = vpack.c.b16 %v1150, %v1146
    %v1191 = vpack.c.b16 %v1151, %v1147
    %v1192 = vpack.c.b16 %v1156, %v1152
    %v1193 = vpack.c.b16 %v1157, %v1153
    %v1194 = vpack.c.b16 %v1158, %v1154
    %v1195 = vpack.c.b16 %v1159, %v1155
    %v1196 = vpack.c.b16 %v1164, %v1160
    %v1197 = vpack.c.b16 %v1165, %v1161
    %v1198 = vpack.c.b16 %v1166, %v1162
    %v1199 = vpack.c.b16 %v1167, %v1163
    %1232 = vmatprep.subr.bf16.mxu0 %v1169
    %1233 = vmatpush1.bf16.msra.mxu0 %v1168
    %1234 = vmatprep.subr.bf16.mxu0 %v1173
    %1235 = vmatpush1.bf16.msra.mxu0 %v1172
    %1236 = vmatprep.subr.bf16.mxu0 %v1177
    %1237 = vmatpush1.bf16.msra.mxu0 %v1176
    %1238 = vmatprep.subr.bf16.mxu0 %v1181
    %1239 = vmatpush1.bf16.msra.mxu0 %v1180
    %1240 = vmatprep.subr.bf16.mxu0 %v1185
    %1241 = vmatpush1.bf16.msra.mxu0 %v1184
    %1242 = vmatprep.subr.bf16.mxu0 %v1189
    %1243 = vmatpush1.bf16.msra.mxu0 %v1188
    %1244 = vmatprep.subr.bf16.mxu0 %v1193
    %1245 = vmatpush1.bf16.msra.mxu0 %v1192
    %1246 = vmatprep.subr.bf16.mxu0 %v1197
    %1247 = vmatpush1.bf16.msra.mxu0 %v1196
    %1248 = vmatprep.subr.bf16.mxu0 0
    %1249 = vmatpush1.bf16.msra.mxu0 0
    %1250 = vmatprep.subr.bf16.mxu0 0
    %1251 = vmatpush1.bf16.msra.mxu0 0
    %1252 = vmatprep.subr.bf16.mxu0 0
    %1253 = vmatpush1.bf16.msra.mxu0 0
    %1254 = vmatprep.subr.bf16.mxu0 0
    %1255 = vmatpush1.bf16.msra.mxu0 0
    %1256 = vmatprep.subr.bf16.mxu0 0
    %1257 = vmatpush1.bf16.msra.mxu0 0
    %1258 = vmatprep.subr.bf16.mxu0 0
    %1259 = vmatpush1.bf16.msra.mxu0 0
    %1260 = vmatprep.subr.bf16.mxu0 0
    %1261 = vmatpush1.bf16.msra.mxu0 0
    %1262 = vmatprep.subr.bf16.mxu0 0
    %1263 = vmatpush1.bf16.msra.mxu0 0
    %1264 = vmatprep.mubr.bf16.mxu0 0
    %1265 = vmatmul.mubr.bf16.gmra.mrb[0].mxu0 %v1039
    %v1266 = vpop.f32.mrb[0].mxu0
    %v1267 = vadd.f32 0.0, %v1266
    %v1268 = vpop.f32.mrb[0].mxu0
    %v1269 = vadd.f32 0.0, %v1268
    %v1270 = vpop.f32.mrb[0].mxu0
    %v1271 = vpop.f32.mrb[0].mxu0
    %1272 = vdwg.mxu0
    %1273 = vmatprep.subr.bf16.mxu0 %v1171
    %1274 = vmatpush1.bf16.msra.mxu0 %v1170
    %1275 = vmatprep.subr.bf16.mxu0 %v1175
    %1276 = vmatpush1.bf16.msra.mxu0 %v1174
    %1277 = vmatprep.subr.bf16.mxu0 %v1179
    %1278 = vmatpush1.bf16.msra.mxu0 %v1178
    %1279 = vmatprep.subr.bf16.mxu0 %v1183
    %1280 = vmatpush1.bf16.msra.mxu0 %v1182
    %1281 = vmatprep.subr.bf16.mxu0 %v1187
    %1282 = vmatpush1.bf16.msra.mxu0 %v1186
    %1283 = vmatprep.subr.bf16.mxu0 %v1191
    %1284 = vmatpush1.bf16.msra.mxu0 %v1190
    %1285 = vmatprep.subr.bf16.mxu0 %v1195
    %1286 = vmatpush1.bf16.msra.mxu0 %v1194
    %1287 = vmatprep.subr.bf16.mxu0 %v1199
    %1288 = vmatpush1.bf16.msra.mxu0 %v1198
    %1289 = vmatprep.subr.bf16.mxu0 0
    %1290 = vmatpush1.bf16.msra.mxu0 0
    %1291 = vmatprep.subr.bf16.mxu0 0
    %1292 = vmatpush1.bf16.msra.mxu0 0
    %1293 = vmatprep.subr.bf16.mxu0 0
    %1294 = vmatpush1.bf16.msra.mxu0 0
    %1295 = vmatprep.subr.bf16.mxu0 0
    %1296 = vmatpush1.bf16.msra.mxu0 0
    %1297 = vmatprep.subr.bf16.mxu0 0
    %1298 = vmatpush1.bf16.msra.mxu0 0
    %1299 = vmatprep.subr.bf16.mxu0 0
    %1300 = vmatpush1.bf16.msra.mxu0 0
    %1301 = vmatprep.subr.bf16.mxu0 0
    %1302 = vmatpush1.bf16.msra.mxu0 0
    %1303 = vmatprep.subr.bf16.mxu0 0
    %1304 = vmatpush1.bf16.msra.mxu0 0
    %1305 = vmatprep.mubr.bf16.mxu0 0
    %1306 = vmatmul.mubr.bf16.gmra.mrb[0].mxu0 %v1039
    %v1307 = vpop.f32.mrb[0].mxu0
    %v1308 = vadd.f32 0.0, %v1307
    %v1309 = vpop.f32.mrb[0].mxu0
    %v1310 = vadd.f32 0.0, %v1309
    %v1311 = vpop.f32.mrb[0].mxu0
    %v1312 = vpop.f32.mrb[0].mxu0
    %1313 = vdwg.mxu0
    %v1314 = vadd.f32 %v1035, %v1267
    %v1315 = vadd.f32 %v1036, %v1269
    %v1316 = vadd.f32 %v1037, %v1308
    %v1317 = vadd.f32 %v1038, %v1310
    %v1318 = vxor.u32 %v1314, 2147483648
    %v1319 = vmul.f32 %v1318, 1.442695
    %v1320 = vpow.pop %v1319
    %v1321 = vadd.f32 %v1320, 1.0
    %v1322 = vrcp.pop %v1321
    %v1323 = vmul.f32 1.0, %v1322
    %v1324 = vxor.u32 %v1315, 2147483648
    %v1325 = vmul.f32 %v1324, 1.442695
    %v1326 = vpow.pop %v1325
    %v1327 = vadd.f32 %v1326, 1.0
    %v1328 = vrcp.pop %v1327
    %v1329 = vmul.f32 1.0, %v1328
    %v1330 = vtanh.pop %v1316
    %v1331 = vxor.u32 %v1317, 2147483648
    %v1332 = vmul.f32 %v1331, 1.442695
    %v1333 = vpow.pop %v1332
    %v1334 = vadd.f32 %v1333, 1.0
    %v1335 = vrcp.pop %v1334
    %v1336 = vmul.f32 1.0, %v1335
    %v1337 = vld [vmem:[#allocation4] sm:$0xff]
    %v1338 = vmul.f32 %v1329, %v1337
    %v1339 = vmul.f32 %v1323, %v1330
    %v1340 = vadd.f32 %v1338, %v1339
    %v1341 = vtanh.pop %v1340
    %v1342 = vmul.f32 %v1336, %v1341
    %1343 = vst [vmem:[#allocation4] sm:$0xff] %v1340
    %v1344 = vpack.c.bf16 %v1342, %v1342
    %1345 = vst [vmem:[#allocation3] sm:$0xf] %v1344
    %s1346 = scalar_lea.vmem [#allocation13], 4
    %1347 = vst [vmem:[%s1346] sm:$0xf] %v1344
    %v1348 = vld [vmem:[#allocation2 + $0x40] sm:$0xff]
    %v1349 = vld [vmem:[#allocation2 + $0x48] sm:$0xff]
    %v1350 = vld [vmem:[#allocation2 + $0x50] sm:$0xff]
    %v1351 = vld [vmem:[#allocation2 + $0x58] sm:$0xff]
    %v1352 = vld [vmem:[#allocation3] sm:$0xf]
    %v1353 = vld [vmem:[#allocation10] sm:$0xff]
    %v1354 = vld [vmem:[#allocation10 + $0x8] sm:$0xff]
    %v1355 = vld [vmem:[#allocation10 + $0x10] sm:$0xff]
    %v1356 = vld [vmem:[#allocation10 + $0x18] sm:$0xff]
    %v1357 = vld [vmem:[#allocation10 + $0x20] sm:$0xff]
    %v1358 = vld [vmem:[#allocation10 + $0x28] sm:$0xff]
    %v1359 = vld [vmem:[#allocation10 + $0x30] sm:$0xff]
    %v1360 = vld [vmem:[#allocation10 + $0x38] sm:$0xff]
    %v1361 = vld [vmem:[#allocation10 + $0x40] sm:$0xff]
    %v1362 = vld [vmem:[#allocation10 + $0x48] sm:$0xff]
    %v1363 = vld [vmem:[#allocation10 + $0x50] sm:$0xff]
    %v1364 = vld [vmem:[#allocation10 + $0x58] sm:$0xff]
    %v1365 = vld [vmem:[#allocation10 + $0x60] sm:$0xff]
    %v1366 = vld [vmem:[#allocation10 + $0x68] sm:$0xff]
    %v1367 = vld [vmem:[#allocation10 + $0x70] sm:$0xff]
    %v1368 = vld [vmem:[#allocation10 + $0x78] sm:$0xff]
    %v1369 = vld [vmem:[#allocation10 + $0x80] sm:$0xff]
    %v1370 = vld [vmem:[#allocation10 + $0x88] sm:$0xff]
    %v1371 = vld [vmem:[#allocation10 + $0x90] sm:$0xff]
    %v1372 = vld [vmem:[#allocation10 + $0x98] sm:$0xff]
    %v1373 = vld [vmem:[#allocation10 + $0xa0] sm:$0xff]
    %v1374 = vld [vmem:[#allocation10 + $0xa8] sm:$0xff]
    %v1375 = vld [vmem:[#allocation10 + $0xb0] sm:$0xff]
    %v1376 = vld [vmem:[#allocation10 + $0xb8] sm:$0xff]
    %v1377 = vld [vmem:[#allocation10 + $0xc0] sm:$0xff]
    %v1378 = vld [vmem:[#allocation10 + $0xc8] sm:$0xff]
    %v1379 = vld [vmem:[#allocation10 + $0xd0] sm:$0xff]
    %v1380 = vld [vmem:[#allocation10 + $0xd8] sm:$0xff]
    %v1381 = vld [vmem:[#allocation10 + $0xe0] sm:$0xff]
    %v1382 = vld [vmem:[#allocation10 + $0xe8] sm:$0xff]
    %v1383 = vld [vmem:[#allocation10 + $0xf0] sm:$0xff]
    %v1384 = vld [vmem:[#allocation10 + $0xf8] sm:$0xff]
    %v1417 = vunpack.c.l.b16 %v1353
    %v1418 = vunpack.c.h.b16 %v1353
    %v1419 = vunpack.c.l.b16 %v1354
    %v1420 = vunpack.c.h.b16 %v1354
    %v1421 = vunpack.c.l.b16 %v1355
    %v1422 = vunpack.c.h.b16 %v1355
    %v1423 = vunpack.c.l.b16 %v1356
    %v1424 = vunpack.c.h.b16 %v1356
    %v1425 = vunpack.c.l.b16 %v1357
    %v1426 = vunpack.c.h.b16 %v1357
    %v1427 = vunpack.c.l.b16 %v1358
    %v1428 = vunpack.c.h.b16 %v1358
    %v1429 = vunpack.c.l.b16 %v1359
    %v1430 = vunpack.c.h.b16 %v1359
    %v1431 = vunpack.c.l.b16 %v1360
    %v1432 = vunpack.c.h.b16 %v1360
    %v1433 = vunpack.c.l.b16 %v1361
    %v1434 = vunpack.c.h.b16 %v1361
    %v1435 = vunpack.c.l.b16 %v1362
    %v1436 = vunpack.c.h.b16 %v1362
    %v1437 = vunpack.c.l.b16 %v1363
    %v1438 = vunpack.c.h.b16 %v1363
    %v1439 = vunpack.c.l.b16 %v1364
    %v1440 = vunpack.c.h.b16 %v1364
    %v1441 = vunpack.c.l.b16 %v1365
    %v1442 = vunpack.c.h.b16 %v1365
    %v1443 = vunpack.c.l.b16 %v1366
    %v1444 = vunpack.c.h.b16 %v1366
    %v1445 = vunpack.c.l.b16 %v1367
    %v1446 = vunpack.c.h.b16 %v1367
    %v1447 = vunpack.c.l.b16 %v1368
    %v1448 = vunpack.c.h.b16 %v1368
    %v1449 = vunpack.c.l.b16 %v1369
    %v1450 = vunpack.c.h.b16 %v1369
    %v1451 = vunpack.c.l.b16 %v1370
    %v1452 = vunpack.c.h.b16 %v1370
    %v1453 = vunpack.c.l.b16 %v1371
    %v1454 = vunpack.c.h.b16 %v1371
    %v1455 = vunpack.c.l.b16 %v1372
    %v1456 = vunpack.c.h.b16 %v1372
    %v1457 = vunpack.c.l.b16 %v1373
    %v1458 = vunpack.c.h.b16 %v1373
    %v1459 = vunpack.c.l.b16 %v1374
    %v1460 = vunpack.c.h.b16 %v1374
    %v1461 = vunpack.c.l.b16 %v1375
    %v1462 = vunpack.c.h.b16 %v1375
    %v1463 = vunpack.c.l.b16 %v1376
    %v1464 = vunpack.c.h.b16 %v1376
    %v1465 = vunpack.c.l.b16 %v1377
    %v1466 = vunpack.c.h.b16 %v1377
    %v1467 = vunpack.c.l.b16 %v1378
    %v1468 = vunpack.c.h.b16 %v1378
    %v1469 = vunpack.c.l.b16 %v1379
    %v1470 = vunpack.c.h.b16 %v1379
    %v1471 = vunpack.c.l.b16 %v1380
    %v1472 = vunpack.c.h.b16 %v1380
    %v1473 = vunpack.c.l.b16 %v1381
    %v1474 = vunpack.c.h.b16 %v1381
    %v1475 = vunpack.c.l.b16 %v1382
    %v1476 = vunpack.c.h.b16 %v1382
    %v1477 = vunpack.c.l.b16 %v1383
    %v1478 = vunpack.c.h.b16 %v1383
    %v1479 = vunpack.c.l.b16 %v1384
    %v1480 = vunpack.c.h.b16 %v1384
    %v1481 = vpack.c.b16 %v1421, %v1417
    %v1482 = vpack.c.b16 %v1422, %v1418
    %v1483 = vpack.c.b16 %v1423, %v1419
    %v1484 = vpack.c.b16 %v1424, %v1420
    %v1485 = vpack.c.b16 %v1429, %v1425
    %v1486 = vpack.c.b16 %v1430, %v1426
    %v1487 = vpack.c.b16 %v1431, %v1427
    %v1488 = vpack.c.b16 %v1432, %v1428
    %v1489 = vpack.c.b16 %v1437, %v1433
    %v1490 = vpack.c.b16 %v1438, %v1434
    %v1491 = vpack.c.b16 %v1439, %v1435
    %v1492 = vpack.c.b16 %v1440, %v1436
    %v1493 = vpack.c.b16 %v1445, %v1441
    %v1494 = vpack.c.b16 %v1446, %v1442
    %v1495 = vpack.c.b16 %v1447, %v1443
    %v1496 = vpack.c.b16 %v1448, %v1444
    %v1497 = vpack.c.b16 %v1453, %v1449
    %v1498 = vpack.c.b16 %v1454, %v1450
    %v1499 = vpack.c.b16 %v1455, %v1451
    %v1500 = vpack.c.b16 %v1456, %v1452
    %v1501 = vpack.c.b16 %v1461, %v1457
    %v1502 = vpack.c.b16 %v1462, %v1458
    %v1503 = vpack.c.b16 %v1463, %v1459
    %v1504 = vpack.c.b16 %v1464, %v1460
    %v1505 = vpack.c.b16 %v1469, %v1465
    %v1506 = vpack.c.b16 %v1470, %v1466
    %v1507 = vpack.c.b16 %v1471, %v1467
    %v1508 = vpack.c.b16 %v1472, %v1468
    %v1509 = vpack.c.b16 %v1477, %v1473
    %v1510 = vpack.c.b16 %v1478, %v1474
    %v1511 = vpack.c.b16 %v1479, %v1475
    %v1512 = vpack.c.b16 %v1480, %v1476
    %1545 = vmatprep.subr.bf16.mxu0 %v1482
    %1546 = vmatpush1.bf16.msra.mxu0 %v1481
    %1547 = vmatprep.subr.bf16.mxu0 %v1486
    %1548 = vmatpush1.bf16.msra.mxu0 %v1485
    %1549 = vmatprep.subr.bf16.mxu0 %v1490
    %1550 = vmatpush1.bf16.msra.mxu0 %v1489
    %1551 = vmatprep.subr.bf16.mxu0 %v1494
    %1552 = vmatpush1.bf16.msra.mxu0 %v1493
    %1553 = vmatprep.subr.bf16.mxu0 %v1498
    %1554 = vmatpush1.bf16.msra.mxu0 %v1497
    %1555 = vmatprep.subr.bf16.mxu0 %v1502
    %1556 = vmatpush1.bf16.msra.mxu0 %v1501
    %1557 = vmatprep.subr.bf16.mxu0 %v1506
    %1558 = vmatpush1.bf16.msra.mxu0 %v1505
    %1559 = vmatprep.subr.bf16.mxu0 %v1510
    %1560 = vmatpush1.bf16.msra.mxu0 %v1509
    %1561 = vmatprep.subr.bf16.mxu0 0
    %1562 = vmatpush1.bf16.msra.mxu0 0
    %1563 = vmatprep.subr.bf16.mxu0 0
    %1564 = vmatpush1.bf16.msra.mxu0 0
    %1565 = vmatprep.subr.bf16.mxu0 0
    %1566 = vmatpush1.bf16.msra.mxu0 0
    %1567 = vmatprep.subr.bf16.mxu0 0
    %1568 = vmatpush1.bf16.msra.mxu0 0
    %1569 = vmatprep.subr.bf16.mxu0 0
    %1570 = vmatpush1.bf16.msra.mxu0 0
    %1571 = vmatprep.subr.bf16.mxu0 0
    %1572 = vmatpush1.bf16.msra.mxu0 0
    %1573 = vmatprep.subr.bf16.mxu0 0
    %1574 = vmatpush1.bf16.msra.mxu0 0
    %1575 = vmatprep.subr.bf16.mxu0 0
    %1576 = vmatpush1.bf16.msra.mxu0 0
    %1577 = vmatprep.mubr.bf16.mxu0 0
    %1578 = vmatmul.mubr.bf16.gmra.mrb[0].mxu0 %v1352
    %v1579 = vpop.f32.mrb[0].mxu0
    %v1580 = vadd.f32 0.0, %v1579
    %v1581 = vpop.f32.mrb[0].mxu0
    %v1582 = vadd.f32 0.0, %v1581
    %v1583 = vpop.f32.mrb[0].mxu0
    %v1584 = vpop.f32.mrb[0].mxu0
    %1585 = vdwg.mxu0
    %1586 = vmatprep.subr.bf16.mxu0 %v1484
    %1587 = vmatpush1.bf16.msra.mxu0 %v1483
    %1588 = vmatprep.subr.bf16.mxu0 %v1488
    %1589 = vmatpush1.bf16.msra.mxu0 %v1487
    %1590 = vmatprep.subr.bf16.mxu0 %v1492
    %1591 = vmatpush1.bf16.msra.mxu0 %v1491
    %1592 = vmatprep.subr.bf16.mxu0 %v1496
    %1593 = vmatpush1.bf16.msra.mxu0 %v1495
    %1594 = vmatprep.subr.bf16.mxu0 %v1500
    %1595 = vmatpush1.bf16.msra.mxu0 %v1499
    %1596 = vmatprep.subr.bf16.mxu0 %v1504
    %1597 = vmatpush1.bf16.msra.mxu0 %v1503
    %1598 = vmatprep.subr.bf16.mxu0 %v1508
    %1599 = vmatpush1.bf16.msra.mxu0 %v1507
    %1600 = vmatprep.subr.bf16.mxu0 %v1512
    %1601 = vmatpush1.bf16.msra.mxu0 %v1511
    %1602 = vmatprep.subr.bf16.mxu0 0
    %1603 = vmatpush1.bf16.msra.mxu0 0
    %1604 = vmatprep.subr.bf16.mxu0 0
    %1605 = vmatpush1.bf16.msra.mxu0 0
    %1606 = vmatprep.subr.bf16.mxu0 0
    %1607 = vmatpush1.bf16.msra.mxu0 0
    %1608 = vmatprep.subr.bf16.mxu0 0
    %1609 = vmatpush1.bf16.msra.mxu0 0
    %1610 = vmatprep.subr.bf16.mxu0 0
    %1611 = vmatpush1.bf16.msra.mxu0 0
    %1612 = vmatprep.subr.bf16.mxu0 0
    %1613 = vmatpush1.bf16.msra.mxu0 0
    %1614 = vmatprep.subr.bf16.mxu0 0
    %1615 = vmatpush1.bf16.msra.mxu0 0
    %1616 = vmatprep.subr.bf16.mxu0 0
    %1617 = vmatpush1.bf16.msra.mxu0 0
    %1618 = vmatprep.mubr.bf16.mxu0 0
    %1619 = vmatmul.mubr.bf16.gmra.mrb[0].mxu0 %v1352
    %v1620 = vpop.f32.mrb[0].mxu0
    %v1621 = vadd.f32 0.0, %v1620
    %v1622 = vpop.f32.mrb[0].mxu0
    %v1623 = vadd.f32 0.0, %v1622
    %v1624 = vpop.f32.mrb[0].mxu0
    %v1625 = vpop.f32.mrb[0].mxu0
    %1626 = vdwg.mxu0
    %v1627 = vadd.f32 %v1348, %v1580
    %v1628 = vadd.f32 %v1349, %v1582
    %v1629 = vadd.f32 %v1350, %v1621
    %v1630 = vadd.f32 %v1351, %v1623
    %v1631 = vxor.u32 %v1627, 2147483648
    %v1632 = vmul.f32 %v1631, 1.442695
    %v1633 = vpow.pop %v1632
    %v1634 = vadd.f32 %v1633, 1.0
    %v1635 = vrcp.pop %v1634
    %v1636 = vmul.f32 1.0, %v1635
    %v1637 = vxor.u32 %v1628, 2147483648
    %v1638 = vmul.f32 %v1637, 1.442695
    %v1639 = vpow.pop %v1638
    %v1640 = vadd.f32 %v1639, 1.0
    %v1641 = vrcp.pop %v1640
    %v1642 = vmul.f32 1.0, %v1641
    %v1643 = vtanh.pop %v1629
    %v1644 = vxor.u32 %v1630, 2147483648
    %v1645 = vmul.f32 %v1644, 1.442695
    %v1646 = vpow.pop %v1645
    %v1647 = vadd.f32 %v1646, 1.0
    %v1648 = vrcp.pop %v1647
    %v1649 = vmul.f32 1.0, %v1648
    %v1650 = vld [vmem:[#allocation4] sm:$0xff]
    %v1651 = vmul.f32 %v1642, %v1650
    %v1652 = vmul.f32 %v1636, %v1643
    %v1653 = vadd.f32 %v1651, %v1652
    %v1654 = vtanh.pop %v1653
    %v1655 = vmul.f32 %v1649, %v1654
    %1656 = vst [vmem:[#allocation4] sm:$0xff] %v1653
    %v1657 = vpack.c.bf16 %v1655, %v1655
    %1658 = vst [vmem:[#allocation3] sm:$0xf] %v1657
    %s1659 = scalar_lea.vmem [#allocation13], 8
    %1660 = vst [vmem:[%s1659] sm:$0xf] %v1657
    %v1661 = vld [vmem:[#allocation2 + $0x60] sm:$0xff]
    %v1662 = vld [vmem:[#allocation2 + $0x68] sm:$0xff]
    %v1663 = vld [vmem:[#allocation2 + $0x70] sm:$0xff]
    %v1664 = vld [vmem:[#allocation2 + $0x78] sm:$0xff]
    %v1665 = vld [vmem:[#allocation3] sm:$0xf]
    %v1666 = vld [vmem:[#allocation10] sm:$0xff]
    %v1667 = vld [vmem:[#allocation10 + $0x8] sm:$0xff]
    %v1668 = vld [vmem:[#allocation10 + $0x10] sm:$0xff]
    %v1669 = vld [vmem:[#allocation10 + $0x18] sm:$0xff]
    %v1670 = vld [vmem:[#allocation10 + $0x20] sm:$0xff]
    %v1671 = vld [vmem:[#allocation10 + $0x28] sm:$0xff]
    %v1672 = vld [vmem:[#allocation10 + $0x30] sm:$0xff]
    %v1673 = vld [vmem:[#allocation10 + $0x38] sm:$0xff]
    %v1674 = vld [vmem:[#allocation10 + $0x40] sm:$0xff]
    %v1675 = vld [vmem:[#allocation10 + $0x48] sm:$0xff]
    %v1676 = vld [vmem:[#allocation10 + $0x50] sm:$0xff]
    %v1677 = vld [vmem:[#allocation10 + $0x58] sm:$0xff]
    %v1678 = vld [vmem:[#allocation10 + $0x60] sm:$0xff]
    %v1679 = vld [vmem:[#allocation10 + $0x68] sm:$0xff]
    %v1680 = vld [vmem:[#allocation10 + $0x70] sm:$0xff]
    %v1681 = vld [vmem:[#allocation10 + $0x78] sm:$0xff]
    %v1682 = vld [vmem:[#allocation10 + $0x80] sm:$0xff]
    %v1683 = vld [vmem:[#allocation10 + $0x88] sm:$0xff]
    %v1684 = vld [vmem:[#allocation10 + $0x90] sm:$0xff]
    %v1685 = vld [vmem:[#allocation10 + $0x98] sm:$0xff]
    %v1686 = vld [vmem:[#allocation10 + $0xa0] sm:$0xff]
    %v1687 = vld [vmem:[#allocation10 + $0xa8] sm:$0xff]
    %v1688 = vld [vmem:[#allocation10 + $0xb0] sm:$0xff]
    %v1689 = vld [vmem:[#allocation10 + $0xb8] sm:$0xff]
    %v1690 = vld [vmem:[#allocation10 + $0xc0] sm:$0xff]
    %v1691 = vld [vmem:[#allocation10 + $0xc8] sm:$0xff]
    %v1692 = vld [vmem:[#allocation10 + $0xd0] sm:$0xff]
    %v1693 = vld [vmem:[#allocation10 + $0xd8] sm:$0xff]
    %v1694 = vld [vmem:[#allocation10 + $0xe0] sm:$0xff]
    %v1695 = vld [vmem:[#allocation10 + $0xe8] sm:$0xff]
    %v1696 = vld [vmem:[#allocation10 + $0xf0] sm:$0xff]
    %v1697 = vld [vmem:[#allocation10 + $0xf8] sm:$0xff]
    %v1730 = vunpack.c.l.b16 %v1666
    %v1731 = vunpack.c.h.b16 %v1666
    %v1732 = vunpack.c.l.b16 %v1667
    %v1733 = vunpack.c.h.b16 %v1667
    %v1734 = vunpack.c.l.b16 %v1668
    %v1735 = vunpack.c.h.b16 %v1668
    %v1736 = vunpack.c.l.b16 %v1669
    %v1737 = vunpack.c.h.b16 %v1669
    %v1738 = vunpack.c.l.b16 %v1670
    %v1739 = vunpack.c.h.b16 %v1670
    %v1740 = vunpack.c.l.b16 %v1671
    %v1741 = vunpack.c.h.b16 %v1671
    %v1742 = vunpack.c.l.b16 %v1672
    %v1743 = vunpack.c.h.b16 %v1672
    %v1744 = vunpack.c.l.b16 %v1673
    %v1745 = vunpack.c.h.b16 %v1673
    %v1746 = vunpack.c.l.b16 %v1674
    %v1747 = vunpack.c.h.b16 %v1674
    %v1748 = vunpack.c.l.b16 %v1675
    %v1749 = vunpack.c.h.b16 %v1675
    %v1750 = vunpack.c.l.b16 %v1676
    %v1751 = vunpack.c.h.b16 %v1676
    %v1752 = vunpack.c.l.b16 %v1677
    %v1753 = vunpack.c.h.b16 %v1677
    %v1754 = vunpack.c.l.b16 %v1678
    %v1755 = vunpack.c.h.b16 %v1678
    %v1756 = vunpack.c.l.b16 %v1679
    %v1757 = vunpack.c.h.b16 %v1679
    %v1758 = vunpack.c.l.b16 %v1680
    %v1759 = vunpack.c.h.b16 %v1680
    %v1760 = vunpack.c.l.b16 %v1681
    %v1761 = vunpack.c.h.b16 %v1681
    %v1762 = vunpack.c.l.b16 %v1682
    %v1763 = vunpack.c.h.b16 %v1682
    %v1764 = vunpack.c.l.b16 %v1683
    %v1765 = vunpack.c.h.b16 %v1683
    %v1766 = vunpack.c.l.b16 %v1684
    %v1767 = vunpack.c.h.b16 %v1684
    %v1768 = vunpack.c.l.b16 %v1685
    %v1769 = vunpack.c.h.b16 %v1685
    %v1770 = vunpack.c.l.b16 %v1686
    %v1771 = vunpack.c.h.b16 %v1686
    %v1772 = vunpack.c.l.b16 %v1687
    %v1773 = vunpack.c.h.b16 %v1687
    %v1774 = vunpack.c.l.b16 %v1688
    %v1775 = vunpack.c.h.b16 %v1688
    %v1776 = vunpack.c.l.b16 %v1689
    %v1777 = vunpack.c.h.b16 %v1689
    %v1778 = vunpack.c.l.b16 %v1690
    %v1779 = vunpack.c.h.b16 %v1690
    %v1780 = vunpack.c.l.b16 %v1691
    %v1781 = vunpack.c.h.b16 %v1691
    %v1782 = vunpack.c.l.b16 %v1692
    %v1783 = vunpack.c.h.b16 %v1692
    %v1784 = vunpack.c.l.b16 %v1693
    %v1785 = vunpack.c.h.b16 %v1693
    %v1786 = vunpack.c.l.b16 %v1694
    %v1787 = vunpack.c.h.b16 %v1694
    %v1788 = vunpack.c.l.b16 %v1695
    %v1789 = vunpack.c.h.b16 %v1695
    %v1790 = vunpack.c.l.b16 %v1696
    %v1791 = vunpack.c.h.b16 %v1696
    %v1792 = vunpack.c.l.b16 %v1697
    %v1793 = vunpack.c.h.b16 %v1697
    %v1794 = vpack.c.b16 %v1734, %v1730
    %v1795 = vpack.c.b16 %v1735, %v1731
    %v1796 = vpack.c.b16 %v1736, %v1732
    %v1797 = vpack.c.b16 %v1737, %v1733
    %v1798 = vpack.c.b16 %v1742, %v1738
    %v1799 = vpack.c.b16 %v1743, %v1739
    %v1800 = vpack.c.b16 %v1744, %v1740
    %v1801 = vpack.c.b16 %v1745, %v1741
    %v1802 = vpack.c.b16 %v1750, %v1746
    %v1803 = vpack.c.b16 %v1751, %v1747
    %v1804 = vpack.c.b16 %v1752, %v1748
    %v1805 = vpack.c.b16 %v1753, %v1749
    %v1806 = vpack.c.b16 %v1758, %v1754
    %v1807 = vpack.c.b16 %v1759, %v1755
    %v1808 = vpack.c.b16 %v1760, %v1756
    %v1809 = vpack.c.b16 %v1761, %v1757
    %v1810 = vpack.c.b16 %v1766, %v1762
    %v1811 = vpack.c.b16 %v1767, %v1763
    %v1812 = vpack.c.b16 %v1768, %v1764
    %v1813 = vpack.c.b16 %v1769, %v1765
    %v1814 = vpack.c.b16 %v1774, %v1770
    %v1815 = vpack.c.b16 %v1775, %v1771
    %v1816 = vpack.c.b16 %v1776, %v1772
    %v1817 = vpack.c.b16 %v1777, %v1773
    %v1818 = vpack.c.b16 %v1782, %v1778
    %v1819 = vpack.c.b16 %v1783, %v1779
    %v1820 = vpack.c.b16 %v1784, %v1780
    %v1821 = vpack.c.b16 %v1785, %v1781
    %v1822 = vpack.c.b16 %v1790, %v1786
    %v1823 = vpack.c.b16 %v1791, %v1787
    %v1824 = vpack.c.b16 %v1792, %v1788
    %v1825 = vpack.c.b16 %v1793, %v1789
    %1858 = vmatprep.subr.bf16.mxu0 %v1795
    %1859 = vmatpush1.bf16.msra.mxu0 %v1794
    %1860 = vmatprep.subr.bf16.mxu0 %v1799
    %1861 = vmatpush1.bf16.msra.mxu0 %v1798
    %1862 = vmatprep.subr.bf16.mxu0 %v1803
    %1863 = vmatpush1.bf16.msra.mxu0 %v1802
    %1864 = vmatprep.subr.bf16.mxu0 %v1807
    %1865 = vmatpush1.bf16.msra.mxu0 %v1806
    %1866 = vmatprep.subr.bf16.mxu0 %v1811
    %1867 = vmatpush1.bf16.msra.mxu0 %v1810
    %1868 = vmatprep.subr.bf16.mxu0 %v1815
    %1869 = vmatpush1.bf16.msra.mxu0 %v1814
    %1870 = vmatprep.subr.bf16.mxu0 %v1819
    %1871 = vmatpush1.bf16.msra.mxu0 %v1818
    %1872 = vmatprep.subr.bf16.mxu0 %v1823
    %1873 = vmatpush1.bf16.msra.mxu0 %v1822
    %1874 = vmatprep.subr.bf16.mxu0 0
    %1875 = vmatpush1.bf16.msra.mxu0 0
    %1876 = vmatprep.subr.bf16.mxu0 0
    %1877 = vmatpush1.bf16.msra.mxu0 0
    %1878 = vmatprep.subr.bf16.mxu0 0
    %1879 = vmatpush1.bf16.msra.mxu0 0
    %1880 = vmatprep.subr.bf16.mxu0 0
    %1881 = vmatpush1.bf16.msra.mxu0 0
    %1882 = vmatprep.subr.bf16.mxu0 0
    %1883 = vmatpush1.bf16.msra.mxu0 0
    %1884 = vmatprep.subr.bf16.mxu0 0
    %1885 = vmatpush1.bf16.msra.mxu0 0
    %1886 = vmatprep.subr.bf16.mxu0 0
    %1887 = vmatpush1.bf16.msra.mxu0 0
    %1888 = vmatprep.subr.bf16.mxu0 0
    %1889 = vmatpush1.bf16.msra.mxu0 0
    %1890 = vmatprep.mubr.bf16.mxu0 0
    %1891 = vmatmul.mubr.bf16.gmra.mrb[0].mxu0 %v1665
    %v1892 = vpop.f32.mrb[0].mxu0
    %v1893 = vadd.f32 0.0, %v1892
    %v1894 = vpop.f32.mrb[0].mxu0
    %v1895 = vadd.f32 0.0, %v1894
    %v1896 = vpop.f32.mrb[0].mxu0
    %v1897 = vpop.f32.mrb[0].mxu0
    %1898 = vdwg.mxu0
    %1899 = vmatprep.subr.bf16.mxu0 %v1797
    %1900 = vmatpush1.bf16.msra.mxu0 %v1796
    %1901 = vmatprep.subr.bf16.mxu0 %v1801
    %1902 = vmatpush1.bf16.msra.mxu0 %v1800
    %1903 = vmatprep.subr.bf16.mxu0 %v1805
    %1904 = vmatpush1.bf16.msra.mxu0 %v1804
    %1905 = vmatprep.subr.bf16.mxu0 %v1809
    %1906 = vmatpush1.bf16.msra.mxu0 %v1808
    %1907 = vmatprep.subr.bf16.mxu0 %v1813
    %1908 = vmatpush1.bf16.msra.mxu0 %v1812
    %1909 = vmatprep.subr.bf16.mxu0 %v1817
    %1910 = vmatpush1.bf16.msra.mxu0 %v1816
    %1911 = vmatprep.subr.bf16.mxu0 %v1821
    %1912 = vmatpush1.bf16.msra.mxu0 %v1820
    %1913 = vmatprep.subr.bf16.mxu0 %v1825
    %1914 = vmatpush1.bf16.msra.mxu0 %v1824
    %1915 = vmatprep.subr.bf16.mxu0 0
    %1916 = vmatpush1.bf16.msra.mxu0 0
    %1917 = vmatprep.subr.bf16.mxu0 0
    %1918 = vmatpush1.bf16.msra.mxu0 0
    %1919 = vmatprep.subr.bf16.mxu0 0
    %1920 = vmatpush1.bf16.msra.mxu0 0
    %1921 = vmatprep.subr.bf16.mxu0 0
    %1922 = vmatpush1.bf16.msra.mxu0 0
    %1923 = vmatprep.subr.bf16.mxu0 0
    %1924 = vmatpush1.bf16.msra.mxu0 0
    %1925 = vmatprep.subr.bf16.mxu0 0
    %1926 = vmatpush1.bf16.msra.mxu0 0
    %1927 = vmatprep.subr.bf16.mxu0 0
    %1928 = vmatpush1.bf16.msra.mxu0 0
    %1929 = vmatprep.subr.bf16.mxu0 0
    %1930 = vmatpush1.bf16.msra.mxu0 0
    %1931 = vmatprep.mubr.bf16.mxu0 0
    %1932 = vmatmul.mubr.bf16.gmra.mrb[0].mxu0 %v1665
    %v1933 = vpop.f32.mrb[0].mxu0
    %v1934 = vadd.f32 0.0, %v1933
    %v1935 = vpop.f32.mrb[0].mxu0
    %v1936 = vadd.f32 0.0, %v1935
    %v1937 = vpop.f32.mrb[0].mxu0
    %v1938 = vpop.f32.mrb[0].mxu0
    %1939 = vdwg.mxu0
    %v1940 = vadd.f32 %v1661, %v1893
    %v1941 = vadd.f32 %v1662, %v1895
    %v1942 = vadd.f32 %v1663, %v1934
    %v1943 = vadd.f32 %v1664, %v1936
    %v1944 = vxor.u32 %v1940, 2147483648
    %v1945 = vmul.f32 %v1944, 1.442695
    %v1946 = vpow.pop %v1945
    %v1947 = vadd.f32 %v1946, 1.0
    %v1948 = vrcp.pop %v1947
    %v1949 = vmul.f32 1.0, %v1948
    %v1950 = vxor.u32 %v1941, 2147483648
    %v1951 = vmul.f32 %v1950, 1.442695
    %v1952 = vpow.pop %v1951
    %v1953 = vadd.f32 %v1952, 1.0
    %v1954 = vrcp.pop %v1953
    %v1955 = vmul.f32 1.0, %v1954
    %v1956 = vtanh.pop %v1942
    %v1957 = vxor.u32 %v1943, 2147483648
    %v1958 = vmul.f32 %v1957, 1.442695
    %v1959 = vpow.pop %v1958
    %v1960 = vadd.f32 %v1959, 1.0
    %v1961 = vrcp.pop %v1960
    %v1962 = vmul.f32 1.0, %v1961
    %v1963 = vld [vmem:[#allocation4] sm:$0xff]
    %v1964 = vmul.f32 %v1955, %v1963
    %v1965 = vmul.f32 %v1949, %v1956
    %v1966 = vadd.f32 %v1964, %v1965
    %v1967 = vtanh.pop %v1966
    %v1968 = vmul.f32 %v1962, %v1967
    %1969 = vst [vmem:[#allocation4] sm:$0xff] %v1966
    %v1970 = vpack.c.bf16 %v1968, %v1968
    %1971 = vst [vmem:[#allocation3] sm:$0xf] %v1970
    %s1972 = scalar_lea.vmem [#allocation13], 12
    %1973 = vst [vmem:[%s1972] sm:$0xf] %v1970
    %v1974 = vld [vmem:[#allocation2 + $0x80] sm:$0xff]
    %v1975 = vld [vmem:[#allocation2 + $0x88] sm:$0xff]
    %v1976 = vld [vmem:[#allocation2 + $0x90] sm:$0xff]
    %v1977 = vld [vmem:[#allocation2 + $0x98] sm:$0xff]
    %v1978 = vld [vmem:[#allocation3] sm:$0xf]
    %v1979 = vld [vmem:[#allocation10] sm:$0xff]
    %v1980 = vld [vmem:[#allocation10 + $0x8] sm:$0xff]
    %v1981 = vld [vmem:[#allocation10 + $0x10] sm:$0xff]
    %v1982 = vld [vmem:[#allocation10 + $0x18] sm:$0xff]
    %v1983 = vld [vmem:[#allocation10 + $0x20] sm:$0xff]
    %v1984 = vld [vmem:[#allocation10 + $0x28] sm:$0xff]
    %v1985 = vld [vmem:[#allocation10 + $0x30] sm:$0xff]
    %v1986 = vld [vmem:[#allocation10 + $0x38] sm:$0xff]
    %v1987 = vld [vmem:[#allocation10 + $0x40] sm:$0xff]
    %v1988 = vld [vmem:[#allocation10 + $0x48] sm:$0xff]
    %v1989 = vld [vmem:[#allocation10 + $0x50] sm:$0xff]
    %v1990 = vld [vmem:[#allocation10 + $0x58] sm:$0xff]
    %v1991 = vld [vmem:[#allocation10 + $0x60] sm:$0xff]
    %v1992 = vld [vmem:[#allocation10 + $0x68] sm:$0xff]
    %v1993 = vld [vmem:[#allocation10 + $0x70] sm:$0xff]
    %v1994 = vld [vmem:[#allocation10 + $0x78] sm:$0xff]
    %v1995 = vld [vmem:[#allocation10 + $0x80] sm:$0xff]
    %v1996 = vld [vmem:[#allocation10 + $0x88] sm:$0xff]
    %v1997 = vld [vmem:[#allocation10 + $0x90] sm:$0xff]
    %v1998 = vld [vmem:[#allocation10 + $0x98] sm:$0xff]
    %v1999 = vld [vmem:[#allocation10 + $0xa0] sm:$0xff]
    %v2000 = vld [vmem:[#allocation10 + $0xa8] sm:$0xff]
    %v2001 = vld [vmem:[#allocation10 + $0xb0] sm:$0xff]
    %v2002 = vld [vmem:[#allocation10 + $0xb8] sm:$0xff]
    %v2003 = vld [vmem:[#allocation10 + $0xc0] sm:$0xff]
    %v2004 = vld [vmem:[#allocation10 + $0xc8] sm:$0xff]
    %v2005 = vld [vmem:[#allocation10 + $0xd0] sm:$0xff]
    %v2006 = vld [vmem:[#allocation10 + $0xd8] sm:$0xff]
    %v2007 = vld [vmem:[#allocation10 + $0xe0] sm:$0xff]
    %v2008 = vld [vmem:[#allocation10 + $0xe8] sm:$0xff]
    %v2009 = vld [vmem:[#allocation10 + $0xf0] sm:$0xff]
    %v2010 = vld [vmem:[#allocation10 + $0xf8] sm:$0xff]
    %v2043 = vunpack.c.l.b16 %v1979
    %v2044 = vunpack.c.h.b16 %v1979
    %v2045 = vunpack.c.l.b16 %v1980
    %v2046 = vunpack.c.h.b16 %v1980
    %v2047 = vunpack.c.l.b16 %v1981
    %v2048 = vunpack.c.h.b16 %v1981
    %v2049 = vunpack.c.l.b16 %v1982
    %v2050 = vunpack.c.h.b16 %v1982
    %v2051 = vunpack.c.l.b16 %v1983
    %v2052 = vunpack.c.h.b16 %v1983
    %v2053 = vunpack.c.l.b16 %v1984
    %v2054 = vunpack.c.h.b16 %v1984
    %v2055 = vunpack.c.l.b16 %v1985
    %v2056 = vunpack.c.h.b16 %v1985
    %v2057 = vunpack.c.l.b16 %v1986
    %v2058 = vunpack.c.h.b16 %v1986
    %v2059 = vunpack.c.l.b16 %v1987
    %v2060 = vunpack.c.h.b16 %v1987
    %v2061 = vunpack.c.l.b16 %v1988
    %v2062 = vunpack.c.h.b16 %v1988
    %v2063 = vunpack.c.l.b16 %v1989
    %v2064 = vunpack.c.h.b16 %v1989
    %v2065 = vunpack.c.l.b16 %v1990
    %v2066 = vunpack.c.h.b16 %v1990
    %v2067 = vunpack.c.l.b16 %v1991
    %v2068 = vunpack.c.h.b16 %v1991
    %v2069 = vunpack.c.l.b16 %v1992
    %v2070 = vunpack.c.h.b16 %v1992
    %v2071 = vunpack.c.l.b16 %v1993
    %v2072 = vunpack.c.h.b16 %v1993
    %v2073 = vunpack.c.l.b16 %v1994
    %v2074 = vunpack.c.h.b16 %v1994
    %v2075 = vunpack.c.l.b16 %v1995
    %v2076 = vunpack.c.h.b16 %v1995
    %v2077 = vunpack.c.l.b16 %v1996
    %v2078 = vunpack.c.h.b16 %v1996
    %v2079 = vunpack.c.l.b16 %v1997
    %v2080 = vunpack.c.h.b16 %v1997
    %v2081 = vunpack.c.l.b16 %v1998
    %v2082 = vunpack.c.h.b16 %v1998
    %v2083 = vunpack.c.l.b16 %v1999
    %v2084 = vunpack.c.h.b16 %v1999
    %v2085 = vunpack.c.l.b16 %v2000
    %v2086 = vunpack.c.h.b16 %v2000
    %v2087 = vunpack.c.l.b16 %v2001
    %v2088 = vunpack.c.h.b16 %v2001
    %v2089 = vunpack.c.l.b16 %v2002
    %v2090 = vunpack.c.h.b16 %v2002
    %v2091 = vunpack.c.l.b16 %v2003
    %v2092 = vunpack.c.h.b16 %v2003
    %v2093 = vunpack.c.l.b16 %v2004
    %v2094 = vunpack.c.h.b16 %v2004
    %v2095 = vunpack.c.l.b16 %v2005
    %v2096 = vunpack.c.h.b16 %v2005
    %v2097 = vunpack.c.l.b16 %v2006
    %v2098 = vunpack.c.h.b16 %v2006
    %v2099 = vunpack.c.l.b16 %v2007
    %v2100 = vunpack.c.h.b16 %v2007
    %v2101 = vunpack.c.l.b16 %v2008
    %v2102 = vunpack.c.h.b16 %v2008
    %v2103 = vunpack.c.l.b16 %v2009
    %v2104 = vunpack.c.h.b16 %v2009
    %v2105 = vunpack.c.l.b16 %v2010
    %v2106 = vunpack.c.h.b16 %v2010
    %v2107 = vpack.c.b16 %v2047, %v2043
    %v2108 = vpack.c.b16 %v2048, %v2044
    %v2109 = vpack.c.b16 %v2049, %v2045
    %v2110 = vpack.c.b16 %v2050, %v2046
    %v2111 = vpack.c.b16 %v2055, %v2051
    %v2112 = vpack.c.b16 %v2056, %v2052
    %v2113 = vpack.c.b16 %v2057, %v2053
    %v2114 = vpack.c.b16 %v2058, %v2054
    %v2115 = vpack.c.b16 %v2063, %v2059
    %v2116 = vpack.c.b16 %v2064, %v2060
    %v2117 = vpack.c.b16 %v2065, %v2061
    %v2118 = vpack.c.b16 %v2066, %v2062
    %v2119 = vpack.c.b16 %v2071, %v2067
    %v2120 = vpack.c.b16 %v2072, %v2068
    %v2121 = vpack.c.b16 %v2073, %v2069
    %v2122 = vpack.c.b16 %v2074, %v2070
    %v2123 = vpack.c.b16 %v2079, %v2075
    %v2124 = vpack.c.b16 %v2080, %v2076
    %v2125 = vpack.c.b16 %v2081, %v2077
    %v2126 = vpack.c.b16 %v2082, %v2078
    %v2127 = vpack.c.b16 %v2087, %v2083
    %v2128 = vpack.c.b16 %v2088, %v2084
    %v2129 = vpack.c.b16 %v2089, %v2085
    %v2130 = vpack.c.b16 %v2090, %v2086
    %v2131 = vpack.c.b16 %v2095, %v2091
    %v2132 = vpack.c.b16 %v2096, %v2092
    %v2133 = vpack.c.b16 %v2097, %v2093
    %v2134 = vpack.c.b16 %v2098, %v2094
    %v2135 = vpack.c.b16 %v2103, %v2099
    %v2136 = vpack.c.b16 %v2104, %v2100
    %v2137 = vpack.c.b16 %v2105, %v2101
    %v2138 = vpack.c.b16 %v2106, %v2102
    %2171 = vmatprep.subr.bf16.mxu0 %v2108
    %2172 = vmatpush1.bf16.msra.mxu0 %v2107
    %2173 = vmatprep.subr.bf16.mxu0 %v2112
    %2174 = vmatpush1.bf16.msra.mxu0 %v2111
    %2175 = vmatprep.subr.bf16.mxu0 %v2116
    %2176 = vmatpush1.bf16.msra.mxu0 %v2115
    %2177 = vmatprep.subr.bf16.mxu0 %v2120
    %2178 = vmatpush1.bf16.msra.mxu0 %v2119
    %2179 = vmatprep.subr.bf16.mxu0 %v2124
    %2180 = vmatpush1.bf16.msra.mxu0 %v2123
    %2181 = vmatprep.subr.bf16.mxu0 %v2128
    %2182 = vmatpush1.bf16.msra.mxu0 %v2127
    %2183 = vmatprep.subr.bf16.mxu0 %v2132
    %2184 = vmatpush1.bf16.msra.mxu0 %v2131
    %2185 = vmatprep.subr.bf16.mxu0 %v2136
    %2186 = vmatpush1.bf16.msra.mxu0 %v2135
    %2187 = vmatprep.subr.bf16.mxu0 0
    %2188 = vmatpush1.bf16.msra.mxu0 0
    %2189 = vmatprep.subr.bf16.mxu0 0
    %2190 = vmatpush1.bf16.msra.mxu0 0
    %2191 = vmatprep.subr.bf16.mxu0 0
    %2192 = vmatpush1.bf16.msra.mxu0 0
    %2193 = vmatprep.subr.bf16.mxu0 0
    %2194 = vmatpush1.bf16.msra.mxu0 0
    %2195 = vmatprep.subr.bf16.mxu0 0
    %2196 = vmatpush1.bf16.msra.mxu0 0
    %2197 = vmatprep.subr.bf16.mxu0 0
    %2198 = vmatpush1.bf16.msra.mxu0 0
    %2199 = vmatprep.subr.bf16.mxu0 0
    %2200 = vmatpush1.bf16.msra.mxu0 0
    %2201 = vmatprep.subr.bf16.mxu0 0
    %2202 = vmatpush1.bf16.msra.mxu0 0
    %2203 = vmatprep.mubr.bf16.mxu0 0
    %2204 = vmatmul.mubr.bf16.gmra.mrb[0].mxu0 %v1978
    %v2205 = vpop.f32.mrb[0].mxu0
    %v2206 = vadd.f32 0.0, %v2205
    %v2207 = vpop.f32.mrb[0].mxu0
    %v2208 = vadd.f32 0.0, %v2207
    %v2209 = vpop.f32.mrb[0].mxu0
    %v2210 = vpop.f32.mrb[0].mxu0
    %2211 = vdwg.mxu0
    %2212 = vmatprep.subr.bf16.mxu0 %v2110
    %2213 = vmatpush1.bf16.msra.mxu0 %v2109
    %2214 = vmatprep.subr.bf16.mxu0 %v2114
    %2215 = vmatpush1.bf16.msra.mxu0 %v2113
    %2216 = vmatprep.subr.bf16.mxu0 %v2118
    %2217 = vmatpush1.bf16.msra.mxu0 %v2117
    %2218 = vmatprep.subr.bf16.mxu0 %v2122
    %2219 = vmatpush1.bf16.msra.mxu0 %v2121
    %2220 = vmatprep.subr.bf16.mxu0 %v2126
    %2221 = vmatpush1.bf16.msra.mxu0 %v2125
    %2222 = vmatprep.subr.bf16.mxu0 %v2130
    %2223 = vmatpush1.bf16.msra.mxu0 %v2129
    %2224 = vmatprep.subr.bf16.mxu0 %v2134
    %2225 = vmatpush1.bf16.msra.mxu0 %v2133
    %2226 = vmatprep.subr.bf16.mxu0 %v2138
    %2227 = vmatpush1.bf16.msra.mxu0 %v2137
    %2228 = vmatprep.subr.bf16.mxu0 0
    %2229 = vmatpush1.bf16.msra.mxu0 0
    %2230 = vmatprep.subr.bf16.mxu0 0
    %2231 = vmatpush1.bf16.msra.mxu0 0
    %2232 = vmatprep.subr.bf16.mxu0 0
    %2233 = vmatpush1.bf16.msra.mxu0 0
    %2234 = vmatprep.subr.bf16.mxu0 0
    %2235 = vmatpush1.bf16.msra.mxu0 0
    %2236 = vmatprep.subr.bf16.mxu0 0
    %2237 = vmatpush1.bf16.msra.mxu0 0
    %2238 = vmatprep.subr.bf16.mxu0 0
    %2239 = vmatpush1.bf16.msra.mxu0 0
    %2240 = vmatprep.subr.bf16.mxu0 0
    %2241 = vmatpush1.bf16.msra.mxu0 0
    %2242 = vmatprep.subr.bf16.mxu0 0
    %2243 = vmatpush1.bf16.msra.mxu0 0
    %2244 = vmatprep.mubr.bf16.mxu0 0
    %2245 = vmatmul.mubr.bf16.gmra.mrb[0].mxu0 %v1978
    %v2246 = vpop.f32.mrb[0].mxu0
    %v2247 = vadd.f32 0.0, %v2246
    %v2248 = vpop.f32.mrb[0].mxu0
    %v2249 = vadd.f32 0.0, %v2248
    %v2250 = vpop.f32.mrb[0].mxu0
    %v2251 = vpop.f32.mrb[0].mxu0
    %2252 = vdwg.mxu0
    %v2253 = vadd.f32 %v1974, %v2206
    %v2254 = vadd.f32 %v1975, %v2208
    %v2255 = vadd.f32 %v1976, %v2247
    %v2256 = vadd.f32 %v1977, %v2249
    %v2257 = vxor.u32 %v2253, 2147483648
    %v2258 = vmul.f32 %v2257, 1.442695
    %v2259 = vpow.pop %v2258
    %v2260 = vadd.f32 %v2259, 1.0
    %v2261 = vrcp.pop %v2260
    %v2262 = vmul.f32 1.0, %v2261
    %v2263 = vxor.u32 %v2254, 2147483648
    %v2264 = vmul.f32 %v2263, 1.442695
    %v2265 = vpow.pop %v2264
    %v2266 = vadd.f32 %v2265, 1.0
    %v2267 = vrcp.pop %v2266
    %v2268 = vmul.f32 1.0, %v2267
    %v2269 = vtanh.pop %v2255
    %v2270 = vxor.u32 %v2256, 2147483648
    %v2271 = vmul.f32 %v2270, 1.442695
    %v2272 = vpow.pop %v2271
    %v2273 = vadd.f32 %v2272, 1.0
    %v2274 = vrcp.pop %v2273
    %v2275 = vmul.f32 1.0, %v2274
    %v2276 = vld [vmem:[#allocation4] sm:$0xff]
    %v2277 = vmul.f32 %v2268, %v2276
    %v2278 = vmul.f32 %v2262, %v2269
    %v2279 = vadd.f32 %v2277, %v2278
    %v2280 = vtanh.pop %v2279
    %v2281 = vmul.f32 %v2275, %v2280
    %2282 = vst [vmem:[#allocation4] sm:$0xff] %v2279
    %v2283 = vpack.c.bf16 %v2281, %v2281
    %2284 = vst [vmem:[#allocation3] sm:$0xf] %v2283
    %s2285 = scalar_lea.vmem [#allocation13], 16
    %2286 = vst [vmem:[%s2285] sm:$0xf] %v2283
    %v2287 = vld [vmem:[#allocation2 + $0xa0] sm:$0xff]
    %v2288 = vld [vmem:[#allocation2 + $0xa8] sm:$0xff]
    %v2289 = vld [vmem:[#allocation2 + $0xb0] sm:$0xff]
    %v2290 = vld [vmem:[#allocation2 + $0xb8] sm:$0xff]
    %v2291 = vld [vmem:[#allocation3] sm:$0xf]
    %v2292 = vld [vmem:[#allocation10] sm:$0xff]
    %v2293 = vld [vmem:[#allocation10 + $0x8] sm:$0xff]
    %v2294 = vld [vmem:[#allocation10 + $0x10] sm:$0xff]
    %v2295 = vld [vmem:[#allocation10 + $0x18] sm:$0xff]
    %v2296 = vld [vmem:[#allocation10 + $0x20] sm:$0xff]
    %v2297 = vld [vmem:[#allocation10 + $0x28] sm:$0xff]
    %v2298 = vld [vmem:[#allocation10 + $0x30] sm:$0xff]
    %v2299 = vld [vmem:[#allocation10 + $0x38] sm:$0xff]
    %v2300 = vld [vmem:[#allocation10 + $0x40] sm:$0xff]
    %v2301 = vld [vmem:[#allocation10 + $0x48] sm:$0xff]
    %v2302 = vld [vmem:[#allocation10 + $0x50] sm:$0xff]
    %v2303 = vld [vmem:[#allocation10 + $0x58] sm:$0xff]
    %v2304 = vld [vmem:[#allocation10 + $0x60] sm:$0xff]
    %v2305 = vld [vmem:[#allocation10 + $0x68] sm:$0xff]
    %v2306 = vld [vmem:[#allocation10 + $0x70] sm:$0xff]
    %v2307 = vld [vmem:[#allocation10 + $0x78] sm:$0xff]
    %v2308 = vld [vmem:[#allocation10 + $0x80] sm:$0xff]
    %v2309 = vld [vmem:[#allocation10 + $0x88] sm:$0xff]
    %v2310 = vld [vmem:[#allocation10 + $0x90] sm:$0xff]
    %v2311 = vld [vmem:[#allocation10 + $0x98] sm:$0xff]
    %v2312 = vld [vmem:[#allocation10 + $0xa0] sm:$0xff]
    %v2313 = vld [vmem:[#allocation10 + $0xa8] sm:$0xff]
    %v2314 = vld [vmem:[#allocation10 + $0xb0] sm:$0xff]
    %v2315 = vld [vmem:[#allocation10 + $0xb8] sm:$0xff]
    %v2316 = vld [vmem:[#allocation10 + $0xc0] sm:$0xff]
    %v2317 = vld [vmem:[#allocation10 + $0xc8] sm:$0xff]
    %v2318 = vld [vmem:[#allocation10 + $0xd0] sm:$0xff]
    %v2319 = vld [vmem:[#allocation10 + $0xd8] sm:$0xff]
    %v2320 = vld [vmem:[#allocation10 + $0xe0] sm:$0xff]
    %v2321 = vld [vmem:[#allocation10 + $0xe8] sm:$0xff]
    %v2322 = vld [vmem:[#allocation10 + $0xf0] sm:$0xff]
    %v2323 = vld [vmem:[#allocation10 + $0xf8] sm:$0xff]
    %v2356 = vunpack.c.l.b16 %v2292
    %v2357 = vunpack.c.h.b16 %v2292
    %v2358 = vunpack.c.l.b16 %v2293
    %v2359 = vunpack.c.h.b16 %v2293
    %v2360 = vunpack.c.l.b16 %v2294
    %v2361 = vunpack.c.h.b16 %v2294
    %v2362 = vunpack.c.l.b16 %v2295
    %v2363 = vunpack.c.h.b16 %v2295
    %v2364 = vunpack.c.l.b16 %v2296
    %v2365 = vunpack.c.h.b16 %v2296
    %v2366 = vunpack.c.l.b16 %v2297
    %v2367 = vunpack.c.h.b16 %v2297
    %v2368 = vunpack.c.l.b16 %v2298
    %v2369 = vunpack.c.h.b16 %v2298
    %v2370 = vunpack.c.l.b16 %v2299
    %v2371 = vunpack.c.h.b16 %v2299
    %v2372 = vunpack.c.l.b16 %v2300
    %v2373 = vunpack.c.h.b16 %v2300
    %v2374 = vunpack.c.l.b16 %v2301
    %v2375 = vunpack.c.h.b16 %v2301
    %v2376 = vunpack.c.l.b16 %v2302
    %v2377 = vunpack.c.h.b16 %v2302
    %v2378 = vunpack.c.l.b16 %v2303
    %v2379 = vunpack.c.h.b16 %v2303
    %v2380 = vunpack.c.l.b16 %v2304
    %v2381 = vunpack.c.h.b16 %v2304
    %v2382 = vunpack.c.l.b16 %v2305
    %v2383 = vunpack.c.h.b16 %v2305
    %v2384 = vunpack.c.l.b16 %v2306
    %v2385 = vunpack.c.h.b16 %v2306
    %v2386 = vunpack.c.l.b16 %v2307
    %v2387 = vunpack.c.h.b16 %v2307
    %v2388 = vunpack.c.l.b16 %v2308
    %v2389 = vunpack.c.h.b16 %v2308
    %v2390 = vunpack.c.l.b16 %v2309
    %v2391 = vunpack.c.h.b16 %v2309
    %v2392 = vunpack.c.l.b16 %v2310
    %v2393 = vunpack.c.h.b16 %v2310
    %v2394 = vunpack.c.l.b16 %v2311
    %v2395 = vunpack.c.h.b16 %v2311
    %v2396 = vunpack.c.l.b16 %v2312
    %v2397 = vunpack.c.h.b16 %v2312
    %v2398 = vunpack.c.l.b16 %v2313
    %v2399 = vunpack.c.h.b16 %v2313
    %v2400 = vunpack.c.l.b16 %v2314
    %v2401 = vunpack.c.h.b16 %v2314
    %v2402 = vunpack.c.l.b16 %v2315
    %v2403 = vunpack.c.h.b16 %v2315
    %v2404 = vunpack.c.l.b16 %v2316
    %v2405 = vunpack.c.h.b16 %v2316
    %v2406 = vunpack.c.l.b16 %v2317
    %v2407 = vunpack.c.h.b16 %v2317
    %v2408 = vunpack.c.l.b16 %v2318
    %v2409 = vunpack.c.h.b16 %v2318
    %v2410 = vunpack.c.l.b16 %v2319
    %v2411 = vunpack.c.h.b16 %v2319
    %v2412 = vunpack.c.l.b16 %v2320
    %v2413 = vunpack.c.h.b16 %v2320
    %v2414 = vunpack.c.l.b16 %v2321
    %v2415 = vunpack.c.h.b16 %v2321
    %v2416 = vunpack.c.l.b16 %v2322
    %v2417 = vunpack.c.h.b16 %v2322
    %v2418 = vunpack.c.l.b16 %v2323
    %v2419 = vunpack.c.h.b16 %v2323
    %v2420 = vpack.c.b16 %v2360, %v2356
    %v2421 = vpack.c.b16 %v2361, %v2357
    %v2422 = vpack.c.b16 %v2362, %v2358
    %v2423 = vpack.c.b16 %v2363, %v2359
    %v2424 = vpack.c.b16 %v2368, %v2364
    %v2425 = vpack.c.b16 %v2369, %v2365
    %v2426 = vpack.c.b16 %v2370, %v2366
    %v2427 = vpack.c.b16 %v2371, %v2367
    %v2428 = vpack.c.b16 %v2376, %v2372
    %v2429 = vpack.c.b16 %v2377, %v2373
    %v2430 = vpack.c.b16 %v2378, %v2374
    %v2431 = vpack.c.b16 %v2379, %v2375
    %v2432 = vpack.c.b16 %v2384, %v2380
    %v2433 = vpack.c.b16 %v2385, %v2381
    %v2434 = vpack.c.b16 %v2386, %v2382
    %v2435 = vpack.c.b16 %v2387, %v2383
    %v2436 = vpack.c.b16 %v2392, %v2388
    %v2437 = vpack.c.b16 %v2393, %v2389
    %v2438 = vpack.c.b16 %v2394, %v2390
    %v2439 = vpack.c.b16 %v2395, %v2391
    %v2440 = vpack.c.b16 %v2400, %v2396
    %v2441 = vpack.c.b16 %v2401, %v2397
    %v2442 = vpack.c.b16 %v2402, %v2398
    %v2443 = vpack.c.b16 %v2403, %v2399
    %v2444 = vpack.c.b16 %v2408, %v2404
    %v2445 = vpack.c.b16 %v2409, %v2405
    %v2446 = vpack.c.b16 %v2410, %v2406
    %v2447 = vpack.c.b16 %v2411, %v2407
    %v2448 = vpack.c.b16 %v2416, %v2412
    %v2449 = vpack.c.b16 %v2417, %v2413
    %v2450 = vpack.c.b16 %v2418, %v2414
    %v2451 = vpack.c.b16 %v2419, %v2415
    %2484 = vmatprep.subr.bf16.mxu0 %v2421
    %2485 = vmatpush1.bf16.msra.mxu0 %v2420
    %2486 = vmatprep.subr.bf16.mxu0 %v2425
    %2487 = vmatpush1.bf16.msra.mxu0 %v2424
    %2488 = vmatprep.subr.bf16.mxu0 %v2429
    %2489 = vmatpush1.bf16.msra.mxu0 %v2428
    %2490 = vmatprep.subr.bf16.mxu0 %v2433
    %2491 = vmatpush1.bf16.msra.mxu0 %v2432
    %2492 = vmatprep.subr.bf16.mxu0 %v2437
    %2493 = vmatpush1.bf16.msra.mxu0 %v2436
    %2494 = vmatprep.subr.bf16.mxu0 %v2441
    %2495 = vmatpush1.bf16.msra.mxu0 %v2440
    %2496 = vmatprep.subr.bf16.mxu0 %v2445
    %2497 = vmatpush1.bf16.msra.mxu0 %v2444
    %2498 = vmatprep.subr.bf16.mxu0 %v2449
    %2499 = vmatpush1.bf16.msra.mxu0 %v2448
    %2500 = vmatprep.subr.bf16.mxu0 0
    %2501 = vmatpush1.bf16.msra.mxu0 0
    %2502 = vmatprep.subr.bf16.mxu0 0
    %2503 = vmatpush1.bf16.msra.mxu0 0
    %2504 = vmatprep.subr.bf16.mxu0 0
    %2505 = vmatpush1.bf16.msra.mxu0 0
    %2506 = vmatprep.subr.bf16.mxu0 0
    %2507 = vmatpush1.bf16.msra.mxu0 0
    %2508 = vmatprep.subr.bf16.mxu0 0
    %2509 = vmatpush1.bf16.msra.mxu0 0
    %2510 = vmatprep.subr.bf16.mxu0 0
    %2511 = vmatpush1.bf16.msra.mxu0 0
    %2512 = vmatprep.subr.bf16.mxu0 0
    %2513 = vmatpush1.bf16.msra.mxu0 0
    %2514 = vmatprep.subr.bf16.mxu0 0
    %2515 = vmatpush1.bf16.msra.mxu0 0
    %2516 = vmatprep.mubr.bf16.mxu0 0
    %2517 = vmatmul.mubr.bf16.gmra.mrb[0].mxu0 %v2291
    %v2518 = vpop.f32.mrb[0].mxu0
    %v2519 = vadd.f32 0.0, %v2518
    %v2520 = vpop.f32.mrb[0].mxu0
    %v2521 = vadd.f32 0.0, %v2520
    %v2522 = vpop.f32.mrb[0].mxu0
    %v2523 = vpop.f32.mrb[0].mxu0
    %2524 = vdwg.mxu0
    %2525 = vmatprep.subr.bf16.mxu0 %v2423
    %2526 = vmatpush1.bf16.msra.mxu0 %v2422
    %2527 = vmatprep.subr.bf16.mxu0 %v2427
    %2528 = vmatpush1.bf16.msra.mxu0 %v2426
    %2529 = vmatprep.subr.bf16.mxu0 %v2431
    %2530 = vmatpush1.bf16.msra.mxu0 %v2430
    %2531 = vmatprep.subr.bf16.mxu0 %v2435
    %2532 = vmatpush1.bf16.msra.mxu0 %v2434
    %2533 = vmatprep.subr.bf16.mxu0 %v2439
    %2534 = vmatpush1.bf16.msra.mxu0 %v2438
    %2535 = vmatprep.subr.bf16.mxu0 %v2443
    %2536 = vmatpush1.bf16.msra.mxu0 %v2442
    %2537 = vmatprep.subr.bf16.mxu0 %v2447
    %2538 = vmatpush1.bf16.msra.mxu0 %v2446
    %2539 = vmatprep.subr.bf16.mxu0 %v2451
    %2540 = vmatpush1.bf16.msra.mxu0 %v2450
    %2541 = vmatprep.subr.bf16.mxu0 0
    %2542 = vmatpush1.bf16.msra.mxu0 0
    %2543 = vmatprep.subr.bf16.mxu0 0
    %2544 = vmatpush1.bf16.msra.mxu0 0
    %2545 = vmatprep.subr.bf16.mxu0 0
    %2546 = vmatpush1.bf16.msra.mxu0 0
    %2547 = vmatprep.subr.bf16.mxu0 0
    %2548 = vmatpush1.bf16.msra.mxu0 0
    %2549 = vmatprep.subr.bf16.mxu0 0
    %2550 = vmatpush1.bf16.msra.mxu0 0
    %2551 = vmatprep.subr.bf16.mxu0 0
    %2552 = vmatpush1.bf16.msra.mxu0 0
    %2553 = vmatprep.subr.bf16.mxu0 0
    %2554 = vmatpush1.bf16.msra.mxu0 0
    %2555 = vmatprep.subr.bf16.mxu0 0
    %2556 = vmatpush1.bf16.msra.mxu0 0
    %2557 = vmatprep.mubr.bf16.mxu0 0
    %2558 = vmatmul.mubr.bf16.gmra.mrb[0].mxu0 %v2291
    %v2559 = vpop.f32.mrb[0].mxu0
    %v2560 = vadd.f32 0.0, %v2559
    %v2561 = vpop.f32.mrb[0].mxu0
    %v2562 = vadd.f32 0.0, %v2561
    %v2563 = vpop.f32.mrb[0].mxu0
    %v2564 = vpop.f32.mrb[0].mxu0
    %2565 = vdwg.mxu0
    %v2566 = vadd.f32 %v2287, %v2519
    %v2567 = vadd.f32 %v2288, %v2521
    %v2568 = vadd.f32 %v2289, %v2560
    %v2569 = vadd.f32 %v2290, %v2562
    %v2570 = vxor.u32 %v2566, 2147483648
    %v2571 = vmul.f32 %v2570, 1.442695
    %v2572 = vpow.pop %v2571
    %v2573 = vadd.f32 %v2572, 1.0
    %v2574 = vrcp.pop %v2573
    %v2575 = vmul.f32 1.0, %v2574
    %v2576 = vxor.u32 %v2567, 2147483648
    %v2577 = vmul.f32 %v2576, 1.442695
    %v2578 = vpow.pop %v2577
    %v2579 = vadd.f32 %v2578, 1.0
    %v2580 = vrcp.pop %v2579
    %v2581 = vmul.f32 1.0, %v2580
    %v2582 = vtanh.pop %v2568
    %v2583 = vxor.u32 %v2569, 2147483648
    %v2584 = vmul.f32 %v2583, 1.442695
    %v2585 = vpow.pop %v2584
    %v2586 = vadd.f32 %v2585, 1.0
    %v2587 = vrcp.pop %v2586
    %v2588 = vmul.f32 1.0, %v2587
    %v2589 = vld [vmem:[#allocation4] sm:$0xff]
    %v2590 = vmul.f32 %v2581, %v2589
    %v2591 = vmul.f32 %v2575, %v2582
    %v2592 = vadd.f32 %v2590, %v2591
    %v2593 = vtanh.pop %v2592
    %v2594 = vmul.f32 %v2588, %v2593
    %2595 = vst [vmem:[#allocation4] sm:$0xff] %v2592
    %v2596 = vpack.c.bf16 %v2594, %v2594
    %2597 = vst [vmem:[#allocation3] sm:$0xf] %v2596
    %s2598 = scalar_lea.vmem [#allocation13], 20
    %2599 = vst [vmem:[%s2598] sm:$0xf] %v2596
    %v2600 = vld [vmem:[#allocation2 + $0xc0] sm:$0xff]
    %v2601 = vld [vmem:[#allocation2 + $0xc8] sm:$0xff]
    %v2602 = vld [vmem:[#allocation2 + $0xd0] sm:$0xff]
    %v2603 = vld [vmem:[#allocation2 + $0xd8] sm:$0xff]
    %v2604 = vld [vmem:[#allocation3] sm:$0xf]
    %v2605 = vld [vmem:[#allocation10] sm:$0xff]
    %v2606 = vld [vmem:[#allocation10 + $0x8] sm:$0xff]
    %v2607 = vld [vmem:[#allocation10 + $0x10] sm:$0xff]
    %v2608 = vld [vmem:[#allocation10 + $0x18] sm:$0xff]
    %v2609 = vld [vmem:[#allocation10 + $0x20] sm:$0xff]
    %v2610 = vld [vmem:[#allocation10 + $0x28] sm:$0xff]
    %v2611 = vld [vmem:[#allocation10 + $0x30] sm:$0xff]
    %v2612 = vld [vmem:[#allocation10 + $0x38] sm:$0xff]
    %v2613 = vld [vmem:[#allocation10 + $0x40] sm:$0xff]
    %v2614 = vld [vmem:[#allocation10 + $0x48] sm:$0xff]
    %v2615 = vld [vmem:[#allocation10 + $0x50] sm:$0xff]
    %v2616 = vld [vmem:[#allocation10 + $0x58] sm:$0xff]
    %v2617 = vld [vmem:[#allocation10 + $0x60] sm:$0xff]
    %v2618 = vld [vmem:[#allocation10 + $0x68] sm:$0xff]
    %v2619 = vld [vmem:[#allocation10 + $0x70] sm:$0xff]
    %v2620 = vld [vmem:[#allocation10 + $0x78] sm:$0xff]
    %v2621 = vld [vmem:[#allocation10 + $0x80] sm:$0xff]
    %v2622 = vld [vmem:[#allocation10 + $0x88] sm:$0xff]
    %v2623 = vld [vmem:[#allocation10 + $0x90] sm:$0xff]
    %v2624 = vld [vmem:[#allocation10 + $0x98] sm:$0xff]
    %v2625 = vld [vmem:[#allocation10 + $0xa0] sm:$0xff]
    %v2626 = vld [vmem:[#allocation10 + $0xa8] sm:$0xff]
    %v2627 = vld [vmem:[#allocation10 + $0xb0] sm:$0xff]
    %v2628 = vld [vmem:[#allocation10 + $0xb8] sm:$0xff]
    %v2629 = vld [vmem:[#allocation10 + $0xc0] sm:$0xff]
    %v2630 = vld [vmem:[#allocation10 + $0xc8] sm:$0xff]
    %v2631 = vld [vmem:[#allocation10 + $0xd0] sm:$0xff]
    %v2632 = vld [vmem:[#allocation10 + $0xd8] sm:$0xff]
    %v2633 = vld [vmem:[#allocation10 + $0xe0] sm:$0xff]
    %v2634 = vld [vmem:[#allocation10 + $0xe8] sm:$0xff]
    %v2635 = vld [vmem:[#allocation10 + $0xf0] sm:$0xff]
    %v2636 = vld [vmem:[#allocation10 + $0xf8] sm:$0xff]
    %v2669 = vunpack.c.l.b16 %v2605
    %v2670 = vunpack.c.h.b16 %v2605
    %v2671 = vunpack.c.l.b16 %v2606
    %v2672 = vunpack.c.h.b16 %v2606
    %v2673 = vunpack.c.l.b16 %v2607
    %v2674 = vunpack.c.h.b16 %v2607
    %v2675 = vunpack.c.l.b16 %v2608
    %v2676 = vunpack.c.h.b16 %v2608
    %v2677 = vunpack.c.l.b16 %v2609
    %v2678 = vunpack.c.h.b16 %v2609
    %v2679 = vunpack.c.l.b16 %v2610
    %v2680 = vunpack.c.h.b16 %v2610
    %v2681 = vunpack.c.l.b16 %v2611
    %v2682 = vunpack.c.h.b16 %v2611
    %v2683 = vunpack.c.l.b16 %v2612
    %v2684 = vunpack.c.h.b16 %v2612
    %v2685 = vunpack.c.l.b16 %v2613
    %v2686 = vunpack.c.h.b16 %v2613
    %v2687 = vunpack.c.l.b16 %v2614
    %v2688 = vunpack.c.h.b16 %v2614
    %v2689 = vunpack.c.l.b16 %v2615
    %v2690 = vunpack.c.h.b16 %v2615
    %v2691 = vunpack.c.l.b16 %v2616
    %v2692 = vunpack.c.h.b16 %v2616
    %v2693 = vunpack.c.l.b16 %v2617
    %v2694 = vunpack.c.h.b16 %v2617
    %v2695 = vunpack.c.l.b16 %v2618
    %v2696 = vunpack.c.h.b16 %v2618
    %v2697 = vunpack.c.l.b16 %v2619
    %v2698 = vunpack.c.h.b16 %v2619
    %v2699 = vunpack.c.l.b16 %v2620
    %v2700 = vunpack.c.h.b16 %v2620
    %v2701 = vunpack.c.l.b16 %v2621
    %v2702 = vunpack.c.h.b16 %v2621
    %v2703 = vunpack.c.l.b16 %v2622
    %v2704 = vunpack.c.h.b16 %v2622
    %v2705 = vunpack.c.l.b16 %v2623
    %v2706 = vunpack.c.h.b16 %v2623
    %v2707 = vunpack.c.l.b16 %v2624
    %v2708 = vunpack.c.h.b16 %v2624
    %v2709 = vunpack.c.l.b16 %v2625
    %v2710 = vunpack.c.h.b16 %v2625
    %v2711 = vunpack.c.l.b16 %v2626
    %v2712 = vunpack.c.h.b16 %v2626
    %v2713 = vunpack.c.l.b16 %v2627
    %v2714 = vunpack.c.h.b16 %v2627
    %v2715 = vunpack.c.l.b16 %v2628
    %v2716 = vunpack.c.h.b16 %v2628
    %v2717 = vunpack.c.l.b16 %v2629
    %v2718 = vunpack.c.h.b16 %v2629
    %v2719 = vunpack.c.l.b16 %v2630
    %v2720 = vunpack.c.h.b16 %v2630
    %v2721 = vunpack.c.l.b16 %v2631
    %v2722 = vunpack.c.h.b16 %v2631
    %v2723 = vunpack.c.l.b16 %v2632
    %v2724 = vunpack.c.h.b16 %v2632
    %v2725 = vunpack.c.l.b16 %v2633
    %v2726 = vunpack.c.h.b16 %v2633
    %v2727 = vunpack.c.l.b16 %v2634
    %v2728 = vunpack.c.h.b16 %v2634
    %v2729 = vunpack.c.l.b16 %v2635
    %v2730 = vunpack.c.h.b16 %v2635
    %v2731 = vunpack.c.l.b16 %v2636
    %v2732 = vunpack.c.h.b16 %v2636
    %v2733 = vpack.c.b16 %v2673, %v2669
    %v2734 = vpack.c.b16 %v2674, %v2670
    %v2735 = vpack.c.b16 %v2675, %v2671
    %v2736 = vpack.c.b16 %v2676, %v2672
    %v2737 = vpack.c.b16 %v2681, %v2677
    %v2738 = vpack.c.b16 %v2682, %v2678
    %v2739 = vpack.c.b16 %v2683, %v2679
    %v2740 = vpack.c.b16 %v2684, %v2680
    %v2741 = vpack.c.b16 %v2689, %v2685
    %v2742 = vpack.c.b16 %v2690, %v2686
    %v2743 = vpack.c.b16 %v2691, %v2687
    %v2744 = vpack.c.b16 %v2692, %v2688
    %v2745 = vpack.c.b16 %v2697, %v2693
    %v2746 = vpack.c.b16 %v2698, %v2694
    %v2747 = vpack.c.b16 %v2699, %v2695
    %v2748 = vpack.c.b16 %v2700, %v2696
    %v2749 = vpack.c.b16 %v2705, %v2701
    %v2750 = vpack.c.b16 %v2706, %v2702
    %v2751 = vpack.c.b16 %v2707, %v2703
    %v2752 = vpack.c.b16 %v2708, %v2704
    %v2753 = vpack.c.b16 %v2713, %v2709
    %v2754 = vpack.c.b16 %v2714, %v2710
    %v2755 = vpack.c.b16 %v2715, %v2711
    %v2756 = vpack.c.b16 %v2716, %v2712
    %v2757 = vpack.c.b16 %v2721, %v2717
    %v2758 = vpack.c.b16 %v2722, %v2718
    %v2759 = vpack.c.b16 %v2723, %v2719
    %v2760 = vpack.c.b16 %v2724, %v2720
    %v2761 = vpack.c.b16 %v2729, %v2725
    %v2762 = vpack.c.b16 %v2730, %v2726
    %v2763 = vpack.c.b16 %v2731, %v2727
    %v2764 = vpack.c.b16 %v2732, %v2728
    %2797 = vmatprep.subr.bf16.mxu0 %v2734
    %2798 = vmatpush1.bf16.msra.mxu0 %v2733
    %2799 = vmatprep.subr.bf16.mxu0 %v2738
    %2800 = vmatpush1.bf16.msra.mxu0 %v2737
    %2801 = vmatprep.subr.bf16.mxu0 %v2742
    %2802 = vmatpush1.bf16.msra.mxu0 %v2741
    %2803 = vmatprep.subr.bf16.mxu0 %v2746
    %2804 = vmatpush1.bf16.msra.mxu0 %v2745
    %2805 = vmatprep.subr.bf16.mxu0 %v2750
    %2806 = vmatpush1.bf16.msra.mxu0 %v2749
    %2807 = vmatprep.subr.bf16.mxu0 %v2754
    %2808 = vmatpush1.bf16.msra.mxu0 %v2753
    %2809 = vmatprep.subr.bf16.mxu0 %v2758
    %2810 = vmatpush1.bf16.msra.mxu0 %v2757
    %2811 = vmatprep.subr.bf16.mxu0 %v2762
    %2812 = vmatpush1.bf16.msra.mxu0 %v2761
    %2813 = vmatprep.subr.bf16.mxu0 0
    %2814 = vmatpush1.bf16.msra.mxu0 0
    %2815 = vmatprep.subr.bf16.mxu0 0
    %2816 = vmatpush1.bf16.msra.mxu0 0
    %2817 = vmatprep.subr.bf16.mxu0 0
    %2818 = vmatpush1.bf16.msra.mxu0 0
    %2819 = vmatprep.subr.bf16.mxu0 0
    %2820 = vmatpush1.bf16.msra.mxu0 0
    %2821 = vmatprep.subr.bf16.mxu0 0
    %2822 = vmatpush1.bf16.msra.mxu0 0
    %2823 = vmatprep.subr.bf16.mxu0 0
    %2824 = vmatpush1.bf16.msra.mxu0 0
    %2825 = vmatprep.subr.bf16.mxu0 0
    %2826 = vmatpush1.bf16.msra.mxu0 0
    %2827 = vmatprep.subr.bf16.mxu0 0
    %2828 = vmatpush1.bf16.msra.mxu0 0
    %2829 = vmatprep.mubr.bf16.mxu0 0
    %2830 = vmatmul.mubr.bf16.gmra.mrb[0].mxu0 %v2604
    %v2831 = vpop.f32.mrb[0].mxu0
    %v2832 = vadd.f32 0.0, %v2831
    %v2833 = vpop.f32.mrb[0].mxu0
    %v2834 = vadd.f32 0.0, %v2833
    %v2835 = vpop.f32.mrb[0].mxu0
    %v2836 = vpop.f32.mrb[0].mxu0
    %2837 = vdwg.mxu0
    %2838 = vmatprep.subr.bf16.mxu0 %v2736
    %2839 = vmatpush1.bf16.msra.mxu0 %v2735
    %2840 = vmatprep.subr.bf16.mxu0 %v2740
    %2841 = vmatpush1.bf16.msra.mxu0 %v2739
    %2842 = vmatprep.subr.bf16.mxu0 %v2744
    %2843 = vmatpush1.bf16.msra.mxu0 %v2743
    %2844 = vmatprep.subr.bf16.mxu0 %v2748
    %2845 = vmatpush1.bf16.msra.mxu0 %v2747
    %2846 = vmatprep.subr.bf16.mxu0 %v2752
    %2847 = vmatpush1.bf16.msra.mxu0 %v2751
    %2848 = vmatprep.subr.bf16.mxu0 %v2756
    %2849 = vmatpush1.bf16.msra.mxu0 %v2755
    %2850 = vmatprep.subr.bf16.mxu0 %v2760
    %2851 = vmatpush1.bf16.msra.mxu0 %v2759
    %2852 = vmatprep.subr.bf16.mxu0 %v2764
    %2853 = vmatpush1.bf16.msra.mxu0 %v2763
    %2854 = vmatprep.subr.bf16.mxu0 0
    %2855 = vmatpush1.bf16.msra.mxu0 0
    %2856 = vmatprep.subr.bf16.mxu0 0
    %2857 = vmatpush1.bf16.msra.mxu0 0
    %2858 = vmatprep.subr.bf16.mxu0 0
    %2859 = vmatpush1.bf16.msra.mxu0 0
    %2860 = vmatprep.subr.bf16.mxu0 0
    %2861 = vmatpush1.bf16.msra.mxu0 0
    %2862 = vmatprep.subr.bf16.mxu0 0
    %2863 = vmatpush1.bf16.msra.mxu0 0
    %2864 = vmatprep.subr.bf16.mxu0 0
    %2865 = vmatpush1.bf16.msra.mxu0 0
    %2866 = vmatprep.subr.bf16.mxu0 0
    %2867 = vmatpush1.bf16.msra.mxu0 0
    %2868 = vmatprep.subr.bf16.mxu0 0
    %2869 = vmatpush1.bf16.msra.mxu0 0
    %2870 = vmatprep.mubr.bf16.mxu0 0
    %2871 = vmatmul.mubr.bf16.gmra.mrb[0].mxu0 %v2604
    %v2872 = vpop.f32.mrb[0].mxu0
    %v2873 = vadd.f32 0.0, %v2872
    %v2874 = vpop.f32.mrb[0].mxu0
    %v2875 = vadd.f32 0.0, %v2874
    %v2876 = vpop.f32.mrb[0].mxu0
    %v2877 = vpop.f32.mrb[0].mxu0
    %2878 = vdwg.mxu0
    %v2879 = vadd.f32 %v2600, %v2832
    %v2880 = vadd.f32 %v2601, %v2834
    %v2881 = vadd.f32 %v2602, %v2873
    %v2882 = vadd.f32 %v2603, %v2875
    %v2883 = vxor.u32 %v2879, 2147483648
    %v2884 = vmul.f32 %v2883, 1.442695
    %v2885 = vpow.pop %v2884
    %v2886 = vadd.f32 %v2885, 1.0
    %v2887 = vrcp.pop %v2886
    %v2888 = vmul.f32 1.0, %v2887
    %v2889 = vxor.u32 %v2880, 2147483648
    %v2890 = vmul.f32 %v2889, 1.442695
    %v2891 = vpow.pop %v2890
    %v2892 = vadd.f32 %v2891, 1.0
    %v2893 = vrcp.pop %v2892
    %v2894 = vmul.f32 1.0, %v2893
    %v2895 = vtanh.pop %v2881
    %v2896 = vxor.u32 %v2882, 2147483648
    %v2897 = vmul.f32 %v2896, 1.442695
    %v2898 = vpow.pop %v2897
    %v2899 = vadd.f32 %v2898, 1.0
    %v2900 = vrcp.pop %v2899
    %v2901 = vmul.f32 1.0, %v2900
    %v2902 = vld [vmem:[#allocation4] sm:$0xff]
    %v2903 = vmul.f32 %v2894, %v2902
    %v2904 = vmul.f32 %v2888, %v2895
    %v2905 = vadd.f32 %v2903, %v2904
    %v2906 = vtanh.pop %v2905
    %v2907 = vmul.f32 %v2901, %v2906
    %2908 = vst [vmem:[#allocation4] sm:$0xff] %v2905
    %v2909 = vpack.c.bf16 %v2907, %v2907
    %2910 = vst [vmem:[#allocation3] sm:$0xf] %v2909
    %s2911 = scalar_lea.vmem [#allocation13], 24
    %2912 = vst [vmem:[%s2911] sm:$0xf] %v2909
    %v2913 = vld [vmem:[#allocation2 + $0xe0] sm:$0xff]
    %v2914 = vld [vmem:[#allocation2 + $0xe8] sm:$0xff]
    %v2915 = vld [vmem:[#allocation2 + $0xf0] sm:$0xff]
    %v2916 = vld [vmem:[#allocation2 + $0xf8] sm:$0xff]
    %v2917 = vld [vmem:[#allocation3] sm:$0xf]
    %v2918 = vld [vmem:[#allocation10] sm:$0xff]
    %v2919 = vld [vmem:[#allocation10 + $0x8] sm:$0xff]
    %v2920 = vld [vmem:[#allocation10 + $0x10] sm:$0xff]
    %v2921 = vld [vmem:[#allocation10 + $0x18] sm:$0xff]
    %v2922 = vld [vmem:[#allocation10 + $0x20] sm:$0xff]
    %v2923 = vld [vmem:[#allocation10 + $0x28] sm:$0xff]
    %v2924 = vld [vmem:[#allocation10 + $0x30] sm:$0xff]
    %v2925 = vld [vmem:[#allocation10 + $0x38] sm:$0xff]
    %v2926 = vld [vmem:[#allocation10 + $0x40] sm:$0xff]
    %v2927 = vld [vmem:[#allocation10 + $0x48] sm:$0xff]
    %v2928 = vld [vmem:[#allocation10 + $0x50] sm:$0xff]
    %v2929 = vld [vmem:[#allocation10 + $0x58] sm:$0xff]
    %v2930 = vld [vmem:[#allocation10 + $0x60] sm:$0xff]
    %v2931 = vld [vmem:[#allocation10 + $0x68] sm:$0xff]
    %v2932 = vld [vmem:[#allocation10 + $0x70] sm:$0xff]
    %v2933 = vld [vmem:[#allocation10 + $0x78] sm:$0xff]
    %v2934 = vld [vmem:[#allocation10 + $0x80] sm:$0xff]
    %v2935 = vld [vmem:[#allocation10 + $0x88] sm:$0xff]
    %v2936 = vld [vmem:[#allocation10 + $0x90] sm:$0xff]
    %v2937 = vld [vmem:[#allocation10 + $0x98] sm:$0xff]
    %v2938 = vld [vmem:[#allocation10 + $0xa0] sm:$0xff]
    %v2939 = vld [vmem:[#allocation10 + $0xa8] sm:$0xff]
    %v2940 = vld [vmem:[#allocation10 + $0xb0] sm:$0xff]
    %v2941 = vld [vmem:[#allocation10 + $0xb8] sm:$0xff]
    %v2942 = vld [vmem:[#allocation10 + $0xc0] sm:$0xff]
    %v2943 = vld [vmem:[#allocation10 + $0xc8] sm:$0xff]
    %v2944 = vld [vmem:[#allocation10 + $0xd0] sm:$0xff]
    %v2945 = vld [vmem:[#allocation10 + $0xd8] sm:$0xff]
    %v2946 = vld [vmem:[#allocation10 + $0xe0] sm:$0xff]
    %v2947 = vld [vmem:[#allocation10 + $0xe8] sm:$0xff]
    %v2948 = vld [vmem:[#allocation10 + $0xf0] sm:$0xff]
    %v2949 = vld [vmem:[#allocation10 + $0xf8] sm:$0xff]
    %v2982 = vunpack.c.l.b16 %v2918
    %v2983 = vunpack.c.h.b16 %v2918
    %v2984 = vunpack.c.l.b16 %v2919
    %v2985 = vunpack.c.h.b16 %v2919
    %v2986 = vunpack.c.l.b16 %v2920
    %v2987 = vunpack.c.h.b16 %v2920
    %v2988 = vunpack.c.l.b16 %v2921
    %v2989 = vunpack.c.h.b16 %v2921
    %v2990 = vunpack.c.l.b16 %v2922
    %v2991 = vunpack.c.h.b16 %v2922
    %v2992 = vunpack.c.l.b16 %v2923
    %v2993 = vunpack.c.h.b16 %v2923
    %v2994 = vunpack.c.l.b16 %v2924
    %v2995 = vunpack.c.h.b16 %v2924
    %v2996 = vunpack.c.l.b16 %v2925
    %v2997 = vunpack.c.h.b16 %v2925
    %v2998 = vunpack.c.l.b16 %v2926
    %v2999 = vunpack.c.h.b16 %v2926
    %v3000 = vunpack.c.l.b16 %v2927
    %v3001 = vunpack.c.h.b16 %v2927
    %v3002 = vunpack.c.l.b16 %v2928
    %v3003 = vunpack.c.h.b16 %v2928
    %v3004 = vunpack.c.l.b16 %v2929
    %v3005 = vunpack.c.h.b16 %v2929
    %v3006 = vunpack.c.l.b16 %v2930
    %v3007 = vunpack.c.h.b16 %v2930
    %v3008 = vunpack.c.l.b16 %v2931
    %v3009 = vunpack.c.h.b16 %v2931
    %v3010 = vunpack.c.l.b16 %v2932
    %v3011 = vunpack.c.h.b16 %v2932
    %v3012 = vunpack.c.l.b16 %v2933
    %v3013 = vunpack.c.h.b16 %v2933
    %v3014 = vunpack.c.l.b16 %v2934
    %v3015 = vunpack.c.h.b16 %v2934
    %v3016 = vunpack.c.l.b16 %v2935
    %v3017 = vunpack.c.h.b16 %v2935
    %v3018 = vunpack.c.l.b16 %v2936
    %v3019 = vunpack.c.h.b16 %v2936
    %v3020 = vunpack.c.l.b16 %v2937
    %v3021 = vunpack.c.h.b16 %v2937
    %v3022 = vunpack.c.l.b16 %v2938
    %v3023 = vunpack.c.h.b16 %v2938
    %v3024 = vunpack.c.l.b16 %v2939
    %v3025 = vunpack.c.h.b16 %v2939
    %v3026 = vunpack.c.l.b16 %v2940
    %v3027 = vunpack.c.h.b16 %v2940
    %v3028 = vunpack.c.l.b16 %v2941
    %v3029 = vunpack.c.h.b16 %v2941
    %v3030 = vunpack.c.l.b16 %v2942
    %v3031 = vunpack.c.h.b16 %v2942
    %v3032 = vunpack.c.l.b16 %v2943
    %v3033 = vunpack.c.h.b16 %v2943
    %v3034 = vunpack.c.l.b16 %v2944
    %v3035 = vunpack.c.h.b16 %v2944
    %v3036 = vunpack.c.l.b16 %v2945
    %v3037 = vunpack.c.h.b16 %v2945
    %v3038 = vunpack.c.l.b16 %v2946
    %v3039 = vunpack.c.h.b16 %v2946
    %v3040 = vunpack.c.l.b16 %v2947
    %v3041 = vunpack.c.h.b16 %v2947
    %v3042 = vunpack.c.l.b16 %v2948
    %v3043 = vunpack.c.h.b16 %v2948
    %v3044 = vunpack.c.l.b16 %v2949
    %v3045 = vunpack.c.h.b16 %v2949
    %v3046 = vpack.c.b16 %v2986, %v2982
    %v3047 = vpack.c.b16 %v2987, %v2983
    %v3048 = vpack.c.b16 %v2988, %v2984
    %v3049 = vpack.c.b16 %v2989, %v2985
    %v3050 = vpack.c.b16 %v2994, %v2990
    %v3051 = vpack.c.b16 %v2995, %v2991
    %v3052 = vpack.c.b16 %v2996, %v2992
    %v3053 = vpack.c.b16 %v2997, %v2993
    %v3054 = vpack.c.b16 %v3002, %v2998
    %v3055 = vpack.c.b16 %v3003, %v2999
    %v3056 = vpack.c.b16 %v3004, %v3000
    %v3057 = vpack.c.b16 %v3005, %v3001
    %v3058 = vpack.c.b16 %v3010, %v3006
    %v3059 = vpack.c.b16 %v3011, %v3007
    %v3060 = vpack.c.b16 %v3012, %v3008
    %v3061 = vpack.c.b16 %v3013, %v3009
    %v3062 = vpack.c.b16 %v3018, %v3014
    %v3063 = vpack.c.b16 %v3019, %v3015
    %v3064 = vpack.c.b16 %v3020, %v3016
    %v3065 = vpack.c.b16 %v3021, %v3017
    %v3066 = vpack.c.b16 %v3026, %v3022
    %v3067 = vpack.c.b16 %v3027, %v3023
    %v3068 = vpack.c.b16 %v3028, %v3024
    %v3069 = vpack.c.b16 %v3029, %v3025
    %v3070 = vpack.c.b16 %v3034, %v3030
    %v3071 = vpack.c.b16 %v3035, %v3031
    %v3072 = vpack.c.b16 %v3036, %v3032
    %v3073 = vpack.c.b16 %v3037, %v3033
    %v3074 = vpack.c.b16 %v3042, %v3038
    %v3075 = vpack.c.b16 %v3043, %v3039
    %v3076 = vpack.c.b16 %v3044, %v3040
    %v3077 = vpack.c.b16 %v3045, %v3041
    %3110 = vmatprep.subr.bf16.mxu0 %v3047
    %3111 = vmatpush1.bf16.msra.mxu0 %v3046
    %3112 = vmatprep.subr.bf16.mxu0 %v3051
    %3113 = vmatpush1.bf16.msra.mxu0 %v3050
    %3114 = vmatprep.subr.bf16.mxu0 %v3055
    %3115 = vmatpush1.bf16.msra.mxu0 %v3054
    %3116 = vmatprep.subr.bf16.mxu0 %v3059
    %3117 = vmatpush1.bf16.msra.mxu0 %v3058
    %3118 = vmatprep.subr.bf16.mxu0 %v3063
    %3119 = vmatpush1.bf16.msra.mxu0 %v3062
    %3120 = vmatprep.subr.bf16.mxu0 %v3067
    %3121 = vmatpush1.bf16.msra.mxu0 %v3066
    %3122 = vmatprep.subr.bf16.mxu0 %v3071
    %3123 = vmatpush1.bf16.msra.mxu0 %v3070
    %3124 = vmatprep.subr.bf16.mxu0 %v3075
    %3125 = vmatpush1.bf16.msra.mxu0 %v3074
    %3126 = vmatprep.subr.bf16.mxu0 0
    %3127 = vmatpush1.bf16.msra.mxu0 0
    %3128 = vmatprep.subr.bf16.mxu0 0
    %3129 = vmatpush1.bf16.msra.mxu0 0
    %3130 = vmatprep.subr.bf16.mxu0 0
    %3131 = vmatpush1.bf16.msra.mxu0 0
    %3132 = vmatprep.subr.bf16.mxu0 0
    %3133 = vmatpush1.bf16.msra.mxu0 0
    %3134 = vmatprep.subr.bf16.mxu0 0
    %3135 = vmatpush1.bf16.msra.mxu0 0
    %3136 = vmatprep.subr.bf16.mxu0 0
    %3137 = vmatpush1.bf16.msra.mxu0 0
    %3138 = vmatprep.subr.bf16.mxu0 0
    %3139 = vmatpush1.bf16.msra.mxu0 0
    %3140 = vmatprep.subr.bf16.mxu0 0
    %3141 = vmatpush1.bf16.msra.mxu0 0
    %3142 = vmatprep.mubr.bf16.mxu0 0
    %3143 = vmatmul.mubr.bf16.gmra.mrb[0].mxu0 %v2917
    %v3144 = vpop.f32.mrb[0].mxu0
    %v3145 = vadd.f32 0.0, %v3144
    %v3146 = vpop.f32.mrb[0].mxu0
    %v3147 = vadd.f32 0.0, %v3146
    %v3148 = vpop.f32.mrb[0].mxu0
    %v3149 = vpop.f32.mrb[0].mxu0
    %3150 = vdwg.mxu0
    %3151 = vmatprep.subr.bf16.mxu0 %v3049
    %3152 = vmatpush1.bf16.msra.mxu0 %v3048
    %3153 = vmatprep.subr.bf16.mxu0 %v3053
    %3154 = vmatpush1.bf16.msra.mxu0 %v3052
    %3155 = vmatprep.subr.bf16.mxu0 %v3057
    %3156 = vmatpush1.bf16.msra.mxu0 %v3056
    %3157 = vmatprep.subr.bf16.mxu0 %v3061
    %3158 = vmatpush1.bf16.msra.mxu0 %v3060
    %3159 = vmatprep.subr.bf16.mxu0 %v3065
    %3160 = vmatpush1.bf16.msra.mxu0 %v3064
    %3161 = vmatprep.subr.bf16.mxu0 %v3069
    %3162 = vmatpush1.bf16.msra.mxu0 %v3068
    %3163 = vmatprep.subr.bf16.mxu0 %v3073
    %3164 = vmatpush1.bf16.msra.mxu0 %v3072
    %3165 = vmatprep.subr.bf16.mxu0 %v3077
    %3166 = vmatpush1.bf16.msra.mxu0 %v3076
    %3167 = vmatprep.subr.bf16.mxu0 0
    %3168 = vmatpush1.bf16.msra.mxu0 0
    %3169 = vmatprep.subr.bf16.mxu0 0
    %3170 = vmatpush1.bf16.msra.mxu0 0
    %3171 = vmatprep.subr.bf16.mxu0 0
    %3172 = vmatpush1.bf16.msra.mxu0 0
    %3173 = vmatprep.subr.bf16.mxu0 0
    %3174 = vmatpush1.bf16.msra.mxu0 0
    %3175 = vmatprep.subr.bf16.mxu0 0
    %3176 = vmatpush1.bf16.msra.mxu0 0
    %3177 = vmatprep.subr.bf16.mxu0 0
    %3178 = vmatpush1.bf16.msra.mxu0 0
    %3179 = vmatprep.subr.bf16.mxu0 0
    %3180 = vmatpush1.bf16.msra.mxu0 0
    %3181 = vmatprep.subr.bf16.mxu0 0
    %3182 = vmatpush1.bf16.msra.mxu0 0
    %3183 = vmatprep.mubr.bf16.mxu0 0
    %3184 = vmatmul.mubr.bf16.gmra.mrb[0].mxu0 %v2917
    %v3185 = vpop.f32.mrb[0].mxu0
    %v3186 = vadd.f32 0.0, %v3185
    %v3187 = vpop.f32.mrb[0].mxu0
    %v3188 = vadd.f32 0.0, %v3187
    %v3189 = vpop.f32.mrb[0].mxu0
    %v3190 = vpop.f32.mrb[0].mxu0
    %3191 = vdwg.mxu0
    %v3192 = vadd.f32 %v2913, %v3145
    %v3193 = vadd.f32 %v2914, %v3147
    %v3194 = vadd.f32 %v2915, %v3186
    %v3195 = vadd.f32 %v2916, %v3188
    %v3196 = vxor.u32 %v3192, 2147483648
    %v3197 = vmul.f32 %v3196, 1.442695
    %v3198 = vpow.pop %v3197
    %v3199 = vadd.f32 %v3198, 1.0
    %v3200 = vrcp.pop %v3199
    %v3201 = vmul.f32 1.0, %v3200
    %v3202 = vxor.u32 %v3193, 2147483648
    %v3203 = vmul.f32 %v3202, 1.442695
    %v3204 = vpow.pop %v3203
    %v3205 = vadd.f32 %v3204, 1.0
    %v3206 = vrcp.pop %v3205
    %v3207 = vmul.f32 1.0, %v3206
    %v3208 = vtanh.pop %v3194
    %v3209 = vxor.u32 %v3195, 2147483648
    %v3210 = vmul.f32 %v3209, 1.442695
    %v3211 = vpow.pop %v3210
    %v3212 = vadd.f32 %v3211, 1.0
    %v3213 = vrcp.pop %v3212
    %v3214 = vmul.f32 1.0, %v3213
    %v3215 = vld [vmem:[#allocation4] sm:$0xff]
    %v3216 = vmul.f32 %v3207, %v3215
    %v3217 = vmul.f32 %v3201, %v3208
    %v3218 = vadd.f32 %v3216, %v3217
    %v3219 = vtanh.pop %v3218
    %v3220 = vmul.f32 %v3214, %v3219
    %3221 = vst [vmem:[#allocation4] sm:$0xff] %v3218
    %v3222 = vpack.c.bf16 %v3220, %v3220
    %3223 = vst [vmem:[#allocation3] sm:$0xf] %v3222
    %s3224 = scalar_lea.vmem [#allocation13], 28
    %3225 = vst [vmem:[%s3224] sm:$0xf] %v3222
    // Predicated region
    $region46: #{tpu_custom_call.1} parent=1 // pred_check
      %p3226 = pneg %p82
    $region47: #{tpu_custom_call.1} parent=1 // pred_check_branch
      %3228 = sbr.rel (%p3226) target = $region49
    $region48: #{tpu_custom_call.1} parent=1 // pred_region
      %v3229 = vld [vmem:[#allocation3] sm:$0xf]
      %v3230 = vunpack.c.l.bf16 %v3229
      %3231 = vst [vmem:[#allocation14] sm:$0xff] %v3230
      %v3232 = vld [vmem:[#allocation4] sm:$0xff]
      %3233 = vst [vmem:[#allocation16] sm:$0xff] %v3232
    $region49: #{tpu_custom_call.1} parent=1 // pred_fallthru
      _
    // Predicated region
    $region50: #{tpu_custom_call.1} parent=1 // pred_check
      _
    $region51: #{tpu_custom_call.1} parent=1 // pred_check_branch
      %3235 = sbr.rel (0) target = $region53
    $region52: #{tpu_custom_call.1} parent=1 // pred_region
      %s3237 = ssub.s32 512, 512
      %3238 = vsyncadd [#allocation7], %s3237
      %s3239 = sshll.u32 [#allocation13], 4
      %s3240 = int_to_ptr.vmem [resolvable:$true] %s3239
      %3245 = dma.vmem_to_hbm [thread:$0]  %s3240, 512, %s6, [#allocation7], 64, 64, 4
    $region53: #{tpu_custom_call.1} parent=1 // pred_fallthru
      _
    // Predicated region
    $region54: #{tpu_custom_call.1} parent=1 // pred_check
      _
    $region55: #{tpu_custom_call.1} parent=1 // pred_check_branch
      %3247 = sbr.rel (0) target = $region57
    $region56: #{tpu_custom_call.1} parent=1 // pred_region
      %s3249 = ssub.s32 128, 128
      %3250 = vsyncadd [#allocation15], %s3249
      %s3252 = sshll.u32 [#allocation14], 4
      %s3253 = int_to_ptr.vmem [resolvable:$true] %s3252
      %3255 = dma.vmem_to_hbm [thread:$0]  %s3253, 128, %s7, [#allocation15]
    $region57: #{tpu_custom_call.1} parent=1 // pred_fallthru
      _
    // Predicated region
    $region58: #{tpu_custom_call.1} parent=1 // pred_check
      _
    $region59: #{tpu_custom_call.1} parent=1 // pred_check_branch
      %3257 = sbr.rel (0) target = $region61
    $region60: #{tpu_custom_call.1} parent=1 // pred_region
      %s3259 = ssub.s32 128, 128
      %3260 = vsyncadd [#allocation15], %s3259
      %s3262 = sshll.u32 [#allocation16], 4
      %s3263 = int_to_ptr.vmem [resolvable:$true] %s3262
      %3265 = dma.vmem_to_hbm [thread:$0]  %s3263, 128, %s8, [#allocation15]
    $region61: #{tpu_custom_call.1} parent=1 // pred_fallthru
      _
    // Predicated region
    $region62: #{tpu_custom_call.1} parent=1 // pred_check
      _
    $region63: #{tpu_custom_call.1} parent=1 // pred_check_branch
      %3267 = sbr.rel (0) target = $region65
    $region64: #{tpu_custom_call.1} parent=1 // pred_region
      %3268 = dma.done [#allocation7], 512
    $region65: #{tpu_custom_call.1} parent=1 // pred_fallthru
      _
    // Predicated region
    $region66: #{tpu_custom_call.1} parent=1 // pred_check
      _
    $region67: #{tpu_custom_call.1} parent=1 // pred_check_branch
      %3270 = sbr.rel (0) target = $region69
    $region68: #{tpu_custom_call.1} parent=1 // pred_region
      %3271 = dma.done [#allocation15], 128
    $region69: #{tpu_custom_call.1} parent=1 // pred_fallthru
      _
    // Predicated region
    $region70: #{tpu_custom_call.1} parent=1 // pred_check
      _
    $region71: #{tpu_custom_call.1} parent=1 // pred_check_branch
      %3273 = sbr.rel (0) target = $region73
    $region72: #{tpu_custom_call.1} parent=1 // pred_region
      %3274 = dma.done [#allocation15], 128
    $region73: #{tpu_custom_call.1} parent=1 // pred_fallthru
      _
    %3275 = vsyncpa [#allocation6], 1
    %3276 = vsyncpa [#allocation9], 1
    %3277 = vsyncpa [#allocation12], 1
    %3278 = vsyncpa [#allocation7], 1
    %3279 = vsyncpa [#allocation15], 1

</llo_original>
